<compile_context>
chip_gen: v6e
topology: v6e:2x2x1
jax: 0.10.0
libtpu: 0.0.40
codegen_flags: <defaults>
</compile_context>

<pallas_src>
import functools

import jax
import jax.numpy as jnp
from jax import lax
from jax.experimental import pallas as pl
from jax.experimental.pallas import tpu as pltpu


def _fire_se_kernel(H, W, base,
                    x_ref, wsq_ref, ssq_ref, bsq_ref,
                    wexp_ref, sexp_ref, bexp_ref,
                    wf1_ref, bf1_ref, wf2_ref, bf2_ref,
                    o_ref, pad_ref, a_ref):
    HW = H * W
    C = x_ref.shape[-1]
    Csq = wsq_ref.shape[-1]

    x_bf = x_ref[0]                              # (HW, C) bf16
    x32 = x_bf.astype(jnp.float32)

    # --- Fire.squeeze: 1x1 conv (bf16 MXU, f32 acc) + folded BN + ReLU ----
    s = jnp.dot(x_bf, wsq_ref[...], preferred_element_type=jnp.float32)
    s = jnp.maximum(s * ssq_ref[...] + bsq_ref[...], 0.0)        # (HW, Csq)
    s_bf = s.astype(jnp.bfloat16)

    # --- Build the fused expand operand A = [s | 9 shifted taps] (bf16) ---
    # Halo scratch: rows [base, base+HW) hold s; only the 2*(W+1) border rows
    # the 3x3 taps actually read are zeroed (vertically OOB taps read 0).
    pad_ref[base - W - 1:base, :] = jnp.zeros((W + 1, Csq), jnp.bfloat16)
    pad_ref[base:base + HW, :] = s_bf
    pad_ref[base + HW:base + HW + W + 1, :] = jnp.zeros((W + 1, Csq),
                                                        jnp.bfloat16)

    # Column-boundary masks: only the horizontal taps (dx = +/-1) need them.
    xi = lax.broadcasted_iota(jnp.int32, (HW, 1), 0) % W
    not_left = xi > 0                   # source column valid when dx = -1
    not_right = xi < (W - 1)            # source column valid when dx = +1

    a_ref[:, 0:Csq] = s_bf              # operand column-block of the 1x1 expand
    t = 1
    for dy in (-1, 0, 1):
        for dx in (-1, 0, 1):
            if dy == 0 and dx == 0:
                v = s_bf
            else:
                start = base + dy * W + dx
                v = pad_ref[start:start + HW, :]
            if dx == -1:
                v = jnp.where(not_left, v, jnp.zeros_like(v))
            elif dx == 1:
                v = jnp.where(not_right, v, jnp.zeros_like(v))
            a_ref[:, t * Csq:(t + 1) * Csq] = v
            t += 1

    # --- Fused expand_1x1 + expand_3x3: one (HW,10Csq)x(10Csq,2C) matmul ---
    acc = jnp.dot(a_ref[...], wexp_ref[...],
                  preferred_element_type=jnp.float32)            # (HW, 2C)
    z = jnp.maximum(acc * sexp_ref[...] + bexp_ref[...], 0.0)
    z = z + jnp.concatenate([x32, x32], axis=1)   # residual on both halves

    # --- SEModule: mean over HW, fc1 + ReLU, fc2 + sigmoid, gate ----------
    m = jnp.sum(z, axis=0, keepdims=True) * jnp.float32(1.0 / HW)  # (1, 2C)
    h = jnp.dot(m, wf1_ref[...], preferred_element_type=jnp.float32) \
        + bf1_ref[...]
    h = jnp.maximum(h, 0.0)
    g = jax.nn.sigmoid(
        jnp.dot(h, wf2_ref[...], preferred_element_type=jnp.float32)
        + bf2_ref[...])                                           # (1, 2C)

    # Single lane-dense store; channel order already matches torch.cat(dim=1).
    o_ref[0] = (z * g).astype(o_ref.dtype)


def fireblock_pallas(x_nchw, p):
    N, C, H, W = x_nchw.shape
    HW = H * W
    Csq = p["wsq"].shape[1]
    C2 = 2 * C
    Cse = p["wf1"].shape[1]

    # NCHW -> (N, HW, C), bf16 on the wire (halves the input DMA; the large
    # matmuls consume bf16 anyway, f32 math stays in-kernel).
    x = jnp.transpose(x_nchw, (0, 2, 3, 1)).reshape(N, HW, C)
    x = x.astype(jnp.bfloat16)

    # Fused expand weight: block-diag [[we1, 0], [0, w3]] -> (10*Csq, 2C),
    # so acc[:, :C] = e1 pre-BN and acc[:, C:] = e3 pre-BN.
    w_exp = jnp.zeros((10 * Csq, C2), jnp.float32)
    w_exp = w_exp.at[:Csq, :C].set(p["we1"])
    w_exp = w_exp.at[Csq:, C:].set(p["w3"].reshape(9 * Csq, C))
    w_exp = w_exp.astype(jnp.bfloat16)
    s_exp = jnp.concatenate([p["se1"], p["s3"]], axis=1)          # (1, 2C)
    b_exp = jnp.concatenate([p["be1"], p["b3"]], axis=1)          # (1, 2C)

    wsq = p["wsq"].astype(jnp.bfloat16)

    # Halo geometry: interior starts at `base` (multiple of 8, >= W+1).
    base = ((W + 1 + 7) // 8) * 8
    pad_rows = ((base + HW + W + 1 + 7) // 8) * 8

    def full(shape):
        return pl.BlockSpec(shape, lambda b, _n=len(shape): (0,) * _n)

    kernel = functools.partial(_fire_se_kernel, H, W, base)

    out = pl.pallas_call(
        kernel,
        out_shape=jax.ShapeDtypeStruct((N, HW, C2), jnp.float32),
        grid=(N,),
        in_specs=[
            pl.BlockSpec((1, HW, C), lambda b: (b, 0, 0)),
            full((C, Csq)), full((1, Csq)), full((1, Csq)),
            full((10 * Csq, C2)), full((1, C2)), full((1, C2)),
            full((C2, Cse)), full((1, Cse)),
            full((Cse, C2)), full((1, C2)),
        ],
        out_specs=pl.BlockSpec((1, HW, C2), lambda b: (b, 0, 0)),
        scratch_shapes=[
            pltpu.VMEM((pad_rows, Csq), jnp.bfloat16),     # halo scratch
            pltpu.VMEM((HW, 10 * Csq), jnp.bfloat16),      # fused operand A
        ],
        compiler_params=pltpu.CompilerParams(
            dimension_semantics=("parallel",)),
    )(x, wsq, p["ssq"], p["bsq"],
      w_exp, s_exp, b_exp,
      p["wf1"], p["bf1"], p["wf2"], p["bf2"])

    # (N, HW, 2C) -> (N, 2C, H, W); channel order matches torch.cat(dim=1).
    out = out.reshape(N, H, W, C2)
    return jnp.transpose(out, (0, 3, 1, 2))


def init_params(key, C, reduction):
    Csq = C // reduction
    C2 = 2 * C
    Cse = C2 // reduction
    ks = list(jax.random.split(key, 24))
    nk = iter(ks).__next__

    def w(shape):
        return 0.1 * jax.random.normal(nk(), shape, jnp.float32)

    def bn(n):
        gamma = 1.0 + 0.1 * jax.random.normal(nk(), (n,), jnp.float32)
        beta = 0.1 * jax.random.normal(nk(), (n,), jnp.float32)
        mean = 0.1 * jax.random.normal(nk(), (n,), jnp.float32)
        var = 1.0 + 0.1 * jnp.abs(jax.random.normal(nk(), (n,), jnp.float32))
        return gamma, beta, mean, var

    def fold(bn_p, conv_bias, eps=1e-5):
        gamma, beta, mean, var = bn_p
        scale = gamma / jnp.sqrt(var + eps)
        bias = beta + (conv_bias - mean) * scale
        return scale[None, :], bias[None, :]

    p = {}
    # squeeze 1x1: torch weight (Csq, C) -> right-matmul matrix (C, Csq)
    p["wsq"] = w((C, Csq))
    p["ssq"], p["bsq"] = fold(bn(Csq), w((Csq,)))
    # expand_1x1: torch weight (C, Csq) -> (Csq, C)
    p["we1"] = w((Csq, C))
    p["se1"], p["be1"] = fold(bn(C), w((C,)))
    # expand_3x3: torch (C, Csq, 3, 3) -> per-tap (Csq, C), tap index ky*3+kx
    p["w3"] = w((9, Csq, C))
    p["s3"], p["b3"] = fold(bn(C), w((C,)))
    # SE fc1 / fc2 (1x1 convs on (N, 2C, 1, 1))
    p["wf1"] = w((C2, Cse)); p["bf1"] = w((Cse,))[None, :]
    p["wf2"] = w((Cse, C2)); p["bf2"] = w((C2,))[None, :]
    return p


def fireblock_ref(x_nchw, p):
    """Pure-JAX f32 reference with identical math (explicit spatial padding)."""
    N, C, H, W = x_nchw.shape
    x = jnp.transpose(x_nchw, (0, 2, 3, 1))                       # NHWC
    s = jnp.maximum(
        jnp.einsum('nhwc,cd->nhwd', x, p["wsq"]) * p["ssq"][0] + p["bsq"][0], 0.0)
    e1 = jnp.maximum(
        jnp.einsum('nhwd,dc->nhwc', s, p["we1"]) * p["se1"][0] + p["be1"][0], 0.0) + x
    sp = jnp.pad(s, ((0, 0), (1, 1), (1, 1), (0, 0)))
    acc = jnp.zeros((N, H, W, C), jnp.float32)
    t = 0
    for ky in range(3):
        for kx in range(3):
            acc = acc + jnp.einsum('nhwd,dc->nhwc',
                                   sp[:, ky:ky + H, kx:kx + W, :], p["w3"][t])
            t += 1
    e3 = jnp.maximum(acc * p["s3"][0] + p["b3"][0], 0.0) + x
    z = jnp.concatenate([e1, e3], axis=-1)
    m = jnp.mean(z, axis=(1, 2), keepdims=True)
    h = jnp.maximum(jnp.einsum('nijc,ce->nije', m, p["wf1"]) + p["bf1"][0], 0.0)
    g = jax.nn.sigmoid(jnp.einsum('nije,ec->nijc', h, p["wf2"]) + p["bf2"][0])
    return jnp.transpose(z * g, (0, 3, 1, 2))


if __name__ == "__main__":
    key = jax.random.PRNGKey(0)
    k_x, k_p = jax.random.split(key)

    N, C, H, W = 2, 8, 16, 16
    reduction = 2
    x = jax.random.normal(k_x, (N, C, H, W), jnp.float32)
    params = init_params(k_p, C, reduction)

    out = fireblock_pallas(x, params)
    out = jax.block_until_ready(out)

    ref = fireblock_ref(x, params)
    assert out.shape == (N, 2 * C, H, W), out.shape
    # bf16 streamed input + bf16 MXU matmuls vs f32 reference -> loosened tol.
    assert jnp.allclose(out, ref, atol=4e-2, rtol=4e-2), \
        float(jnp.max(jnp.abs(out - ref)))

    print("KERNEL_OK")
</pallas_src>

<mosaic_0001>
module attributes {stable_mosaic.version = 11 : i64} {
  func.func @_fire_se_kernel(%arg0: i32, %arg1: memref<1x256x8xbf16, #tpu.memory_space<vmem>>, %arg2: memref<8x4xbf16, #tpu.memory_space<vmem>>, %arg3: memref<1x4xf32, #tpu.memory_space<vmem>>, %arg4: memref<1x4xf32, #tpu.memory_space<vmem>>, %arg5: memref<40x16xbf16, #tpu.memory_space<vmem>>, %arg6: memref<1x16xf32, #tpu.memory_space<vmem>>, %arg7: memref<1x16xf32, #tpu.memory_space<vmem>>, %arg8: memref<16x8xf32, #tpu.memory_space<vmem>>, %arg9: memref<1x8xf32, #tpu.memory_space<vmem>>, %arg10: memref<8x16xf32, #tpu.memory_space<vmem>>, %arg11: memref<1x16xf32, #tpu.memory_space<vmem>>, %arg12: memref<1x256x16xf32, #tpu.memory_space<vmem>>, %arg13: memref<304x4xbf16, #tpu.memory_space<vmem>>, %arg14: memref<256x40xbf16, #tpu.memory_space<vmem>>) attributes {dimension_semantics = [#tpu.dimension_semantics<parallel>], iteration_bounds = array<i64: 2>, scalar_prefetch = 0 : i64, scratch_operands = 2 : i64, tpu.core_type = #tpu.core_type<tc>, window_params = [{transform_indices = @transform_0, window_bounds = array<i64: 1, 256, 8>}, {pipeline_mode = #tpu.pipeline_mode<synchronous>, transform_indices = @transform_1, window_bounds = array<i64: 8, 4>}, {pipeline_mode = #tpu.pipeline_mode<synchronous>, transform_indices = @transform_2, window_bounds = array<i64: 1, 4>}, {pipeline_mode = #tpu.pipeline_mode<synchronous>, transform_indices = @transform_3, window_bounds = array<i64: 1, 4>}, {pipeline_mode = #tpu.pipeline_mode<synchronous>, transform_indices = @transform_4, window_bounds = array<i64: 40, 16>}, {pipeline_mode = #tpu.pipeline_mode<synchronous>, transform_indices = @transform_5, window_bounds = array<i64: 1, 16>}, {pipeline_mode = #tpu.pipeline_mode<synchronous>, transform_indices = @transform_6, window_bounds = array<i64: 1, 16>}, {pipeline_mode = #tpu.pipeline_mode<synchronous>, transform_indices = @transform_7, window_bounds = array<i64: 16, 8>}, {pipeline_mode = #tpu.pipeline_mode<synchronous>, transform_indices = @transform_8, window_bounds = array<i64: 1, 8>}, {pipeline_mode = #tpu.pipeline_mode<synchronous>, transform_indices = @transform_9, window_bounds = array<i64: 8, 16>}, {pipeline_mode = #tpu.pipeline_mode<synchronous>, transform_indices = @transform_10, window_bounds = array<i64: 1, 16>}, {transform_indices = @transform_11, window_bounds = array<i64: 1, 256, 16>}]} {
    %c0 = arith.constant 0 : index
    %c0_0 = arith.constant 0 : index
    %c0_1 = arith.constant 0 : index
    %0 = vector.load %arg1[%c0, %c0_0, %c0_1] : memref<1x256x8xbf16, #tpu.memory_space<vmem>>, vector<1x256x8xbf16>
    %1 = vector.shape_cast %0 : vector<1x256x8xbf16> to vector<256x8xbf16>
    %2 = arith.extf %1 : vector<256x8xbf16> to vector<256x8xf32>
    %c0_2 = arith.constant 0 : index
    %c0_3 = arith.constant 0 : index
    %3 = vector.load %arg2[%c0_2, %c0_3] : memref<8x4xbf16, #tpu.memory_space<vmem>>, vector<8x4xbf16>
    %cst = arith.constant dense<0.000000e+00> : vector<256x4xf32>
    %4 = tpu.matmul %1, %3, %cst {dimension_numbers = #tpu.dot_dimension_numbers<[1], [0], [0], [1], [0, 0, 1, 1], [], []>} : vector<256x8xbf16>, vector<8x4xbf16>, vector<256x4xf32> -> vector<256x4xf32>
    %c0_4 = arith.constant 0 : index
    %c0_5 = arith.constant 0 : index
    %5 = vector.load %arg3[%c0_4, %c0_5] : memref<1x4xf32, #tpu.memory_space<vmem>>, vector<1x4xf32>
    %6 = vector.broadcast %5 : vector<1x4xf32> to vector<256x4xf32>
    %7 = arith.mulf %4, %6 : vector<256x4xf32>
    %c0_6 = arith.constant 0 : index
    %c0_7 = arith.constant 0 : index
    %8 = vector.load %arg4[%c0_6, %c0_7] : memref<1x4xf32, #tpu.memory_space<vmem>>, vector<1x4xf32>
    %9 = vector.broadcast %8 : vector<1x4xf32> to vector<256x4xf32>
    %10 = arith.addf %7, %9 : vector<256x4xf32>
    %cst_8 = arith.constant 0.000000e+00 : f32
    %11 = vector.broadcast %cst_8 : f32 to vector<256x4xf32>
    %12 = arith.maximumf %10, %11 : vector<256x4xf32>
    %13 = arith.truncf %12 : vector<256x4xf32> to vector<256x4xbf16>
    %cst_9 = arith.constant 0.000000e+00 : bf16
    %14 = vector.broadcast %cst_9 : bf16 to vector<17x4xbf16>
    %c7 = arith.constant 7 : index
    %c0_10 = arith.constant 0 : index
    %15 = vector.load %arg13[%c7, %c0_10] : memref<304x4xbf16, #tpu.memory_space<vmem>>, vector<17x4xbf16>
    tpu.vector_store %arg13[%c7, %c0_10], %14 {strides = array<i32>} : memref<304x4xbf16, #tpu.memory_space<vmem>>, vector<17x4xbf16>,
    %c24 = arith.constant 24 : index
    %c0_11 = arith.constant 0 : index
    %16 = vector.load %arg13[%c24, %c0_11] : memref<304x4xbf16, #tpu.memory_space<vmem>>, vector<256x4xbf16>
    tpu.vector_store %arg13[%c24, %c0_11], %13 {strides = array<i32>} : memref<304x4xbf16, #tpu.memory_space<vmem>>, vector<256x4xbf16>,
    %cst_12 = arith.constant 0.000000e+00 : bf16
    %17 = vector.broadcast %cst_12 : bf16 to vector<17x4xbf16>
    %c280 = arith.constant 280 : index
    %c0_13 = arith.constant 0 : index
    %18 = vector.load %arg13[%c280, %c0_13] : memref<304x4xbf16, #tpu.memory_space<vmem>>, vector<17x4xbf16>
    tpu.vector_store %arg13[%c280, %c0_13], %17 {strides = array<i32>} : memref<304x4xbf16, #tpu.memory_space<vmem>>, vector<17x4xbf16>,
    %19 = tpu.iota {dimensions = array<i32: 0>} : vector<256x1xi32>
    %c16_i32 = arith.constant 16 : i32
    %c0_i32 = arith.constant 0 : i32
    %20 = arith.cmpi eq, %c16_i32, %c0_i32 : i32
    %c1_i32 = arith.constant 1 : i32
    %21 = arith.select %20, %c1_i32, %c16_i32 : i32
    %22 = vector.broadcast %21 : i32 to vector<256x1xi32>
    %23 = arith.remsi %19, %22 : vector<256x1xi32>
    %c0_i32_14 = arith.constant 0 : i32
    %24 = vector.broadcast %c0_i32_14 : i32 to vector<256x1xi32>
    %25 = arith.cmpi ne, %23, %24 : vector<256x1xi32>
    %c0_i32_15 = arith.constant 0 : i32
    %26 = vector.broadcast %c0_i32_15 : i32 to vector<256x1xi32>
    %27 = arith.cmpi slt, %23, %26 : vector<256x1xi32>
    %c0_i32_16 = arith.constant 0 : i32
    %28 = arith.cmpi slt, %21, %c0_i32_16 : i32
    %29 = vector.broadcast %28 : i1 to vector<256x1xi1>
    %30 = vector.broadcast %29 : vector<256x1xi1> to vector<256x1xi1>
    %31 = arith.xori %27, %30 : vector<256x1xi1>
    %32 = arith.andi %31, %25 : vector<256x1xi1>
    %33 = vector.broadcast %21 : i32 to vector<256x1xi32>
    %34 = arith.addi %23, %33 : vector<256x1xi32>
    %35 = arith.select %32, %34, %23 : vector<256x1xi1>, vector<256x1xi32>
    %c0_i32_17 = arith.constant 0 : i32
    %36 = vector.broadcast %c0_i32_17 : i32 to vector<256x1xi32>
    %37 = arith.cmpi sgt, %35, %36 : vector<256x1xi32>
    %c15_i32 = arith.constant 15 : i32
    %38 = vector.broadcast %c15_i32 : i32 to vector<256x1xi32>
    %39 = arith.cmpi slt, %35, %38 : vector<256x1xi32>
    %c0_18 = arith.constant 0 : index
    %c0_19 = arith.constant 0 : index
    %40 = vector.load %arg14[%c0_18, %c0_19] : memref<256x40xbf16, #tpu.memory_space<vmem>>, vector<256x4xbf16>
    tpu.vector_store %arg14[%c0_18, %c0_19], %13 {strides = array<i32>} : memref<256x40xbf16, #tpu.memory_space<vmem>>, vector<256x4xbf16>,
    %c7_20 = arith.constant 7 : index
    %c0_21 = arith.constant 0 : index
    %41 = vector.load %arg13[%c7_20, %c0_21] : memref<304x4xbf16, #tpu.memory_space<vmem>>, vector<256x4xbf16>
    %cst_22 = arith.constant 0.000000e+00 : bf16
    %42 = vector.broadcast %cst_22 : bf16 to vector<256x4xbf16>
    %43 = vector.shape_cast %37 : vector<256x1xi1> to vector<256x1xi1>
    %44 = vector.broadcast %43 : vector<256x1xi1> to vector<256x4xi1>
    %45 = arith.select %44, %41, %42 : vector<256x4xi1>, vector<256x4xbf16>
    %c0_23 = arith.constant 0 : index
    %c4 = arith.constant 4 : index
    %46 = vector.load %arg14[%c0_23, %c4] : memref<256x40xbf16, #tpu.memory_space<vmem>>, vector<256x4xbf16>
    tpu.vector_store %arg14[%c0_23, %c4], %45 {strides = array<i32>} : memref<256x40xbf16, #tpu.memory_space<vmem>>, vector<256x4xbf16>,
    %c8 = arith.constant 8 : index
    %c0_24 = arith.constant 0 : index
    %47 = vector.load %arg13[%c8, %c0_24] : memref<304x4xbf16, #tpu.memory_space<vmem>>, vector<256x4xbf16>
    %c0_25 = arith.constant 0 : index
    %c8_26 = arith.constant 8 : index
    %48 = vector.load %arg14[%c0_25, %c8_26] : memref<256x40xbf16, #tpu.memory_space<vmem>>, vector<256x4xbf16>
    tpu.vector_store %arg14[%c0_25, %c8_26], %47 {strides = array<i32>} : memref<256x40xbf16, #tpu.memory_space<vmem>>, vector<256x4xbf16>,
    %c9 = arith.constant 9 : index
    %c0_27 = arith.constant 0 : index
    %49 = vector.load %arg13[%c9, %c0_27] : memref<304x4xbf16, #tpu.memory_space<vmem>>, vector<256x4xbf16>
    %cst_28 = arith.constant 0.000000e+00 : bf16
    %50 = vector.broadcast %cst_28 : bf16 to vector<256x4xbf16>
    %51 = vector.shape_cast %39 : vector<256x1xi1> to vector<256x1xi1>
    %52 = vector.broadcast %51 : vector<256x1xi1> to vector<256x4xi1>
    %53 = arith.select %52, %49, %50 : vector<256x4xi1>, vector<256x4xbf16>
    %c0_29 = arith.constant 0 : index
    %c12 = arith.constant 12 : index
    %54 = vector.load %arg14[%c0_29, %c12] : memref<256x40xbf16, #tpu.memory_space<vmem>>, vector<256x4xbf16>
    tpu.vector_store %arg14[%c0_29, %c12], %53 {strides = array<i32>} : memref<256x40xbf16, #tpu.memory_space<vmem>>, vector<256x4xbf16>,
    %c23 = arith.constant 23 : index
    %c0_30 = arith.constant 0 : index
    %55 = vector.load %arg13[%c23, %c0_30] : memref<304x4xbf16, #tpu.memory_space<vmem>>, vector<256x4xbf16>
    %cst_31 = arith.constant 0.000000e+00 : bf16
    %56 = vector.broadcast %cst_31 : bf16 to vector<256x4xbf16>
    %57 = vector.shape_cast %37 : vector<256x1xi1> to vector<256x1xi1>
    %58 = vector.broadcast %57 : vector<256x1xi1> to vector<256x4xi1>
    %59 = arith.select %58, %55, %56 : vector<256x4xi1>, vector<256x4xbf16>
    %c0_32 = arith.constant 0 : index
    %c16 = arith.constant 16 : index
    %60 = vector.load %arg14[%c0_32, %c16] : memref<256x40xbf16, #tpu.memory_space<vmem>>, vector<256x4xbf16>
    tpu.vector_store %arg14[%c0_32, %c16], %59 {strides = array<i32>} : memref<256x40xbf16, #tpu.memory_space<vmem>>, vector<256x4xbf16>,
    %c0_33 = arith.constant 0 : index
    %c20 = arith.constant 20 : index
    %61 = vector.load %arg14[%c0_33, %c20] : memref<256x40xbf16, #tpu.memory_space<vmem>>, vector<256x4xbf16>
    tpu.vector_store %arg14[%c0_33, %c20], %13 {strides = array<i32>} : memref<256x40xbf16, #tpu.memory_space<vmem>>, vector<256x4xbf16>,
    %c25 = arith.constant 25 : index
    %c0_34 = arith.constant 0 : index
    %62 = vector.load %arg13[%c25, %c0_34] : memref<304x4xbf16, #tpu.memory_space<vmem>>, vector<256x4xbf16>
    %cst_35 = arith.constant 0.000000e+00 : bf16
    %63 = vector.broadcast %cst_35 : bf16 to vector<256x4xbf16>
    %64 = vector.shape_cast %39 : vector<256x1xi1> to vector<256x1xi1>
    %65 = vector.broadcast %64 : vector<256x1xi1> to vector<256x4xi1>
    %66 = arith.select %65, %62, %63 : vector<256x4xi1>, vector<256x4xbf16>
    %c0_36 = arith.constant 0 : index
    %c24_37 = arith.constant 24 : index
    %67 = vector.load %arg14[%c0_36, %c24_37] : memref<256x40xbf16, #tpu.memory_space<vmem>>, vector<256x4xbf16>
    tpu.vector_store %arg14[%c0_36, %c24_37], %66 {strides = array<i32>} : memref<256x40xbf16, #tpu.memory_space<vmem>>, vector<256x4xbf16>,
    %c39 = arith.constant 39 : index
    %c0_38 = arith.constant 0 : index
    %68 = vector.load %arg13[%c39, %c0_38] : memref<304x4xbf16, #tpu.memory_space<vmem>>, vector<256x4xbf16>
    %cst_39 = arith.constant 0.000000e+00 : bf16
    %69 = vector.broadcast %cst_39 : bf16 to vector<256x4xbf16>
    %70 = vector.shape_cast %37 : vector<256x1xi1> to vector<256x1xi1>
    %71 = vector.broadcast %70 : vector<256x1xi1> to vector<256x4xi1>
    %72 = arith.select %71, %68, %69 : vector<256x4xi1>, vector<256x4xbf16>
    %c0_40 = arith.constant 0 : index
    %c28 = arith.constant 28 : index
    %73 = vector.load %arg14[%c0_40, %c28] : memref<256x40xbf16, #tpu.memory_space<vmem>>, vector<256x4xbf16>
    tpu.vector_store %arg14[%c0_40, %c28], %72 {strides = array<i32>} : memref<256x40xbf16, #tpu.memory_space<vmem>>, vector<256x4xbf16>,
    %c40 = arith.constant 40 : index
    %c0_41 = arith.constant 0 : index
    %74 = vector.load %arg13[%c40, %c0_41] : memref<304x4xbf16, #tpu.memory_space<vmem>>, vector<256x4xbf16>
    %c0_42 = arith.constant 0 : index
    %c32 = arith.constant 32 : index
    %75 = vector.load %arg14[%c0_42, %c32] : memref<256x40xbf16, #tpu.memory_space<vmem>>, vector<256x4xbf16>
    tpu.vector_store %arg14[%c0_42, %c32], %74 {strides = array<i32>} : memref<256x40xbf16, #tpu.memory_space<vmem>>, vector<256x4xbf16>,
    %c41 = arith.constant 41 : index
    %c0_43 = arith.constant 0 : index
    %76 = vector.load %arg13[%c41, %c0_43] : memref<304x4xbf16, #tpu.memory_space<vmem>>, vector<256x4xbf16>
    %cst_44 = arith.constant 0.000000e+00 : bf16
    %77 = vector.broadcast %cst_44 : bf16 to vector<256x4xbf16>
    %78 = vector.shape_cast %39 : vector<256x1xi1> to vector<256x1xi1>
    %79 = vector.broadcast %78 : vector<256x1xi1> to vector<256x4xi1>
    %80 = arith.select %79, %76, %77 : vector<256x4xi1>, vector<256x4xbf16>
    %c0_45 = arith.constant 0 : index
    %c36 = arith.constant 36 : index
    %81 = vector.load %arg14[%c0_45, %c36] : memref<256x40xbf16, #tpu.memory_space<vmem>>, vector<256x4xbf16>
    tpu.vector_store %arg14[%c0_45, %c36], %80 {strides = array<i32>} : memref<256x40xbf16, #tpu.memory_space<vmem>>, vector<256x4xbf16>,
    %c0_46 = arith.constant 0 : index
    %c0_47 = arith.constant 0 : index
    %82 = vector.load %arg14[%c0_46, %c0_47] : memref<256x40xbf16, #tpu.memory_space<vmem>>, vector<256x40xbf16>
    %c0_48 = arith.constant 0 : index
    %c0_49 = arith.constant 0 : index
    %83 = vector.load %arg5[%c0_48, %c0_49] : memref<40x16xbf16, #tpu.memory_space<vmem>>, vector<40x16xbf16>
    %cst_50 = arith.constant dense<0.000000e+00> : vector<256x16xf32>
    %84 = tpu.matmul %82, %83, %cst_50 {dimension_numbers = #tpu.dot_dimension_numbers<[1], [0], [0], [1], [0, 0, 1, 1], [], []>} : vector<256x40xbf16>, vector<40x16xbf16>, vector<256x16xf32> -> vector<256x16xf32>
    %c0_51 = arith.constant 0 : index
    %c0_52 = arith.constant 0 : index
    %85 = vector.load %arg6[%c0_51, %c0_52] : memref<1x16xf32, #tpu.memory_space<vmem>>, vector<1x16xf32>
    %86 = vector.broadcast %85 : vector<1x16xf32> to vector<256x16xf32>
    %87 = arith.mulf %84, %86 : vector<256x16xf32>
    %c0_53 = arith.constant 0 : index
    %c0_54 = arith.constant 0 : index
    %88 = vector.load %arg7[%c0_53, %c0_54] : memref<1x16xf32, #tpu.memory_space<vmem>>, vector<1x16xf32>
    %89 = vector.broadcast %88 : vector<1x16xf32> to vector<256x16xf32>
    %90 = arith.addf %87, %89 : vector<256x16xf32>
    %cst_55 = arith.constant 0.000000e+00 : f32
    %91 = vector.broadcast %cst_55 : f32 to vector<256x16xf32>
    %92 = arith.maximumf %90, %91 : vector<256x16xf32>
    %93 = tpu.concatenate %2, %2 in 1 : vector<256x8xf32>, vector<256x8xf32> -> vector<256x16xf32>
    %94 = arith.addf %92, %93 : vector<256x16xf32>
    %cst_56 = arith.constant dense<0.000000e+00> : vector<16xf32>
    %95 = vector.multi_reduction <add>, %94, %cst_56 [0] : vector<256x16xf32> to vector<16xf32>
    %96 = vector.shape_cast %95 : vector<16xf32> to vector<1x16xf32>
    %cst_57 = arith.constant 3.906250e-03 : f32
    %97 = vector.broadcast %cst_57 : f32 to vector<1x16xf32>
    %98 = arith.mulf %96, %97 : vector<1x16xf32>
    %c0_58 = arith.constant 0 : index
    %c0_59 = arith.constant 0 : index
    %99 = vector.load %arg8[%c0_58, %c0_59] : memref<16x8xf32, #tpu.memory_space<vmem>>, vector<16x8xf32>
    %cst_60 = arith.constant dense<0.000000e+00> : vector<1x8xf32>
    %100 = tpu.matmul %98, %99, %cst_60 {dimension_numbers = #tpu.dot_dimension_numbers<[1], [0], [0], [1], [0, 0, 1, 1], [], []>} : vector<1x16xf32>, vector<16x8xf32>, vector<1x8xf32> -> vector<1x8xf32>
    %c0_61 = arith.constant 0 : index
    %c0_62 = arith.constant 0 : index
    %101 = vector.load %arg9[%c0_61, %c0_62] : memref<1x8xf32, #tpu.memory_space<vmem>>, vector<1x8xf32>
    %102 = arith.addf %100, %101 : vector<1x8xf32>
    %cst_63 = arith.constant 0.000000e+00 : f32
    %103 = vector.broadcast %cst_63 : f32 to vector<1x8xf32>
    %104 = arith.maximumf %102, %103 : vector<1x8xf32>
    %c0_64 = arith.constant 0 : index
    %c0_65 = arith.constant 0 : index
    %105 = vector.load %arg10[%c0_64, %c0_65] : memref<8x16xf32, #tpu.memory_space<vmem>>, vector<8x16xf32>
    %cst_66 = arith.constant dense<0.000000e+00> : vector<1x16xf32>
    %106 = tpu.matmul %104, %105, %cst_66 {dimension_numbers = #tpu.dot_dimension_numbers<[1], [0], [0], [1], [0, 0, 1, 1], [], []>} : vector<1x8xf32>, vector<8x16xf32>, vector<1x16xf32> -> vector<1x16xf32>
    %c0_67 = arith.constant 0 : index
    %c0_68 = arith.constant 0 : index
    %107 = vector.load %arg11[%c0_67, %c0_68] : memref<1x16xf32, #tpu.memory_space<vmem>>, vector<1x16xf32>
    %108 = arith.addf %106, %107 : vector<1x16xf32>
    %109 = arith.negf %108 : vector<1x16xf32>
    %110 = math.exp %109 : vector<1x16xf32>
    %cst_69 = arith.constant 1.000000e+00 : f32
    %111 = vector.broadcast %cst_69 : f32 to vector<1x16xf32>
    %112 = arith.addf %111, %110 : vector<1x16xf32>
    %113 = arith.divf %111, %112 : vector<1x16xf32>
    %114 = vector.broadcast %113 : vector<1x16xf32> to vector<256x16xf32>
    %115 = arith.mulf %94, %114 : vector<256x16xf32>
    %c0_70 = arith.constant 0 : index
    %c0_71 = arith.constant 0 : index
    %c0_72 = arith.constant 0 : index
    %116 = vector.load %arg12[%c0_70, %c0_71, %c0_72] : memref<1x256x16xf32, #tpu.memory_space<vmem>>, vector<1x256x16xf32>
    %117 = vector.shape_cast %116 : vector<1x256x16xf32> to vector<256x16xf32>
    %118 = vector.shape_cast %115 : vector<256x16xf32> to vector<1x256x16xf32>
    tpu.vector_store %arg12[%c0_70, %c0_71, %c0_72], %118 {strides = array<i32>} : memref<1x256x16xf32, #tpu.memory_space<vmem>>, vector<1x256x16xf32>,
    return
  }
  func.func @transform_0(%arg0: i32) -> (i32, i32, i32) {
    %c0_i32 = arith.constant 0 : i32
    %c0_i32_0 = arith.constant 0 : i32
    %c0_i32_1 = arith.constant 0 : i32
    return %arg0, %c0_i32, %c0_i32_0 : i32, i32, i32
  }
  func.func @transform_1(%arg0: i32) -> (i32, i32) {
    %c0_i32 = arith.constant 0 : i32
    %c0_i32_0 = arith.constant 0 : i32
    %c0_i32_1 = arith.constant 0 : i32
    return %c0_i32, %c0_i32_0 : i32, i32
  }
  func.func @transform_2(%arg0: i32) -> (i32, i32) {
    %c0_i32 = arith.constant 0 : i32
    %c0_i32_0 = arith.constant 0 : i32
    %c0_i32_1 = arith.constant 0 : i32
    return %c0_i32, %c0_i32_0 : i32, i32
  }
  func.func @transform_3(%arg0: i32) -> (i32, i32) {
    %c0_i32 = arith.constant 0 : i32
    %c0_i32_0 = arith.constant 0 : i32
    %c0_i32_1 = arith.constant 0 : i32
    return %c0_i32, %c0_i32_0 : i32, i32
  }
  func.func @transform_4(%arg0: i32) -> (i32, i32) {
    %c0_i32 = arith.constant 0 : i32
    %c0_i32_0 = arith.constant 0 : i32
    %c0_i32_1 = arith.constant 0 : i32
    return %c0_i32, %c0_i32_0 : i32, i32
  }
  func.func @transform_5(%arg0: i32) -> (i32, i32) {
    %c0_i32 = arith.constant 0 : i32
    %c0_i32_0 = arith.constant 0 : i32
    %c0_i32_1 = arith.constant 0 : i32
    return %c0_i32, %c0_i32_0 : i32, i32
  }
  func.func @transform_6(%arg0: i32) -> (i32, i32) {
    %c0_i32 = arith.constant 0 : i32
    %c0_i32_0 = arith.constant 0 : i32
    %c0_i32_1 = arith.constant 0 : i32
    return %c0_i32, %c0_i32_0 : i32, i32
  }
  func.func @transform_7(%arg0: i32) -> (i32, i32) {
    %c0_i32 = arith.constant 0 : i32
    %c0_i32_0 = arith.constant 0 : i32
    %c0_i32_1 = arith.constant 0 : i32
    return %c0_i32, %c0_i32_0 : i32, i32
  }
  func.func @transform_8(%arg0: i32) -> (i32, i32) {
    %c0_i32 = arith.constant 0 : i32
    %c0_i32_0 = arith.constant 0 : i32
    %c0_i32_1 = arith.constant 0 : i32
    return %c0_i32, %c0_i32_0 : i32, i32
  }
  func.func @transform_9(%arg0: i32) -> (i32, i32) {
    %c0_i32 = arith.constant 0 : i32
    %c0_i32_0 = arith.constant 0 : i32
    %c0_i32_1 = arith.constant 0 : i32
    return %c0_i32, %c0_i32_0 : i32, i32
  }
  func.func @transform_10(%arg0: i32) -> (i32, i32) {
    %c0_i32 = arith.constant 0 : i32
    %c0_i32_0 = arith.constant 0 : i32
    %c0_i32_1 = arith.constant 0 : i32
    return %c0_i32, %c0_i32_0 : i32, i32
  }
  func.func @transform_11(%arg0: i32) -> (i32, i32, i32) {
    %c0_i32 = arith.constant 0 : i32
    %c0_i32_0 = arith.constant 0 : i32
    %c0_i32_1 = arith.constant 0 : i32
    return %arg0, %c0_i32, %c0_i32_0 : i32, i32, i32
  }
}

</mosaic_0001>

<llo_original>
// kernel: tpu_custom_call.1
$region0: #{tpu_custom_call.1}
  #allocation0 [shape = 'u32[]', space=smem, size = 0x4, offset = 0x4, fixed_abs, tag = 'smem constant byte address 0x4 - core index']
  #allocation1 [shape = 'u32[144,128]{1,0:T(1,128)}', space=vmem, size = 0x12000, scoped, tag = 'internal scratch']
  #allocation2 [shape = 'bf16[304,4]{1,0:T(8,128)(2,1)}', space=vmem, size = 0x13000, scoped, tag = 'scratch operand']
  #allocation3 [shape = 'bf16[256,40]{1,0:T(8,128)(2,1)}', space=vmem, size = 0x10000, scoped, tag = 'scratch operand']
  %s0 = inlined_call_operand.vmem [shape: bf16[2,256,8], index: 0, kind: input, shape index: {}]
  %s1 = inlined_call_operand.vmem [shape: bf16[8,4], index: 1, kind: input, shape index: {}]
  %s2 = inlined_call_operand.vmem [shape: f32[1,4], index: 2, kind: input, shape index: {}]
  %s3 = inlined_call_operand.vmem [shape: f32[1,4], index: 3, kind: input, shape index: {}]
  %s4 = inlined_call_operand.vmem [shape: bf16[40,16], index: 4, kind: input, shape index: {}]
  %s5 = inlined_call_operand.vmem [shape: f32[1,16], index: 5, kind: input, shape index: {}]
  %s6 = inlined_call_operand.vmem [shape: f32[1,16], index: 6, kind: input, shape index: {}]
  %s7 = inlined_call_operand.vmem [shape: f32[16,8], index: 7, kind: input, shape index: {}]
  %s8 = inlined_call_operand.vmem [shape: f32[1,8], index: 8, kind: input, shape index: {}]
  %s9 = inlined_call_operand.vmem [shape: f32[8,16], index: 9, kind: input, shape index: {}]
  %s10 = inlined_call_operand.vmem [shape: f32[1,16], index: 10, kind: input, shape index: {}]
  %s11 = inlined_call_operand.vmem [shape: f32[2,256,16], index: 11, kind: output, shape index: {}]
  %s12 = sld [smem:[#allocation0]]
  $region77: #{tpu_custom_call.1} parent=0
    _
  %s14 = ssub.s32 1, %s12
  %s15 = scalar_select 0, %s14, %s12
  loop: start=0, step=1, limit=4
  $region2: #{tpu_custom_call.1} parent=0 // loop_pre_header
    _
  $region3: #{tpu_custom_call.1} parent=0 // loop_header
    %s17 = sphi 0, %s21
    %p18 = scmp.ge.s32.totalorder %s17, 4
    %s27 = sphi 0, %s29
    %s30 = sphi 0, %s27
    %s31 = sphi 0, %s30
    %s47 = sphi 0, %s31
    %s51 = sphi 0, %s51
    %s53 = sphi 0, %s51
    %s54 = sphi 0, %s53
    %s68 = sphi 0, %s54
    %s72 = sphi 0, %s72
    %s74 = sphi 0, %s72
    %s75 = sphi 0, %s74
    %s89 = sphi 0, %s75
    %s93 = sphi 0, %s93
    %s95 = sphi 0, %s93
    %s96 = sphi 0, %s95
    %s110 = sphi 0, %s96
    %s114 = sphi 0, %s114
    %s116 = sphi 0, %s114
    %s117 = sphi 0, %s116
    %s131 = sphi 0, %s117
    %s135 = sphi 0, %s135
    %s137 = sphi 0, %s135
    %s138 = sphi 0, %s137
    %s152 = sphi 0, %s138
    %s156 = sphi 0, %s156
    %s158 = sphi 0, %s156
    %s159 = sphi 0, %s158
    %s173 = sphi 0, %s159
    %s177 = sphi 0, %s177
    %s179 = sphi 0, %s177
    %s180 = sphi 0, %s179
    %s194 = sphi 0, %s180
    %s198 = sphi 0, %s198
    %s200 = sphi 0, %s198
    %s201 = sphi 0, %s200
    %s215 = sphi 0, %s201
    %s219 = sphi 0, %s219
    %s221 = sphi 0, %s219
    %s222 = sphi 0, %s221
    %s236 = sphi 0, %s222
    %s240 = sphi 0, %s240
    %s242 = sphi 0, %s240
    %s243 = sphi 0, %s242
    %s257 = sphi 0, %s243
    %s263 = sphi 0, %s265
    %s266 = sphi 0, %s263
    %s267 = sphi 0, %s266
    %s283 = sphi 0, %s267
  $region4: #{tpu_custom_call.1} parent=0 // loop_header_branch
    %20 = sbr.rel (%p18) target = $region8
  $region5: #{tpu_custom_call.1} parent=0 // loop_body
    %s22 = ssub.s32 %s17, 1
    %s23 = ssub.s32 %s17, 2
    %s24 = sadd.s32 %s17, 1
    %s25 = ssub.s32 %s17, %s24
    %p26 = scmp.eq.s32.totalorder %s25, 0
    %s28 = sadd.s32 %s27, 1
    %s29 = scalar_select %p26, %s27, %s28
    %p32 = pneg %p26
    %p33 = scmp.eq.s32.totalorder %s17, 1
    %p34 = por %p32, %p33
    %p35 = scmp.ne.s32.totalorder %s27, %s30
    %p36 = scmp.eq.s32.totalorder %s17, 0
    %p37 = por %p35, %p36
    %p38 = scmp.ne.s32.totalorder %s27, %s30
    %p39 = scmp.eq.s32.totalorder %s22, 1
    %p40 = por %p38, %p39
    %p41 = scmp.ne.s32.totalorder %s30, %s31
    %p42 = scmp.eq.s32.totalorder %s22, 0
    %p43 = por %p41, %p42
    %p44 = scmp.ne.s32.totalorder %s30, %s31
    %p45 = scmp.eq.s32.totalorder %s23, 1
    %p46 = por %p44, %p45
    %p48 = scmp.ne.s32.totalorder %s31, %s47
    %p49 = scmp.eq.s32.totalorder %s23, 0
    %p50 = por %p48, %p49
    %s52 = sadd.s32 %s51, 1
    %p55 = scmp.eq.s32.totalorder %s17, 1
    %p56 = scmp.ne.s32.totalorder %s51, %s53
    %p57 = scmp.eq.s32.totalorder %s17, 0
    %p58 = por %p56, %p57
    %p59 = scmp.ne.s32.totalorder %s51, %s53
    %p60 = scmp.eq.s32.totalorder %s22, 1
    %p61 = por %p59, %p60
    %p62 = scmp.ne.s32.totalorder %s53, %s54
    %p63 = scmp.eq.s32.totalorder %s22, 0
    %p64 = por %p62, %p63
    %p65 = scmp.ne.s32.totalorder %s53, %s54
    %p66 = scmp.eq.s32.totalorder %s23, 1
    %p67 = por %p65, %p66
    %p69 = scmp.ne.s32.totalorder %s54, %s68
    %p70 = scmp.eq.s32.totalorder %s23, 0
    %p71 = por %p69, %p70
    %s73 = sadd.s32 %s72, 1
    %p76 = scmp.eq.s32.totalorder %s17, 1
    %p77 = scmp.ne.s32.totalorder %s72, %s74
    %p78 = scmp.eq.s32.totalorder %s17, 0
    %p79 = por %p77, %p78
    %p80 = scmp.ne.s32.totalorder %s72, %s74
    %p81 = scmp.eq.s32.totalorder %s22, 1
    %p82 = por %p80, %p81
    %p83 = scmp.ne.s32.totalorder %s74, %s75
    %p84 = scmp.eq.s32.totalorder %s22, 0
    %p85 = por %p83, %p84
    %p86 = scmp.ne.s32.totalorder %s74, %s75
    %p87 = scmp.eq.s32.totalorder %s23, 1
    %p88 = por %p86, %p87
    %p90 = scmp.ne.s32.totalorder %s75, %s89
    %p91 = scmp.eq.s32.totalorder %s23, 0
    %p92 = por %p90, %p91
    %s94 = sadd.s32 %s93, 1
    %p97 = scmp.eq.s32.totalorder %s17, 1
    %p98 = scmp.ne.s32.totalorder %s93, %s95
    %p99 = scmp.eq.s32.totalorder %s17, 0
    %p100 = por %p98, %p99
    %p101 = scmp.ne.s32.totalorder %s93, %s95
    %p102 = scmp.eq.s32.totalorder %s22, 1
    %p103 = por %p101, %p102
    %p104 = scmp.ne.s32.totalorder %s95, %s96
    %p105 = scmp.eq.s32.totalorder %s22, 0
    %p106 = por %p104, %p105
    %p107 = scmp.ne.s32.totalorder %s95, %s96
    %p108 = scmp.eq.s32.totalorder %s23, 1
    %p109 = por %p107, %p108
    %p111 = scmp.ne.s32.totalorder %s96, %s110
    %p112 = scmp.eq.s32.totalorder %s23, 0
    %p113 = por %p111, %p112
    %s115 = sadd.s32 %s114, 1
    %p118 = scmp.eq.s32.totalorder %s17, 1
    %p119 = scmp.ne.s32.totalorder %s114, %s116
    %p120 = scmp.eq.s32.totalorder %s17, 0
    %p121 = por %p119, %p120
    %p122 = scmp.ne.s32.totalorder %s114, %s116
    %p123 = scmp.eq.s32.totalorder %s22, 1
    %p124 = por %p122, %p123
    %p125 = scmp.ne.s32.totalorder %s116, %s117
    %p126 = scmp.eq.s32.totalorder %s22, 0
    %p127 = por %p125, %p126
    %p128 = scmp.ne.s32.totalorder %s116, %s117
    %p129 = scmp.eq.s32.totalorder %s23, 1
    %p130 = por %p128, %p129
    %p132 = scmp.ne.s32.totalorder %s117, %s131
    %p133 = scmp.eq.s32.totalorder %s23, 0
    %p134 = por %p132, %p133
    %s136 = sadd.s32 %s135, 1
    %p139 = scmp.eq.s32.totalorder %s17, 1
    %p140 = scmp.ne.s32.totalorder %s135, %s137
    %p141 = scmp.eq.s32.totalorder %s17, 0
    %p142 = por %p140, %p141
    %p143 = scmp.ne.s32.totalorder %s135, %s137
    %p144 = scmp.eq.s32.totalorder %s22, 1
    %p145 = por %p143, %p144
    %p146 = scmp.ne.s32.totalorder %s137, %s138
    %p147 = scmp.eq.s32.totalorder %s22, 0
    %p148 = por %p146, %p147
    %p149 = scmp.ne.s32.totalorder %s137, %s138
    %p150 = scmp.eq.s32.totalorder %s23, 1
    %p151 = por %p149, %p150
    %p153 = scmp.ne.s32.totalorder %s138, %s152
    %p154 = scmp.eq.s32.totalorder %s23, 0
    %p155 = por %p153, %p154
    %s157 = sadd.s32 %s156, 1
    %p160 = scmp.eq.s32.totalorder %s17, 1
    %p161 = scmp.ne.s32.totalorder %s156, %s158
    %p162 = scmp.eq.s32.totalorder %s17, 0
    %p163 = por %p161, %p162
    %p164 = scmp.ne.s32.totalorder %s156, %s158
    %p165 = scmp.eq.s32.totalorder %s22, 1
    %p166 = por %p164, %p165
    %p167 = scmp.ne.s32.totalorder %s158, %s159
    %p168 = scmp.eq.s32.totalorder %s22, 0
    %p169 = por %p167, %p168
    %p170 = scmp.ne.s32.totalorder %s158, %s159
    %p171 = scmp.eq.s32.totalorder %s23, 1
    %p172 = por %p170, %p171
    %p174 = scmp.ne.s32.totalorder %s159, %s173
    %p175 = scmp.eq.s32.totalorder %s23, 0
    %p176 = por %p174, %p175
    %s178 = sadd.s32 %s177, 1
    %p181 = scmp.eq.s32.totalorder %s17, 1
    %p182 = scmp.ne.s32.totalorder %s177, %s179
    %p183 = scmp.eq.s32.totalorder %s17, 0
    %p184 = por %p182, %p183
    %p185 = scmp.ne.s32.totalorder %s177, %s179
    %p186 = scmp.eq.s32.totalorder %s22, 1
    %p187 = por %p185, %p186
    %p188 = scmp.ne.s32.totalorder %s179, %s180
    %p189 = scmp.eq.s32.totalorder %s22, 0
    %p190 = por %p188, %p189
    %p191 = scmp.ne.s32.totalorder %s179, %s180
    %p192 = scmp.eq.s32.totalorder %s23, 1
    %p193 = por %p191, %p192
    %p195 = scmp.ne.s32.totalorder %s180, %s194
    %p196 = scmp.eq.s32.totalorder %s23, 0
    %p197 = por %p195, %p196
    %s199 = sadd.s32 %s198, 1
    %p202 = scmp.eq.s32.totalorder %s17, 1
    %p203 = scmp.ne.s32.totalorder %s198, %s200
    %p204 = scmp.eq.s32.totalorder %s17, 0
    %p205 = por %p203, %p204
    %p206 = scmp.ne.s32.totalorder %s198, %s200
    %p207 = scmp.eq.s32.totalorder %s22, 1
    %p208 = por %p206, %p207
    %p209 = scmp.ne.s32.totalorder %s200, %s201
    %p210 = scmp.eq.s32.totalorder %s22, 0
    %p211 = por %p209, %p210
    %p212 = scmp.ne.s32.totalorder %s200, %s201
    %p213 = scmp.eq.s32.totalorder %s23, 1
    %p214 = por %p212, %p213
    %p216 = scmp.ne.s32.totalorder %s201, %s215
    %p217 = scmp.eq.s32.totalorder %s23, 0
    %p218 = por %p216, %p217
    %s220 = sadd.s32 %s219, 1
    %p223 = scmp.eq.s32.totalorder %s17, 1
    %p224 = scmp.ne.s32.totalorder %s219, %s221
    %p225 = scmp.eq.s32.totalorder %s17, 0
    %p226 = por %p224, %p225
    %p227 = scmp.ne.s32.totalorder %s219, %s221
    %p228 = scmp.eq.s32.totalorder %s22, 1
    %p229 = por %p227, %p228
    %p230 = scmp.ne.s32.totalorder %s221, %s222
    %p231 = scmp.eq.s32.totalorder %s22, 0
    %p232 = por %p230, %p231
    %p233 = scmp.ne.s32.totalorder %s221, %s222
    %p234 = scmp.eq.s32.totalorder %s23, 1
    %p235 = por %p233, %p234
    %p237 = scmp.ne.s32.totalorder %s222, %s236
    %p238 = scmp.eq.s32.totalorder %s23, 0
    %p239 = por %p237, %p238
    %s241 = sadd.s32 %s240, 1
    %p244 = scmp.eq.s32.totalorder %s17, 1
    %p245 = scmp.ne.s32.totalorder %s240, %s242
    %p246 = scmp.eq.s32.totalorder %s17, 0
    %p247 = por %p245, %p246
    %p248 = scmp.ne.s32.totalorder %s240, %s242
    %p249 = scmp.eq.s32.totalorder %s22, 1
    %p250 = por %p248, %p249
    %p251 = scmp.ne.s32.totalorder %s242, %s243
    %p252 = scmp.eq.s32.totalorder %s22, 0
    %p253 = por %p251, %p252
    %p254 = scmp.ne.s32.totalorder %s242, %s243
    %p255 = scmp.eq.s32.totalorder %s23, 1
    %p256 = por %p254, %p255
    %p258 = scmp.ne.s32.totalorder %s243, %s257
    %p259 = scmp.eq.s32.totalorder %s23, 0
    %p260 = por %p258, %p259
    %s261 = ssub.s32 %s17, %s24
    %p262 = scmp.eq.s32.totalorder %s261, 0
    %s264 = sadd.s32 %s263, 1
    %s265 = scalar_select %p262, %s263, %s264
    %p268 = pneg %p262
    %p269 = scmp.eq.s32.totalorder %s17, 1
    %p270 = por %p268, %p269
    %p271 = scmp.ne.s32.totalorder %s263, %s266
    %p272 = scmp.eq.s32.totalorder %s17, 0
    %p273 = por %p271, %p272
    %p274 = scmp.ne.s32.totalorder %s263, %s266
    %p275 = scmp.eq.s32.totalorder %s22, 1
    %p276 = por %p274, %p275
    %p277 = scmp.ne.s32.totalorder %s266, %s267
    %p278 = scmp.eq.s32.totalorder %s22, 0
    %p279 = por %p277, %p278
    %p280 = scmp.ne.s32.totalorder %s266, %s267
    %p281 = scmp.eq.s32.totalorder %s23, 1
    %p282 = por %p280, %p281
    %p284 = scmp.ne.s32.totalorder %s267, %s283
    %p285 = scmp.eq.s32.totalorder %s23, 0
    %p286 = por %p284, %p285
    %p287 = scmp.le.s32.totalorder 1, %s17
    %p288 = scmp.lt.s32.totalorder %s17, 3
    %p289 = pnand %p287, %p288
    %p290 = pneg %p289
    // Predicated region
    $region9: #{tpu_custom_call.1} parent=5 // pred_check
      _
    $region10: #{tpu_custom_call.1} parent=5 // pred_check_branch
      %292 = sbr.rel (%p289) target = $region12
    $region11: #{tpu_custom_call.1} parent=5 // pred_region
      %s293 = ssub.s32 %s17, 1
      // Predicated region
      $region13: #{tpu_custom_call.1} parent=11 // pred_check
        %p294 = pneg %p64
      $region14: #{tpu_custom_call.1} parent=11 // pred_check_branch
        %296 = sbr.rel (%p294) target = $region16
      $region15: #{tpu_custom_call.1} parent=11 // pred_region
        _
      $region16: #{tpu_custom_call.1} parent=11 // pred_fallthru
        _
      // Predicated region
      $region17: #{tpu_custom_call.1} parent=11 // pred_check
        %p297 = pneg %p85
      $region18: #{tpu_custom_call.1} parent=11 // pred_check_branch
        %299 = sbr.rel (%p297) target = $region20
      $region19: #{tpu_custom_call.1} parent=11 // pred_region
        _
      $region20: #{tpu_custom_call.1} parent=11 // pred_fallthru
        _
      // Predicated region
      $region21: #{tpu_custom_call.1} parent=11 // pred_check
        %p300 = pneg %p106
      $region22: #{tpu_custom_call.1} parent=11 // pred_check_branch
        %302 = sbr.rel (%p300) target = $region24
      $region23: #{tpu_custom_call.1} parent=11 // pred_region
        _
      $region24: #{tpu_custom_call.1} parent=11 // pred_fallthru
        _
      // Predicated region
      $region25: #{tpu_custom_call.1} parent=11 // pred_check
        %p303 = pneg %p127
      $region26: #{tpu_custom_call.1} parent=11 // pred_check_branch
        %305 = sbr.rel (%p303) target = $region28
      $region27: #{tpu_custom_call.1} parent=11 // pred_region
        _
      $region28: #{tpu_custom_call.1} parent=11 // pred_fallthru
        _
      // Predicated region
      $region29: #{tpu_custom_call.1} parent=11 // pred_check
        %p306 = pneg %p148
      $region30: #{tpu_custom_call.1} parent=11 // pred_check_branch
        %308 = sbr.rel (%p306) target = $region32
      $region31: #{tpu_custom_call.1} parent=11 // pred_region
        _
      $region32: #{tpu_custom_call.1} parent=11 // pred_fallthru
        _
      // Predicated region
      $region33: #{tpu_custom_call.1} parent=11 // pred_check
        %p309 = pneg %p169
      $region34: #{tpu_custom_call.1} parent=11 // pred_check_branch
        %311 = sbr.rel (%p309) target = $region36
      $region35: #{tpu_custom_call.1} parent=11 // pred_region
        _
      $region36: #{tpu_custom_call.1} parent=11 // pred_fallthru
        _
      // Predicated region
      $region37: #{tpu_custom_call.1} parent=11 // pred_check
        %p312 = pneg %p190
      $region38: #{tpu_custom_call.1} parent=11 // pred_check_branch
        %314 = sbr.rel (%p312) target = $region40
      $region39: #{tpu_custom_call.1} parent=11 // pred_region
        _
      $region40: #{tpu_custom_call.1} parent=11 // pred_fallthru
        _
      // Predicated region
      $region41: #{tpu_custom_call.1} parent=11 // pred_check
        %p315 = pneg %p211
      $region42: #{tpu_custom_call.1} parent=11 // pred_check_branch
        %317 = sbr.rel (%p315) target = $region44
      $region43: #{tpu_custom_call.1} parent=11 // pred_region
        _
      $region44: #{tpu_custom_call.1} parent=11 // pred_fallthru
        _
      // Predicated region
      $region45: #{tpu_custom_call.1} parent=11 // pred_check
        %p318 = pneg %p232
      $region46: #{tpu_custom_call.1} parent=11 // pred_check_branch
        %320 = sbr.rel (%p318) target = $region48
      $region47: #{tpu_custom_call.1} parent=11 // pred_region
        _
      $region48: #{tpu_custom_call.1} parent=11 // pred_fallthru
        _
      // Predicated region
      $region49: #{tpu_custom_call.1} parent=11 // pred_check
        %p321 = pneg %p253
      $region50: #{tpu_custom_call.1} parent=11 // pred_check_branch
        %323 = sbr.rel (%p321) target = $region52
      $region51: #{tpu_custom_call.1} parent=11 // pred_region
        _
      $region52: #{tpu_custom_call.1} parent=11 // pred_fallthru
        _
    $region12: #{tpu_custom_call.1} parent=5 // pred_fallthru
      _
    %p324 = scmp.lt.s32.totalorder %s17, 2
    // Predicated region
    $region53: #{tpu_custom_call.1} parent=5 // pred_check
      %p325 = pneg %p324
    $region54: #{tpu_custom_call.1} parent=5 // pred_check_branch
      %327 = sbr.rel (%p325) target = $region56
    $region55: #{tpu_custom_call.1} parent=5 // pred_region
      // Predicated region
      $region57: #{tpu_custom_call.1} parent=55 // pred_check
        %p328 = pneg %p37
      $region58: #{tpu_custom_call.1} parent=55 // pred_check_branch
        %330 = sbr.rel (%p328) target = $region60
      $region59: #{tpu_custom_call.1} parent=55 // pred_region
        %p331 = scmp.lt.s32.totalorder %s17, 1
        %s332 = scalar_select %p331, %s17, 1
        %s333 = smul.addr %s332, 32
        %s334 = smul.addr %s333, 4
        %s335 = scalar_lea.vmem %s0, %s334
      $region60: #{tpu_custom_call.1} parent=55 // pred_fallthru
        _
    $region56: #{tpu_custom_call.1} parent=5 // pred_fallthru
      _
    %p336 = scmp.le.s32.totalorder 1, %s17
    %p337 = scmp.lt.s32.totalorder %s17, 3
    %p338 = pnand %p336, %p337
    %p339 = pneg %p338
    // Predicated region
    $region61: #{tpu_custom_call.1} parent=5 // pred_check
      _
    $region62: #{tpu_custom_call.1} parent=5 // pred_check_branch
      %341 = sbr.rel (%p338) target = $region64
    $region63: #{tpu_custom_call.1} parent=5 // pred_region
      %s342 = ssub.s32 %s17, 1
      %p343 = scmp.lt.s32.totalorder %s22, 1
      %s344 = scalar_select %p343, %s22, 1
      %s345 = smul.addr %s344, 32
      %s346 = smul.addr %s345, 4
      %s347 = scalar_lea.vmem %s0, %s346
      %p348 = pneg %p43
      %p349 = pneg %p40
      %p350 = pneg %p64
      %p351 = pneg %p61
      %p352 = pneg %p85
      %p353 = pneg %p82
      %p354 = pneg %p106
      %p355 = pneg %p103
      %p356 = pneg %p127
      %p357 = pneg %p124
      %p358 = pneg %p148
      %p359 = pneg %p145
      %p360 = pneg %p169
      %p361 = pneg %p166
      %p362 = pneg %p190
      %p363 = pneg %p187
      %p364 = pneg %p211
      %p365 = pneg %p208
      %p366 = pneg %p232
      %p367 = pneg %p229
      %p368 = pneg %p253
      %p369 = pneg %p250
      %p370 = pneg %p279
      %p371 = pneg %p276
      %p372 = scmp.lt.s32.totalorder %s22, 1
      %s373 = scalar_select %p372, %s22, 1
      %s374 = smul.addr %s373, 32
      %s375 = smul.addr %s374, 8
      %s376 = scalar_lea.vmem %s11, %s375
      %p377 = scmp.lt.s32.totalorder %s22, 1
      %s378 = scalar_select %p377, %s22, 1
      %s379 = smul.addr %s378, 32
      %s380 = smul.addr %s379, 4
      %s381 = scalar_lea.vmem %s0, %s380
      %p382 = scmp.lt.s32.totalorder %s22, 1
      %s383 = scalar_select %p382, %s22, 1
      %s384 = smul.addr %s383, 32
      %s385 = smul.addr %s384, 8
      %s386 = scalar_lea.vmem %s11, %s385
      %v390 = vld [vmem:[%s381] sm:$0xf]
      %v391 = vld [vmem:[%s381 + $0x4] sm:$0xf]
      %v392 = vld [vmem:[%s381 + $0x8] sm:$0xf]
      %v393 = vld [vmem:[%s381 + $0xc] sm:$0xf]
      %v394 = vld [vmem:[%s381 + $0x10] sm:$0xf]
      %v395 = vld [vmem:[%s381 + $0x14] sm:$0xf]
      %v396 = vld [vmem:[%s381 + $0x18] sm:$0xf]
      %v397 = vld [vmem:[%s381 + $0x1c] sm:$0xf]
      %v398 = vld [vmem:[%s381 + $0x20] sm:$0xf]
      %v399 = vld [vmem:[%s381 + $0x24] sm:$0xf]
      %v400 = vld [vmem:[%s381 + $0x28] sm:$0xf]
      %v401 = vld [vmem:[%s381 + $0x2c] sm:$0xf]
      %v402 = vld [vmem:[%s381 + $0x30] sm:$0xf]
      %v403 = vld [vmem:[%s381 + $0x34] sm:$0xf]
      %v404 = vld [vmem:[%s381 + $0x38] sm:$0xf]
      %v405 = vld [vmem:[%s381 + $0x3c] sm:$0xf]
      %v406 = vld [vmem:[%s381 + $0x40] sm:$0xf]
      %v407 = vld [vmem:[%s381 + $0x44] sm:$0xf]
      %v408 = vld [vmem:[%s381 + $0x48] sm:$0xf]
      %v409 = vld [vmem:[%s381 + $0x4c] sm:$0xf]
      %v410 = vld [vmem:[%s381 + $0x50] sm:$0xf]
      %v411 = vld [vmem:[%s381 + $0x54] sm:$0xf]
      %v412 = vld [vmem:[%s381 + $0x58] sm:$0xf]
      %v413 = vld [vmem:[%s381 + $0x5c] sm:$0xf]
      %v414 = vld [vmem:[%s381 + $0x60] sm:$0xf]
      %v415 = vld [vmem:[%s381 + $0x64] sm:$0xf]
      %v416 = vld [vmem:[%s381 + $0x68] sm:$0xf]
      %v417 = vld [vmem:[%s381 + $0x6c] sm:$0xf]
      %v418 = vld [vmem:[%s381 + $0x70] sm:$0xf]
      %v419 = vld [vmem:[%s381 + $0x74] sm:$0xf]
      %v420 = vld [vmem:[%s381 + $0x78] sm:$0xf]
      %v421 = vld [vmem:[%s381 + $0x7c] sm:$0xf]
      %v422 = vunpack.c.l.bf16 %v390
      %v423 = vunpack.c.l.bf16 %v391
      %v424 = vunpack.c.l.bf16 %v392
      %v425 = vunpack.c.l.bf16 %v393
      %v426 = vunpack.c.l.bf16 %v394
      %v427 = vunpack.c.l.bf16 %v395
      %v428 = vunpack.c.l.bf16 %v396
      %v429 = vunpack.c.l.bf16 %v397
      %v430 = vunpack.c.l.bf16 %v398
      %v431 = vunpack.c.l.bf16 %v399
      %v432 = vunpack.c.l.bf16 %v400
      %v433 = vunpack.c.l.bf16 %v401
      %v434 = vunpack.c.l.bf16 %v402
      %v435 = vunpack.c.l.bf16 %v403
      %v436 = vunpack.c.l.bf16 %v404
      %v437 = vunpack.c.l.bf16 %v405
      %v438 = vunpack.c.l.bf16 %v406
      %v439 = vunpack.c.l.bf16 %v407
      %v440 = vunpack.c.l.bf16 %v408
      %v441 = vunpack.c.l.bf16 %v409
      %v442 = vunpack.c.l.bf16 %v410
      %v443 = vunpack.c.l.bf16 %v411
      %v444 = vunpack.c.l.bf16 %v412
      %v445 = vunpack.c.l.bf16 %v413
      %v446 = vunpack.c.l.bf16 %v414
      %v447 = vunpack.c.l.bf16 %v415
      %v448 = vunpack.c.l.bf16 %v416
      %v449 = vunpack.c.l.bf16 %v417
      %v450 = vunpack.c.l.bf16 %v418
      %v451 = vunpack.c.l.bf16 %v419
      %v452 = vunpack.c.l.bf16 %v420
      %v453 = vunpack.c.l.bf16 %v421
      %v454 = vld [vmem:[%s1] sm:$0xf]
      %v487 = vunpack.c.l.b16 %v390
      %v488 = vunpack.c.l.b16 %v391
      %v489 = vunpack.c.l.b16 %v392
      %v490 = vunpack.c.l.b16 %v393
      %v491 = vunpack.c.l.b16 %v394
      %v492 = vunpack.c.l.b16 %v395
      %v493 = vunpack.c.l.b16 %v396
      %v494 = vunpack.c.l.b16 %v397
      %v495 = vunpack.c.l.b16 %v398
      %v496 = vunpack.c.l.b16 %v399
      %v497 = vunpack.c.l.b16 %v400
      %v498 = vunpack.c.l.b16 %v401
      %v499 = vunpack.c.l.b16 %v402
      %v500 = vunpack.c.l.b16 %v403
      %v501 = vunpack.c.l.b16 %v404
      %v502 = vunpack.c.l.b16 %v405
      %v503 = vunpack.c.l.b16 %v406
      %v504 = vunpack.c.l.b16 %v407
      %v505 = vunpack.c.l.b16 %v408
      %v506 = vunpack.c.l.b16 %v409
      %v507 = vunpack.c.l.b16 %v410
      %v508 = vunpack.c.l.b16 %v411
      %v509 = vunpack.c.l.b16 %v412
      %v510 = vunpack.c.l.b16 %v413
      %v511 = vunpack.c.l.b16 %v414
      %v512 = vunpack.c.l.b16 %v415
      %v513 = vunpack.c.l.b16 %v416
      %v514 = vunpack.c.l.b16 %v417
      %v515 = vunpack.c.l.b16 %v418
      %v516 = vunpack.c.l.b16 %v419
      %v517 = vunpack.c.l.b16 %v420
      %v518 = vunpack.c.l.b16 %v421
      %v519 = vpack.c.b16 %v488, %v487
      %v520 = vpack.c.b16 %v490, %v489
      %v521 = vpack.c.b16 %v492, %v491
      %v522 = vpack.c.b16 %v494, %v493
      %v523 = vpack.c.b16 %v496, %v495
      %v524 = vpack.c.b16 %v498, %v497
      %v525 = vpack.c.b16 %v500, %v499
      %v526 = vpack.c.b16 %v502, %v501
      %v527 = vpack.c.b16 %v504, %v503
      %v528 = vpack.c.b16 %v506, %v505
      %v529 = vpack.c.b16 %v508, %v507
      %v530 = vpack.c.b16 %v510, %v509
      %v531 = vpack.c.b16 %v512, %v511
      %v532 = vpack.c.b16 %v514, %v513
      %v533 = vpack.c.b16 %v516, %v515
      %v534 = vpack.c.b16 %v518, %v517
      %vm535 = vcmask 64512
      %v537 = vsel %vm535, %v519, 0
      %v540 = vsel %vm535, %v520, 0
      %v543 = vsel %vm535, %v521, 0
      %v546 = vsel %vm535, %v522, 0
      %v549 = vsel %vm535, %v523, 0
      %v552 = vsel %vm535, %v524, 0
      %v555 = vsel %vm535, %v525, 0
      %v558 = vsel %vm535, %v526, 0
      %v561 = vsel %vm535, %v527, 0
      %v564 = vsel %vm535, %v528, 0
      %v567 = vsel %vm535, %v529, 0
      %v570 = vsel %vm535, %v530, 0
      %v573 = vsel %vm535, %v531, 0
      %v576 = vsel %vm535, %v532, 0
      %v579 = vsel %vm535, %v533, 0
      %v582 = vsel %vm535, %v534, 0
      %vm584 = vcmask 1043456
      %v586 = vsel %vm584, %v454, 0
      %588 = vmatprep.subr.bf16.mxu0 0
      %589 = vmatpush1.bf16.msra.mxu0 0
      %590 = vmatprep.subr.bf16.mxu0 0
      %591 = vmatpush1.bf16.msra.mxu0 0
      %592 = vmatprep.subr.bf16.mxu0 0
      %593 = vmatpush1.bf16.msra.mxu0 0
      %594 = vmatprep.subr.bf16.mxu0 0
      %595 = vmatpush1.bf16.msra.mxu0 0
      %596 = vmatprep.subr.bf16.mxu0 0
      %597 = vmatpush1.bf16.msra.mxu0 0
      %598 = vmatprep.subr.bf16.mxu0 0
      %599 = vmatpush1.bf16.msra.mxu0 0
      %600 = vmatprep.subr.bf16.mxu0 0
      %601 = vmatpush1.bf16.msra.mxu0 0
      %602 = vmatprep.subr.bf16.mxu0 0
      %603 = vmatpush1.bf16.msra.mxu0 %v586
      %604 = vmatprep.subr.bf16.mxu0 0
      %605 = vmatpush2.bf16.msra.mxu0 0
      %606 = vmatprep.subr.bf16.mxu0 0
      %607 = vmatpush2.bf16.msra.mxu0 0
      %608 = vmatprep.subr.bf16.mxu0 0
      %609 = vmatpush2.bf16.msra.mxu0 0
      %610 = vmatprep.subr.bf16.mxu0 0
      %611 = vmatpush2.bf16.msra.mxu0 0
      %612 = vmatprep.subr.bf16.mxu0 0
      %613 = vmatpush2.bf16.msra.mxu0 0
      %614 = vmatprep.subr.bf16.mxu0 0
      %615 = vmatpush2.bf16.msra.mxu0 0
      %616 = vmatprep.subr.bf16.mxu0 0
      %617 = vmatpush2.bf16.msra.mxu0 0
      %618 = vmatprep.subr.bf16.mxu0 0
      %619 = vmatpush2.bf16.msra.mxu0 0
      %620 = vmatprep.mubr.bf16.mxu0 0
      %621 = vmatmul.mubr.bf16.gmra.mxu0 %v537
      %v622 = vpop.f32.mrf.mxu0
      %v623 = vadd.f32 0.0, %v622
      %v624 = vpop.f32.mrf.mxu0
      %v625 = vpop.f32.mrf.mxu0
      %v626 = vadd.f32 0.0, %v625
      %v627 = vpop.f32.mrf.mxu0
      %628 = vmatprep.mubr.bf16.mxu0 0
      %629 = vmatmul.mubr.bf16.gmra.mxu0 %v540
      %v630 = vpop.f32.mrf.mxu0
      %v631 = vadd.f32 0.0, %v630
      %v632 = vpop.f32.mrf.mxu0
      %v633 = vpop.f32.mrf.mxu0
      %v634 = vadd.f32 0.0, %v633
      %v635 = vpop.f32.mrf.mxu0
      %636 = vmatprep.mubr.bf16.mxu0 0
      %637 = vmatmul.mubr.bf16.gmra.mxu0 %v543
      %v638 = vpop.f32.mrf.mxu0
      %v639 = vadd.f32 0.0, %v638
      %v640 = vpop.f32.mrf.mxu0
      %v641 = vpop.f32.mrf.mxu0
      %v642 = vadd.f32 0.0, %v641
      %v643 = vpop.f32.mrf.mxu0
      %644 = vmatprep.mubr.bf16.mxu0 0
      %645 = vmatmul.mubr.bf16.gmra.mxu0 %v546
      %v646 = vpop.f32.mrf.mxu0
      %v647 = vadd.f32 0.0, %v646
      %v648 = vpop.f32.mrf.mxu0
      %v649 = vpop.f32.mrf.mxu0
      %v650 = vadd.f32 0.0, %v649
      %v651 = vpop.f32.mrf.mxu0
      %652 = vmatprep.mubr.bf16.mxu0 0
      %653 = vmatmul.mubr.bf16.gmra.mxu0 %v549
      %v654 = vpop.f32.mrf.mxu0
      %v655 = vadd.f32 0.0, %v654
      %v656 = vpop.f32.mrf.mxu0
      %v657 = vpop.f32.mrf.mxu0
      %v658 = vadd.f32 0.0, %v657
      %v659 = vpop.f32.mrf.mxu0
      %660 = vmatprep.mubr.bf16.mxu0 0
      %661 = vmatmul.mubr.bf16.gmra.mxu0 %v552
      %v662 = vpop.f32.mrf.mxu0
      %v663 = vadd.f32 0.0, %v662
      %v664 = vpop.f32.mrf.mxu0
      %v665 = vpop.f32.mrf.mxu0
      %v666 = vadd.f32 0.0, %v665
      %v667 = vpop.f32.mrf.mxu0
      %668 = vmatprep.mubr.bf16.mxu0 0
      %669 = vmatmul.mubr.bf16.gmra.mxu0 %v555
      %v670 = vpop.f32.mrf.mxu0
      %v671 = vadd.f32 0.0, %v670
      %v672 = vpop.f32.mrf.mxu0
      %v673 = vpop.f32.mrf.mxu0
      %v674 = vadd.f32 0.0, %v673
      %v675 = vpop.f32.mrf.mxu0
      %676 = vmatprep.mubr.bf16.mxu0 0
      %677 = vmatmul.mubr.bf16.gmra.mxu0 %v558
      %v678 = vpop.f32.mrf.mxu0
      %v679 = vadd.f32 0.0, %v678
      %v680 = vpop.f32.mrf.mxu0
      %v681 = vpop.f32.mrf.mxu0
      %v682 = vadd.f32 0.0, %v681
      %v683 = vpop.f32.mrf.mxu0
      %684 = vmatprep.mubr.bf16.mxu0 0
      %685 = vmatmul.mubr.bf16.gmra.mxu0 %v561
      %v686 = vpop.f32.mrf.mxu0
      %v687 = vadd.f32 0.0, %v686
      %v688 = vpop.f32.mrf.mxu0
      %v689 = vpop.f32.mrf.mxu0
      %v690 = vadd.f32 0.0, %v689
      %v691 = vpop.f32.mrf.mxu0
      %692 = vmatprep.mubr.bf16.mxu0 0
      %693 = vmatmul.mubr.bf16.gmra.mxu0 %v564
      %v694 = vpop.f32.mrf.mxu0
      %v695 = vadd.f32 0.0, %v694
      %v696 = vpop.f32.mrf.mxu0
      %v697 = vpop.f32.mrf.mxu0
      %v698 = vadd.f32 0.0, %v697
      %v699 = vpop.f32.mrf.mxu0
      %700 = vmatprep.mubr.bf16.mxu0 0
      %701 = vmatmul.mubr.bf16.gmra.mxu0 %v567
      %v702 = vpop.f32.mrf.mxu0
      %v703 = vadd.f32 0.0, %v702
      %v704 = vpop.f32.mrf.mxu0
      %v705 = vpop.f32.mrf.mxu0
      %v706 = vadd.f32 0.0, %v705
      %v707 = vpop.f32.mrf.mxu0
      %708 = vmatprep.mubr.bf16.mxu0 0
      %709 = vmatmul.mubr.bf16.gmra.mxu0 %v570
      %v710 = vpop.f32.mrf.mxu0
      %v711 = vadd.f32 0.0, %v710
      %v712 = vpop.f32.mrf.mxu0
      %v713 = vpop.f32.mrf.mxu0
      %v714 = vadd.f32 0.0, %v713
      %v715 = vpop.f32.mrf.mxu0
      %716 = vmatprep.mubr.bf16.mxu0 0
      %717 = vmatmul.mubr.bf16.gmra.mxu0 %v573
      %v718 = vpop.f32.mrf.mxu0
      %v719 = vadd.f32 0.0, %v718
      %v720 = vpop.f32.mrf.mxu0
      %v721 = vpop.f32.mrf.mxu0
      %v722 = vadd.f32 0.0, %v721
      %v723 = vpop.f32.mrf.mxu0
      %724 = vmatprep.mubr.bf16.mxu0 0
      %725 = vmatmul.mubr.bf16.gmra.mxu0 %v576
      %v726 = vpop.f32.mrf.mxu0
      %v727 = vadd.f32 0.0, %v726
      %v728 = vpop.f32.mrf.mxu0
      %v729 = vpop.f32.mrf.mxu0
      %v730 = vadd.f32 0.0, %v729
      %v731 = vpop.f32.mrf.mxu0
      %732 = vmatprep.mubr.bf16.mxu0 0
      %733 = vmatmul.mubr.bf16.gmra.mxu0 %v579
      %v734 = vpop.f32.mrf.mxu0
      %v735 = vadd.f32 0.0, %v734
      %v736 = vpop.f32.mrf.mxu0
      %v737 = vpop.f32.mrf.mxu0
      %v738 = vadd.f32 0.0, %v737
      %v739 = vpop.f32.mrf.mxu0
      %740 = vmatprep.mubr.bf16.mxu0 0
      %741 = vmatmul.mubr.bf16.gmra.mxu0 %v582
      %v742 = vpop.f32.mrf.mxu0
      %v743 = vadd.f32 0.0, %v742
      %v744 = vpop.f32.mrf.mxu0
      %v745 = vpop.f32.mrf.mxu0
      %v746 = vadd.f32 0.0, %v745
      %v747 = vpop.f32.mrf.mxu0
      %748 = vdwg.mxu0
      %v749 = vld [vmem:[%s2] sm:$0x1]
      %v751 = vlaneseq
      %v752 = vshrl.u32 %v751, 7
      %v753 = vsub.s32 0, %v752
      %v754 = vrot.slane %v749, %v753
      %v756 = vmul.f32 %v623, %v754
      %v757 = vmul.f32 %v626, %v754
      %v758 = vmul.f32 %v631, %v754
      %v759 = vmul.f32 %v634, %v754
      %v760 = vmul.f32 %v639, %v754
      %v761 = vmul.f32 %v642, %v754
      %v762 = vmul.f32 %v647, %v754
      %v763 = vmul.f32 %v650, %v754
      %v764 = vmul.f32 %v655, %v754
      %v765 = vmul.f32 %v658, %v754
      %v766 = vmul.f32 %v663, %v754
      %v767 = vmul.f32 %v666, %v754
      %v768 = vmul.f32 %v671, %v754
      %v769 = vmul.f32 %v674, %v754
      %v770 = vmul.f32 %v679, %v754
      %v771 = vmul.f32 %v682, %v754
      %v772 = vmul.f32 %v687, %v754
      %v773 = vmul.f32 %v690, %v754
      %v774 = vmul.f32 %v695, %v754
      %v775 = vmul.f32 %v698, %v754
      %v776 = vmul.f32 %v703, %v754
      %v777 = vmul.f32 %v706, %v754
      %v778 = vmul.f32 %v711, %v754
      %v779 = vmul.f32 %v714, %v754
      %v780 = vmul.f32 %v719, %v754
      %v781 = vmul.f32 %v722, %v754
      %v782 = vmul.f32 %v727, %v754
      %v783 = vmul.f32 %v730, %v754
      %v784 = vmul.f32 %v735, %v754
      %v785 = vmul.f32 %v738, %v754
      %v786 = vmul.f32 %v743, %v754
      %v787 = vmul.f32 %v746, %v754
      %v788 = vld [vmem:[%s3] sm:$0x1]
      %v790 = vlaneseq
      %v791 = vshrl.u32 %v790, 7
      %v792 = vsub.s32 0, %v791
      %v793 = vrot.slane %v788, %v792
      %v795 = vadd.f32 %v756, %v793
      %v796 = vadd.f32 %v757, %v793
      %v797 = vadd.f32 %v758, %v793
      %v798 = vadd.f32 %v759, %v793
      %v799 = vadd.f32 %v760, %v793
      %v800 = vadd.f32 %v761, %v793
      %v801 = vadd.f32 %v762, %v793
      %v802 = vadd.f32 %v763, %v793
      %v803 = vadd.f32 %v764, %v793
      %v804 = vadd.f32 %v765, %v793
      %v805 = vadd.f32 %v766, %v793
      %v806 = vadd.f32 %v767, %v793
      %v807 = vadd.f32 %v768, %v793
      %v808 = vadd.f32 %v769, %v793
      %v809 = vadd.f32 %v770, %v793
      %v810 = vadd.f32 %v771, %v793
      %v811 = vadd.f32 %v772, %v793
      %v812 = vadd.f32 %v773, %v793
      %v813 = vadd.f32 %v774, %v793
      %v814 = vadd.f32 %v775, %v793
      %v815 = vadd.f32 %v776, %v793
      %v816 = vadd.f32 %v777, %v793
      %v817 = vadd.f32 %v778, %v793
      %v818 = vadd.f32 %v779, %v793
      %v819 = vadd.f32 %v780, %v793
      %v820 = vadd.f32 %v781, %v793
      %v821 = vadd.f32 %v782, %v793
      %v822 = vadd.f32 %v783, %v793
      %v823 = vadd.f32 %v784, %v793
      %v824 = vadd.f32 %v785, %v793
      %v825 = vadd.f32 %v786, %v793
      %v826 = vadd.f32 %v787, %v793
      %v827 = vmax.f32 %v795, 0.0
      %v828 = vmax.f32 %v796, 0.0
      %v829 = vmax.f32 %v797, 0.0
      %v830 = vmax.f32 %v798, 0.0
      %v831 = vmax.f32 %v799, 0.0
      %v832 = vmax.f32 %v800, 0.0
      %v833 = vmax.f32 %v801, 0.0
      %v834 = vmax.f32 %v802, 0.0
      %v835 = vmax.f32 %v803, 0.0
      %v836 = vmax.f32 %v804, 0.0
      %v837 = vmax.f32 %v805, 0.0
      %v838 = vmax.f32 %v806, 0.0
      %v839 = vmax.f32 %v807, 0.0
      %v840 = vmax.f32 %v808, 0.0
      %v841 = vmax.f32 %v809, 0.0
      %v842 = vmax.f32 %v810, 0.0
      %v843 = vmax.f32 %v811, 0.0
      %v844 = vmax.f32 %v812, 0.0
      %v845 = vmax.f32 %v813, 0.0
      %v846 = vmax.f32 %v814, 0.0
      %v847 = vmax.f32 %v815, 0.0
      %v848 = vmax.f32 %v816, 0.0
      %v849 = vmax.f32 %v817, 0.0
      %v850 = vmax.f32 %v818, 0.0
      %v851 = vmax.f32 %v819, 0.0
      %v852 = vmax.f32 %v820, 0.0
      %v853 = vmax.f32 %v821, 0.0
      %v854 = vmax.f32 %v822, 0.0
      %v855 = vmax.f32 %v823, 0.0
      %v856 = vmax.f32 %v824, 0.0
      %v857 = vmax.f32 %v825, 0.0
      %v858 = vmax.f32 %v826, 0.0
      %v859 = vpack.c.bf16 %v828, %v827
      %v860 = vpack.c.bf16 %v830, %v829
      %v861 = vpack.c.bf16 %v832, %v831
      %v862 = vpack.c.bf16 %v834, %v833
      %v863 = vpack.c.bf16 %v836, %v835
      %v864 = vpack.c.bf16 %v838, %v837
      %v865 = vpack.c.bf16 %v840, %v839
      %v866 = vpack.c.bf16 %v842, %v841
      %v867 = vpack.c.bf16 %v844, %v843
      %v868 = vpack.c.bf16 %v846, %v845
      %v869 = vpack.c.bf16 %v848, %v847
      %v870 = vpack.c.bf16 %v850, %v849
      %v871 = vpack.c.bf16 %v852, %v851
      %v872 = vpack.c.bf16 %v854, %v853
      %v873 = vpack.c.bf16 %v856, %v855
      %v874 = vpack.c.bf16 %v858, %v857
      %vm875 = vcmask 27651
      %vm876 = vsmask.f32 7950
      %vm877 = vmand %vm875, %vm876
      %v878 = vld [vmem:[#allocation2] sm:$0x8]
      %v879 = vsel %vm877, 0, %v878
      %880 = vst [vmem:[#allocation2] sm:$0x8] %v879
      %vm881 = vcmask 27648
      %882 = vst.msk [vmem:[#allocation2 + $0x4] sm:$0xf] %vm881, 0
      %883 = vst.msk [vmem:[#allocation2 + $0x8] sm:$0xf] %vm881, 0
      %v900 = vunpack.c.l.b16 %v859
      %v901 = vunpack.c.h.b16 %v859
      %v902 = vunpack.c.l.b16 %v860
      %v903 = vunpack.c.h.b16 %v860
      %v904 = vunpack.c.l.b16 %v861
      %v905 = vunpack.c.h.b16 %v861
      %v906 = vunpack.c.l.b16 %v862
      %v907 = vunpack.c.h.b16 %v862
      %v908 = vunpack.c.l.b16 %v863
      %v909 = vunpack.c.h.b16 %v863
      %v910 = vunpack.c.l.b16 %v864
      %v911 = vunpack.c.h.b16 %v864
      %v912 = vunpack.c.l.b16 %v865
      %v913 = vunpack.c.h.b16 %v865
      %v914 = vunpack.c.l.b16 %v866
      %v915 = vunpack.c.h.b16 %v866
      %v916 = vunpack.c.l.b16 %v867
      %v917 = vunpack.c.h.b16 %v867
      %v918 = vunpack.c.l.b16 %v868
      %v919 = vunpack.c.h.b16 %v868
      %v920 = vunpack.c.l.b16 %v869
      %v921 = vunpack.c.h.b16 %v869
      %v922 = vunpack.c.l.b16 %v870
      %v923 = vunpack.c.h.b16 %v870
      %v924 = vunpack.c.l.b16 %v871
      %v925 = vunpack.c.h.b16 %v871
      %v926 = vunpack.c.l.b16 %v872
      %v927 = vunpack.c.h.b16 %v872
      %v928 = vunpack.c.l.b16 %v873
      %v929 = vunpack.c.h.b16 %v873
      %v930 = vunpack.c.l.b16 %v874
      %v931 = vunpack.c.h.b16 %v874
      %v932 = vpack.c.b16 %v900, %v900
      %v933 = vpack.c.b16 %v901, %v901
      %v934 = vpack.c.b16 %v902, %v902
      %v935 = vpack.c.b16 %v903, %v903
      %v936 = vpack.c.b16 %v904, %v904
      %v937 = vpack.c.b16 %v905, %v905
      %v938 = vpack.c.b16 %v906, %v906
      %v939 = vpack.c.b16 %v907, %v907
      %v940 = vpack.c.b16 %v908, %v908
      %v941 = vpack.c.b16 %v909, %v909
      %v942 = vpack.c.b16 %v910, %v910
      %v943 = vpack.c.b16 %v911, %v911
      %v944 = vpack.c.b16 %v912, %v912
      %v945 = vpack.c.b16 %v913, %v913
      %v946 = vpack.c.b16 %v914, %v914
      %v947 = vpack.c.b16 %v915, %v915
      %v948 = vpack.c.b16 %v916, %v916
      %v949 = vpack.c.b16 %v917, %v917
      %v950 = vpack.c.b16 %v918, %v918
      %v951 = vpack.c.b16 %v919, %v919
      %v952 = vpack.c.b16 %v920, %v920
      %v953 = vpack.c.b16 %v921, %v921
      %v954 = vpack.c.b16 %v922, %v922
      %v955 = vpack.c.b16 %v923, %v923
      %v956 = vpack.c.b16 %v924, %v924
      %v957 = vpack.c.b16 %v925, %v925
      %v958 = vpack.c.b16 %v926, %v926
      %v959 = vpack.c.b16 %v927, %v927
      %v960 = vpack.c.b16 %v928, %v928
      %v961 = vpack.c.b16 %v929, %v929
      %v962 = vpack.c.b16 %v930, %v930
      %v963 = vpack.c.b16 %v931, %v931
      %996 = vst.msk [vmem:[#allocation2 + $0xc] sm:$0xf] %vm881, %v932
      %997 = vst.msk [vmem:[#allocation2 + $0x10] sm:$0xf] %vm881, %v933
      %998 = vst.msk [vmem:[#allocation2 + $0x14] sm:$0xf] %vm881, %v934
      %999 = vst.msk [vmem:[#allocation2 + $0x18] sm:$0xf] %vm881, %v935
      %1000 = vst.msk [vmem:[#allocation2 + $0x1c] sm:$0xf] %vm881, %v936
      %1001 = vst.msk [vmem:[#allocation2 + $0x20] sm:$0xf] %vm881, %v937
      %1002 = vst.msk [vmem:[#allocation2 + $0x24] sm:$0xf] %vm881, %v938
      %1003 = vst.msk [vmem:[#allocation2 + $0x28] sm:$0xf] %vm881, %v939
      %1004 = vst.msk [vmem:[#allocation2 + $0x2c] sm:$0xf] %vm881, %v940
      %1005 = vst.msk [vmem:[#allocation2 + $0x30] sm:$0xf] %vm881, %v941
      %1006 = vst.msk [vmem:[#allocation2 + $0x34] sm:$0xf] %vm881, %v942
      %1007 = vst.msk [vmem:[#allocation2 + $0x38] sm:$0xf] %vm881, %v943
      %1008 = vst.msk [vmem:[#allocation2 + $0x3c] sm:$0xf] %vm881, %v944
      %1009 = vst.msk [vmem:[#allocation2 + $0x40] sm:$0xf] %vm881, %v945
      %1010 = vst.msk [vmem:[#allocation2 + $0x44] sm:$0xf] %vm881, %v946
      %1011 = vst.msk [vmem:[#allocation2 + $0x48] sm:$0xf] %vm881, %v947
      %1012 = vst.msk [vmem:[#allocation2 + $0x4c] sm:$0xf] %vm881, %v948
      %1013 = vst.msk [vmem:[#allocation2 + $0x50] sm:$0xf] %vm881, %v949
      %1014 = vst.msk [vmem:[#allocation2 + $0x54] sm:$0xf] %vm881, %v950
      %1015 = vst.msk [vmem:[#allocation2 + $0x58] sm:$0xf] %vm881, %v951
      %1016 = vst.msk [vmem:[#allocation2 + $0x5c] sm:$0xf] %vm881, %v952
      %1017 = vst.msk [vmem:[#allocation2 + $0x60] sm:$0xf] %vm881, %v953
      %1018 = vst.msk [vmem:[#allocation2 + $0x64] sm:$0xf] %vm881, %v954
      %1019 = vst.msk [vmem:[#allocation2 + $0x68] sm:$0xf] %vm881, %v955
      %1020 = vst.msk [vmem:[#allocation2 + $0x6c] sm:$0xf] %vm881, %v956
      %1021 = vst.msk [vmem:[#allocation2 + $0x70] sm:$0xf] %vm881, %v957
      %1022 = vst.msk [vmem:[#allocation2 + $0x74] sm:$0xf] %vm881, %v958
      %1023 = vst.msk [vmem:[#allocation2 + $0x78] sm:$0xf] %vm881, %v959
      %1024 = vst.msk [vmem:[#allocation2 + $0x7c] sm:$0xf] %vm881, %v960
      %1025 = vst.msk [vmem:[#allocation2 + $0x80] sm:$0xf] %vm881, %v961
      %1026 = vst.msk [vmem:[#allocation2 + $0x84] sm:$0xf] %vm881, %v962
      %1027 = vst.msk [vmem:[#allocation2 + $0x88] sm:$0xf] %vm881, %v963
      %1028 = vst.msk [vmem:[#allocation2 + $0x8c] sm:$0xf] %vm881, 0
      %1029 = vst.msk [vmem:[#allocation2 + $0x90] sm:$0xf] %vm881, 0
      %vm1030 = vcmask 24576
      %vm1031 = vsmask.f32 256
      %vm1032 = vmand %vm1030, %vm1031
      %v1033 = vld [vmem:[#allocation2 + $0x94] sm:$0x1]
      %v1034 = vsel %vm1032, 0, %v1033
      %1035 = vst [vmem:[#allocation2 + $0x94] sm:$0x1] %v1034
      %v1036 = vlaneseq
      %v1037 = vshrl.u32 %v1036, 7
      %v1038 = vadd.s32 %v1037, 8
      %v1039 = vadd.s32 %v1037, 16
      %v1040 = vadd.s32 %v1037, 24
      %v1041 = vadd.s32 %v1037, 32
      %v1042 = vadd.s32 %v1037, 40
      %v1043 = vadd.s32 %v1037, 48
      %v1044 = vadd.s32 %v1037, 56
      %v1045 = vadd.s32 %v1037, 64
      %v1046 = vadd.s32 %v1037, 72
      %v1047 = vadd.s32 %v1037, 80
      %v1048 = vadd.s32 %v1037, 88
      %v1049 = vadd.s32 %v1037, 96
      %v1050 = vadd.s32 %v1037, 104
      %v1051 = vadd.s32 %v1037, 112
      %v1052 = vadd.s32 %v1037, 120
      %v1053 = vadd.s32 %v1037, 128
      %v1054 = vadd.s32 %v1037, 136
      %v1055 = vadd.s32 %v1037, 144
      %v1056 = vadd.s32 %v1037, 152
      %v1057 = vadd.s32 %v1037, 160
      %v1058 = vadd.s32 %v1037, 168
      %v1059 = vadd.s32 %v1037, 176
      %v1060 = vadd.s32 %v1037, 184
      %v1061 = vadd.s32 %v1037, 192
      %v1062 = vadd.s32 %v1037, 200
      %v1063 = vadd.s32 %v1037, 208
      %v1064 = vadd.s32 %v1037, 216
      %v1065 = vadd.s32 %v1037, 224
      %v1066 = vadd.s32 %v1037, 232
      %v1067 = vadd.s32 %v1037, 240
      %v1068 = vadd.s32 %v1037, 248
      %vm1069 = vcmp.lt.s32.totalorder %v1037, 0
      %v1070 = vsub.s32 0, %v1037
      %v1071 = vsel %vm1069, %v1070, %v1037
      %v1072 = vshrl.u32 %v1071, 4
      %v1073 = vand.u32 %v1071, 15
      %v1074 = vsub.s32 0, %v1073
      %v1075 = vsel %vm1069, %v1074, %v1073
      %vm1076 = vcmp.lt.s32.totalorder %v1038, 0
      %v1077 = vsub.s32 0, %v1038
      %v1078 = vsel %vm1076, %v1077, %v1038
      %v1079 = vshrl.u32 %v1078, 4
      %v1080 = vand.u32 %v1078, 15
      %v1081 = vsub.s32 0, %v1080
      %v1082 = vsel %vm1076, %v1081, %v1080
      %vm1083 = vcmp.lt.s32.totalorder %v1039, 0
      %v1084 = vsub.s32 0, %v1039
      %v1085 = vsel %vm1083, %v1084, %v1039
      %v1086 = vshrl.u32 %v1085, 4
      %v1087 = vand.u32 %v1085, 15
      %v1088 = vsub.s32 0, %v1087
      %v1089 = vsel %vm1083, %v1088, %v1087
      %vm1090 = vcmp.lt.s32.totalorder %v1040, 0
      %v1091 = vsub.s32 0, %v1040
      %v1092 = vsel %vm1090, %v1091, %v1040
      %v1093 = vshrl.u32 %v1092, 4
      %v1094 = vand.u32 %v1092, 15
      %v1095 = vsub.s32 0, %v1094
      %v1096 = vsel %vm1090, %v1095, %v1094
      %vm1097 = vcmp.lt.s32.totalorder %v1041, 0
      %v1098 = vsub.s32 0, %v1041
      %v1099 = vsel %vm1097, %v1098, %v1041
      %v1100 = vshrl.u32 %v1099, 4
      %v1101 = vand.u32 %v1099, 15
      %v1102 = vsub.s32 0, %v1101
      %v1103 = vsel %vm1097, %v1102, %v1101
      %vm1104 = vcmp.lt.s32.totalorder %v1042, 0
      %v1105 = vsub.s32 0, %v1042
      %v1106 = vsel %vm1104, %v1105, %v1042
      %v1107 = vshrl.u32 %v1106, 4
      %v1108 = vand.u32 %v1106, 15
      %v1109 = vsub.s32 0, %v1108
      %v1110 = vsel %vm1104, %v1109, %v1108
      %vm1111 = vcmp.lt.s32.totalorder %v1043, 0
      %v1112 = vsub.s32 0, %v1043
      %v1113 = vsel %vm1111, %v1112, %v1043
      %v1114 = vshrl.u32 %v1113, 4
      %v1115 = vand.u32 %v1113, 15
      %v1116 = vsub.s32 0, %v1115
      %v1117 = vsel %vm1111, %v1116, %v1115
      %vm1118 = vcmp.lt.s32.totalorder %v1044, 0
      %v1119 = vsub.s32 0, %v1044
      %v1120 = vsel %vm1118, %v1119, %v1044
      %v1121 = vshrl.u32 %v1120, 4
      %v1122 = vand.u32 %v1120, 15
      %v1123 = vsub.s32 0, %v1122
      %v1124 = vsel %vm1118, %v1123, %v1122
      %vm1125 = vcmp.lt.s32.totalorder %v1045, 0
      %v1126 = vsub.s32 0, %v1045
      %v1127 = vsel %vm1125, %v1126, %v1045
      %v1128 = vshrl.u32 %v1127, 4
      %v1129 = vand.u32 %v1127, 15
      %v1130 = vsub.s32 0, %v1129
      %v1131 = vsel %vm1125, %v1130, %v1129
      %vm1132 = vcmp.lt.s32.totalorder %v1046, 0
      %v1133 = vsub.s32 0, %v1046
      %v1134 = vsel %vm1132, %v1133, %v1046
      %v1135 = vshrl.u32 %v1134, 4
      %v1136 = vand.u32 %v1134, 15
      %v1137 = vsub.s32 0, %v1136
      %v1138 = vsel %vm1132, %v1137, %v1136
      %vm1139 = vcmp.lt.s32.totalorder %v1047, 0
      %v1140 = vsub.s32 0, %v1047
      %v1141 = vsel %vm1139, %v1140, %v1047
      %v1142 = vshrl.u32 %v1141, 4
      %v1143 = vand.u32 %v1141, 15
      %v1144 = vsub.s32 0, %v1143
      %v1145 = vsel %vm1139, %v1144, %v1143
      %vm1146 = vcmp.lt.s32.totalorder %v1048, 0
      %v1147 = vsub.s32 0, %v1048
      %v1148 = vsel %vm1146, %v1147, %v1048
      %v1149 = vshrl.u32 %v1148, 4
      %v1150 = vand.u32 %v1148, 15
      %v1151 = vsub.s32 0, %v1150
      %v1152 = vsel %vm1146, %v1151, %v1150
      %vm1153 = vcmp.lt.s32.totalorder %v1049, 0
      %v1154 = vsub.s32 0, %v1049
      %v1155 = vsel %vm1153, %v1154, %v1049
      %v1156 = vshrl.u32 %v1155, 4
      %v1157 = vand.u32 %v1155, 15
      %v1158 = vsub.s32 0, %v1157
      %v1159 = vsel %vm1153, %v1158, %v1157
      %vm1160 = vcmp.lt.s32.totalorder %v1050, 0
      %v1161 = vsub.s32 0, %v1050
      %v1162 = vsel %vm1160, %v1161, %v1050
      %v1163 = vshrl.u32 %v1162, 4
      %v1164 = vand.u32 %v1162, 15
      %v1165 = vsub.s32 0, %v1164
      %v1166 = vsel %vm1160, %v1165, %v1164
      %vm1167 = vcmp.lt.s32.totalorder %v1051, 0
      %v1168 = vsub.s32 0, %v1051
      %v1169 = vsel %vm1167, %v1168, %v1051
      %v1170 = vshrl.u32 %v1169, 4
      %v1171 = vand.u32 %v1169, 15
      %v1172 = vsub.s32 0, %v1171
      %v1173 = vsel %vm1167, %v1172, %v1171
      %vm1174 = vcmp.lt.s32.totalorder %v1052, 0
      %v1175 = vsub.s32 0, %v1052
      %v1176 = vsel %vm1174, %v1175, %v1052
      %v1177 = vshrl.u32 %v1176, 4
      %v1178 = vand.u32 %v1176, 15
      %v1179 = vsub.s32 0, %v1178
      %v1180 = vsel %vm1174, %v1179, %v1178
      %vm1181 = vcmp.lt.s32.totalorder %v1053, 0
      %v1182 = vsub.s32 0, %v1053
      %v1183 = vsel %vm1181, %v1182, %v1053
      %v1184 = vshrl.u32 %v1183, 4
      %v1185 = vand.u32 %v1183, 15
      %v1186 = vsub.s32 0, %v1185
      %v1187 = vsel %vm1181, %v1186, %v1185
      %vm1188 = vcmp.lt.s32.totalorder %v1054, 0
      %v1189 = vsub.s32 0, %v1054
      %v1190 = vsel %vm1188, %v1189, %v1054
      %v1191 = vshrl.u32 %v1190, 4
      %v1192 = vand.u32 %v1190, 15
      %v1193 = vsub.s32 0, %v1192
      %v1194 = vsel %vm1188, %v1193, %v1192
      %vm1195 = vcmp.lt.s32.totalorder %v1055, 0
      %v1196 = vsub.s32 0, %v1055
      %v1197 = vsel %vm1195, %v1196, %v1055
      %v1198 = vshrl.u32 %v1197, 4
      %v1199 = vand.u32 %v1197, 15
      %v1200 = vsub.s32 0, %v1199
      %v1201 = vsel %vm1195, %v1200, %v1199
      %vm1202 = vcmp.lt.s32.totalorder %v1056, 0
      %v1203 = vsub.s32 0, %v1056
      %v1204 = vsel %vm1202, %v1203, %v1056
      %v1205 = vshrl.u32 %v1204, 4
      %v1206 = vand.u32 %v1204, 15
      %v1207 = vsub.s32 0, %v1206
      %v1208 = vsel %vm1202, %v1207, %v1206
      %vm1209 = vcmp.lt.s32.totalorder %v1057, 0
      %v1210 = vsub.s32 0, %v1057
      %v1211 = vsel %vm1209, %v1210, %v1057
      %v1212 = vshrl.u32 %v1211, 4
      %v1213 = vand.u32 %v1211, 15
      %v1214 = vsub.s32 0, %v1213
      %v1215 = vsel %vm1209, %v1214, %v1213
      %vm1216 = vcmp.lt.s32.totalorder %v1058, 0
      %v1217 = vsub.s32 0, %v1058
      %v1218 = vsel %vm1216, %v1217, %v1058
      %v1219 = vshrl.u32 %v1218, 4
      %v1220 = vand.u32 %v1218, 15
      %v1221 = vsub.s32 0, %v1220
      %v1222 = vsel %vm1216, %v1221, %v1220
      %vm1223 = vcmp.lt.s32.totalorder %v1059, 0
      %v1224 = vsub.s32 0, %v1059
      %v1225 = vsel %vm1223, %v1224, %v1059
      %v1226 = vshrl.u32 %v1225, 4
      %v1227 = vand.u32 %v1225, 15
      %v1228 = vsub.s32 0, %v1227
      %v1229 = vsel %vm1223, %v1228, %v1227
      %vm1230 = vcmp.lt.s32.totalorder %v1060, 0
      %v1231 = vsub.s32 0, %v1060
      %v1232 = vsel %vm1230, %v1231, %v1060
      %v1233 = vshrl.u32 %v1232, 4
      %v1234 = vand.u32 %v1232, 15
      %v1235 = vsub.s32 0, %v1234
      %v1236 = vsel %vm1230, %v1235, %v1234
      %vm1237 = vcmp.lt.s32.totalorder %v1061, 0
      %v1238 = vsub.s32 0, %v1061
      %v1239 = vsel %vm1237, %v1238, %v1061
      %v1240 = vshrl.u32 %v1239, 4
      %v1241 = vand.u32 %v1239, 15
      %v1242 = vsub.s32 0, %v1241
      %v1243 = vsel %vm1237, %v1242, %v1241
      %vm1244 = vcmp.lt.s32.totalorder %v1062, 0
      %v1245 = vsub.s32 0, %v1062
      %v1246 = vsel %vm1244, %v1245, %v1062
      %v1247 = vshrl.u32 %v1246, 4
      %v1248 = vand.u32 %v1246, 15
      %v1249 = vsub.s32 0, %v1248
      %v1250 = vsel %vm1244, %v1249, %v1248
      %vm1251 = vcmp.lt.s32.totalorder %v1063, 0
      %v1252 = vsub.s32 0, %v1063
      %v1253 = vsel %vm1251, %v1252, %v1063
      %v1254 = vshrl.u32 %v1253, 4
      %v1255 = vand.u32 %v1253, 15
      %v1256 = vsub.s32 0, %v1255
      %v1257 = vsel %vm1251, %v1256, %v1255
      %vm1258 = vcmp.lt.s32.totalorder %v1064, 0
      %v1259 = vsub.s32 0, %v1064
      %v1260 = vsel %vm1258, %v1259, %v1064
      %v1261 = vshrl.u32 %v1260, 4
      %v1262 = vand.u32 %v1260, 15
      %v1263 = vsub.s32 0, %v1262
      %v1264 = vsel %vm1258, %v1263, %v1262
      %vm1265 = vcmp.lt.s32.totalorder %v1065, 0
      %v1266 = vsub.s32 0, %v1065
      %v1267 = vsel %vm1265, %v1266, %v1065
      %v1268 = vshrl.u32 %v1267, 4
      %v1269 = vand.u32 %v1267, 15
      %v1270 = vsub.s32 0, %v1269
      %v1271 = vsel %vm1265, %v1270, %v1269
      %vm1272 = vcmp.lt.s32.totalorder %v1066, 0
      %v1273 = vsub.s32 0, %v1066
      %v1274 = vsel %vm1272, %v1273, %v1066
      %v1275 = vshrl.u32 %v1274, 4
      %v1276 = vand.u32 %v1274, 15
      %v1277 = vsub.s32 0, %v1276
      %v1278 = vsel %vm1272, %v1277, %v1276
      %vm1279 = vcmp.lt.s32.totalorder %v1067, 0
      %v1280 = vsub.s32 0, %v1067
      %v1281 = vsel %vm1279, %v1280, %v1067
      %v1282 = vshrl.u32 %v1281, 4
      %v1283 = vand.u32 %v1281, 15
      %v1284 = vsub.s32 0, %v1283
      %v1285 = vsel %vm1279, %v1284, %v1283
      %vm1286 = vcmp.lt.s32.totalorder %v1068, 0
      %v1287 = vsub.s32 0, %v1068
      %v1288 = vsel %vm1286, %v1287, %v1068
      %v1289 = vshrl.u32 %v1288, 4
      %v1290 = vand.u32 %v1288, 15
      %v1291 = vsub.s32 0, %v1290
      %v1292 = vsel %vm1286, %v1291, %v1290
      %vm1293 = vcmp.ne.s32.totalorder %v1075, 0
      %vm1294 = vcmp.ne.s32.totalorder %v1082, 0
      %vm1295 = vcmp.ne.s32.totalorder %v1089, 0
      %vm1296 = vcmp.ne.s32.totalorder %v1096, 0
      %vm1297 = vcmp.ne.s32.totalorder %v1103, 0
      %vm1298 = vcmp.ne.s32.totalorder %v1110, 0
      %vm1299 = vcmp.ne.s32.totalorder %v1117, 0
      %vm1300 = vcmp.ne.s32.totalorder %v1124, 0
      %vm1301 = vcmp.ne.s32.totalorder %v1131, 0
      %vm1302 = vcmp.ne.s32.totalorder %v1138, 0
      %vm1303 = vcmp.ne.s32.totalorder %v1145, 0
      %vm1304 = vcmp.ne.s32.totalorder %v1152, 0
      %vm1305 = vcmp.ne.s32.totalorder %v1159, 0
      %vm1306 = vcmp.ne.s32.totalorder %v1166, 0
      %vm1307 = vcmp.ne.s32.totalorder %v1173, 0
      %vm1308 = vcmp.ne.s32.totalorder %v1180, 0
      %vm1309 = vcmp.ne.s32.totalorder %v1187, 0
      %vm1310 = vcmp.ne.s32.totalorder %v1194, 0
      %vm1311 = vcmp.ne.s32.totalorder %v1201, 0
      %vm1312 = vcmp.ne.s32.totalorder %v1208, 0
      %vm1313 = vcmp.ne.s32.totalorder %v1215, 0
      %vm1314 = vcmp.ne.s32.totalorder %v1222, 0
      %vm1315 = vcmp.ne.s32.totalorder %v1229, 0
      %vm1316 = vcmp.ne.s32.totalorder %v1236, 0
      %vm1317 = vcmp.ne.s32.totalorder %v1243, 0
      %vm1318 = vcmp.ne.s32.totalorder %v1250, 0
      %vm1319 = vcmp.ne.s32.totalorder %v1257, 0
      %vm1320 = vcmp.ne.s32.totalorder %v1264, 0
      %vm1321 = vcmp.ne.s32.totalorder %v1271, 0
      %vm1322 = vcmp.ne.s32.totalorder %v1278, 0
      %vm1323 = vcmp.ne.s32.totalorder %v1285, 0
      %vm1324 = vcmp.ne.s32.totalorder %v1292, 0
      %vm1325 = vcmp.lt.s32.totalorder %v1075, 0
      %vm1326 = vcmp.lt.s32.totalorder %v1082, 0
      %vm1327 = vcmp.lt.s32.totalorder %v1089, 0
      %vm1328 = vcmp.lt.s32.totalorder %v1096, 0
      %vm1329 = vcmp.lt.s32.totalorder %v1103, 0
      %vm1330 = vcmp.lt.s32.totalorder %v1110, 0
      %vm1331 = vcmp.lt.s32.totalorder %v1117, 0
      %vm1332 = vcmp.lt.s32.totalorder %v1124, 0
      %vm1333 = vcmp.lt.s32.totalorder %v1131, 0
      %vm1334 = vcmp.lt.s32.totalorder %v1138, 0
      %vm1335 = vcmp.lt.s32.totalorder %v1145, 0
      %vm1336 = vcmp.lt.s32.totalorder %v1152, 0
      %vm1337 = vcmp.lt.s32.totalorder %v1159, 0
      %vm1338 = vcmp.lt.s32.totalorder %v1166, 0
      %vm1339 = vcmp.lt.s32.totalorder %v1173, 0
      %vm1340 = vcmp.lt.s32.totalorder %v1180, 0
      %vm1341 = vcmp.lt.s32.totalorder %v1187, 0
      %vm1342 = vcmp.lt.s32.totalorder %v1194, 0
      %vm1343 = vcmp.lt.s32.totalorder %v1201, 0
      %vm1344 = vcmp.lt.s32.totalorder %v1208, 0
      %vm1345 = vcmp.lt.s32.totalorder %v1215, 0
      %vm1346 = vcmp.lt.s32.totalorder %v1222, 0
      %vm1347 = vcmp.lt.s32.totalorder %v1229, 0
      %vm1348 = vcmp.lt.s32.totalorder %v1236, 0
      %vm1349 = vcmp.lt.s32.totalorder %v1243, 0
      %vm1350 = vcmp.lt.s32.totalorder %v1250, 0
      %vm1351 = vcmp.lt.s32.totalorder %v1257, 0
      %vm1352 = vcmp.lt.s32.totalorder %v1264, 0
      %vm1353 = vcmp.lt.s32.totalorder %v1271, 0
      %vm1354 = vcmp.lt.s32.totalorder %v1278, 0
      %vm1355 = vcmp.lt.s32.totalorder %v1285, 0
      %vm1356 = vcmp.lt.s32.totalorder %v1292, 0
      %vm1357 = vmand %vm1325, %vm1293
      %vm1358 = vmand %vm1326, %vm1294
      %vm1359 = vmand %vm1327, %vm1295
      %vm1360 = vmand %vm1328, %vm1296
      %vm1361 = vmand %vm1329, %vm1297
      %vm1362 = vmand %vm1330, %vm1298
      %vm1363 = vmand %vm1331, %vm1299
      %vm1364 = vmand %vm1332, %vm1300
      %vm1365 = vmand %vm1333, %vm1301
      %vm1366 = vmand %vm1334, %vm1302
      %vm1367 = vmand %vm1335, %vm1303
      %vm1368 = vmand %vm1336, %vm1304
      %vm1369 = vmand %vm1337, %vm1305
      %vm1370 = vmand %vm1338, %vm1306
      %vm1371 = vmand %vm1339, %vm1307
      %vm1372 = vmand %vm1340, %vm1308
      %vm1373 = vmand %vm1341, %vm1309
      %vm1374 = vmand %vm1342, %vm1310
      %vm1375 = vmand %vm1343, %vm1311
      %vm1376 = vmand %vm1344, %vm1312
      %vm1377 = vmand %vm1345, %vm1313
      %vm1378 = vmand %vm1346, %vm1314
      %vm1379 = vmand %vm1347, %vm1315
      %vm1380 = vmand %vm1348, %vm1316
      %vm1381 = vmand %vm1349, %vm1317
      %vm1382 = vmand %vm1350, %vm1318
      %vm1383 = vmand %vm1351, %vm1319
      %vm1384 = vmand %vm1352, %vm1320
      %vm1385 = vmand %vm1353, %vm1321
      %vm1386 = vmand %vm1354, %vm1322
      %vm1387 = vmand %vm1355, %vm1323
      %vm1388 = vmand %vm1356, %vm1324
      %v1389 = vadd.s32 %v1075, 16
      %v1390 = vadd.s32 %v1082, 16
      %v1391 = vadd.s32 %v1089, 16
      %v1392 = vadd.s32 %v1096, 16
      %v1393 = vadd.s32 %v1103, 16
      %v1394 = vadd.s32 %v1110, 16
      %v1395 = vadd.s32 %v1117, 16
      %v1396 = vadd.s32 %v1124, 16
      %v1397 = vadd.s32 %v1131, 16
      %v1398 = vadd.s32 %v1138, 16
      %v1399 = vadd.s32 %v1145, 16
      %v1400 = vadd.s32 %v1152, 16
      %v1401 = vadd.s32 %v1159, 16
      %v1402 = vadd.s32 %v1166, 16
      %v1403 = vadd.s32 %v1173, 16
      %v1404 = vadd.s32 %v1180, 16
      %v1405 = vadd.s32 %v1187, 16
      %v1406 = vadd.s32 %v1194, 16
      %v1407 = vadd.s32 %v1201, 16
      %v1408 = vadd.s32 %v1208, 16
      %v1409 = vadd.s32 %v1215, 16
      %v1410 = vadd.s32 %v1222, 16
      %v1411 = vadd.s32 %v1229, 16
      %v1412 = vadd.s32 %v1236, 16
      %v1413 = vadd.s32 %v1243, 16
      %v1414 = vadd.s32 %v1250, 16
      %v1415 = vadd.s32 %v1257, 16
      %v1416 = vadd.s32 %v1264, 16
      %v1417 = vadd.s32 %v1271, 16
      %v1418 = vadd.s32 %v1278, 16
      %v1419 = vadd.s32 %v1285, 16
      %v1420 = vadd.s32 %v1292, 16
      %v1421 = vsel %vm1357, %v1389, %v1075
      %v1422 = vsel %vm1358, %v1390, %v1082
      %v1423 = vsel %vm1359, %v1391, %v1089
      %v1424 = vsel %vm1360, %v1392, %v1096
      %v1425 = vsel %vm1361, %v1393, %v1103
      %v1426 = vsel %vm1362, %v1394, %v1110
      %v1427 = vsel %vm1363, %v1395, %v1117
      %v1428 = vsel %vm1364, %v1396, %v1124
      %v1429 = vsel %vm1365, %v1397, %v1131
      %v1430 = vsel %vm1366, %v1398, %v1138
      %v1431 = vsel %vm1367, %v1399, %v1145
      %v1432 = vsel %vm1368, %v1400, %v1152
      %v1433 = vsel %vm1369, %v1401, %v1159
      %v1434 = vsel %vm1370, %v1402, %v1166
      %v1435 = vsel %vm1371, %v1403, %v1173
      %v1436 = vsel %vm1372, %v1404, %v1180
      %v1437 = vsel %vm1373, %v1405, %v1187
      %v1438 = vsel %vm1374, %v1406, %v1194
      %v1439 = vsel %vm1375, %v1407, %v1201
      %v1440 = vsel %vm1376, %v1408, %v1208
      %v1441 = vsel %vm1377, %v1409, %v1215
      %v1442 = vsel %vm1378, %v1410, %v1222
      %v1443 = vsel %vm1379, %v1411, %v1229
      %v1444 = vsel %vm1380, %v1412, %v1236
      %v1445 = vsel %vm1381, %v1413, %v1243
      %v1446 = vsel %vm1382, %v1414, %v1250
      %v1447 = vsel %vm1383, %v1415, %v1257
      %v1448 = vsel %vm1384, %v1416, %v1264
      %v1449 = vsel %vm1385, %v1417, %v1271
      %v1450 = vsel %vm1386, %v1418, %v1278
      %v1451 = vsel %vm1387, %v1419, %v1285
      %v1452 = vsel %vm1388, %v1420, %v1292
      %vm1453 = vcmp.gt.s32.totalorder %v1421, 0
      %vm1454 = vcmp.gt.s32.totalorder %v1422, 0
      %vm1455 = vcmp.gt.s32.totalorder %v1423, 0
      %vm1456 = vcmp.gt.s32.totalorder %v1424, 0
      %vm1457 = vcmp.gt.s32.totalorder %v1425, 0
      %vm1458 = vcmp.gt.s32.totalorder %v1426, 0
      %vm1459 = vcmp.gt.s32.totalorder %v1427, 0
      %vm1460 = vcmp.gt.s32.totalorder %v1428, 0
      %vm1461 = vcmp.gt.s32.totalorder %v1429, 0
      %vm1462 = vcmp.gt.s32.totalorder %v1430, 0
      %vm1463 = vcmp.gt.s32.totalorder %v1431, 0
      %vm1464 = vcmp.gt.s32.totalorder %v1432, 0
      %vm1465 = vcmp.gt.s32.totalorder %v1433, 0
      %vm1466 = vcmp.gt.s32.totalorder %v1434, 0
      %vm1467 = vcmp.gt.s32.totalorder %v1435, 0
      %vm1468 = vcmp.gt.s32.totalorder %v1436, 0
      %vm1469 = vcmp.gt.s32.totalorder %v1437, 0
      %vm1470 = vcmp.gt.s32.totalorder %v1438, 0
      %vm1471 = vcmp.gt.s32.totalorder %v1439, 0
      %vm1472 = vcmp.gt.s32.totalorder %v1440, 0
      %vm1473 = vcmp.gt.s32.totalorder %v1441, 0
      %vm1474 = vcmp.gt.s32.totalorder %v1442, 0
      %vm1475 = vcmp.gt.s32.totalorder %v1443, 0
      %vm1476 = vcmp.gt.s32.totalorder %v1444, 0
      %vm1477 = vcmp.gt.s32.totalorder %v1445, 0
      %vm1478 = vcmp.gt.s32.totalorder %v1446, 0
      %vm1479 = vcmp.gt.s32.totalorder %v1447, 0
      %vm1480 = vcmp.gt.s32.totalorder %v1448, 0
      %vm1481 = vcmp.gt.s32.totalorder %v1449, 0
      %vm1482 = vcmp.gt.s32.totalorder %v1450, 0
      %vm1483 = vcmp.gt.s32.totalorder %v1451, 0
      %vm1484 = vcmp.gt.s32.totalorder %v1452, 0
      %vm1485 = vcmp.lt.s32.totalorder %v1421, 15
      %vm1486 = vcmp.lt.s32.totalorder %v1422, 15
      %vm1487 = vcmp.lt.s32.totalorder %v1423, 15
      %vm1488 = vcmp.lt.s32.totalorder %v1424, 15
      %vm1489 = vcmp.lt.s32.totalorder %v1425, 15
      %vm1490 = vcmp.lt.s32.totalorder %v1426, 15
      %vm1491 = vcmp.lt.s32.totalorder %v1427, 15
      %vm1492 = vcmp.lt.s32.totalorder %v1428, 15
      %vm1493 = vcmp.lt.s32.totalorder %v1429, 15
      %vm1494 = vcmp.lt.s32.totalorder %v1430, 15
      %vm1495 = vcmp.lt.s32.totalorder %v1431, 15
      %vm1496 = vcmp.lt.s32.totalorder %v1432, 15
      %vm1497 = vcmp.lt.s32.totalorder %v1433, 15
      %vm1498 = vcmp.lt.s32.totalorder %v1434, 15
      %vm1499 = vcmp.lt.s32.totalorder %v1435, 15
      %vm1500 = vcmp.lt.s32.totalorder %v1436, 15
      %vm1501 = vcmp.lt.s32.totalorder %v1437, 15
      %vm1502 = vcmp.lt.s32.totalorder %v1438, 15
      %vm1503 = vcmp.lt.s32.totalorder %v1439, 15
      %vm1504 = vcmp.lt.s32.totalorder %v1440, 15
      %vm1505 = vcmp.lt.s32.totalorder %v1441, 15
      %vm1506 = vcmp.lt.s32.totalorder %v1442, 15
      %vm1507 = vcmp.lt.s32.totalorder %v1443, 15
      %vm1508 = vcmp.lt.s32.totalorder %v1444, 15
      %vm1509 = vcmp.lt.s32.totalorder %v1445, 15
      %vm1510 = vcmp.lt.s32.totalorder %v1446, 15
      %vm1511 = vcmp.lt.s32.totalorder %v1447, 15
      %vm1512 = vcmp.lt.s32.totalorder %v1448, 15
      %vm1513 = vcmp.lt.s32.totalorder %v1449, 15
      %vm1514 = vcmp.lt.s32.totalorder %v1450, 15
      %vm1515 = vcmp.lt.s32.totalorder %v1451, 15
      %vm1516 = vcmp.lt.s32.totalorder %v1452, 15
      %1517 = vst.msk [vmem:[#allocation3] sm:$0xf] %vm881, %v932
      %1518 = vst.msk [vmem:[#allocation3 + $0x4] sm:$0xf] %vm881, %v933
      %1519 = vst.msk [vmem:[#allocation3 + $0x8] sm:$0xf] %vm881, %v934
      %1520 = vst.msk [vmem:[#allocation3 + $0xc] sm:$0xf] %vm881, %v935
      %1521 = vst.msk [vmem:[#allocation3 + $0x10] sm:$0xf] %vm881, %v936
      %1522 = vst.msk [vmem:[#allocation3 + $0x14] sm:$0xf] %vm881, %v937
      %1523 = vst.msk [vmem:[#allocation3 + $0x18] sm:$0xf] %vm881, %v938
      %1524 = vst.msk [vmem:[#allocation3 + $0x1c] sm:$0xf] %vm881, %v939
      %1525 = vst.msk [vmem:[#allocation3 + $0x20] sm:$0xf] %vm881, %v940
      %1526 = vst.msk [vmem:[#allocation3 + $0x24] sm:$0xf] %vm881, %v941
      %1527 = vst.msk [vmem:[#allocation3 + $0x28] sm:$0xf] %vm881, %v942
      %1528 = vst.msk [vmem:[#allocation3 + $0x2c] sm:$0xf] %vm881, %v943
      %1529 = vst.msk [vmem:[#allocation3 + $0x30] sm:$0xf] %vm881, %v944
      %1530 = vst.msk [vmem:[#allocation3 + $0x34] sm:$0xf] %vm881, %v945
      %1531 = vst.msk [vmem:[#allocation3 + $0x38] sm:$0xf] %vm881, %v946
      %1532 = vst.msk [vmem:[#allocation3 + $0x3c] sm:$0xf] %vm881, %v947
      %1533 = vst.msk [vmem:[#allocation3 + $0x40] sm:$0xf] %vm881, %v948
      %1534 = vst.msk [vmem:[#allocation3 + $0x44] sm:$0xf] %vm881, %v949
      %1535 = vst.msk [vmem:[#allocation3 + $0x48] sm:$0xf] %vm881, %v950
      %1536 = vst.msk [vmem:[#allocation3 + $0x4c] sm:$0xf] %vm881, %v951
      %1537 = vst.msk [vmem:[#allocation3 + $0x50] sm:$0xf] %vm881, %v952
      %1538 = vst.msk [vmem:[#allocation3 + $0x54] sm:$0xf] %vm881, %v953
      %1539 = vst.msk [vmem:[#allocation3 + $0x58] sm:$0xf] %vm881, %v954
      %1540 = vst.msk [vmem:[#allocation3 + $0x5c] sm:$0xf] %vm881, %v955
      %1541 = vst.msk [vmem:[#allocation3 + $0x60] sm:$0xf] %vm881, %v956
      %1542 = vst.msk [vmem:[#allocation3 + $0x64] sm:$0xf] %vm881, %v957
      %1543 = vst.msk [vmem:[#allocation3 + $0x68] sm:$0xf] %vm881, %v958
      %1544 = vst.msk [vmem:[#allocation3 + $0x6c] sm:$0xf] %vm881, %v959
      %1545 = vst.msk [vmem:[#allocation3 + $0x70] sm:$0xf] %vm881, %v960
      %1546 = vst.msk [vmem:[#allocation3 + $0x74] sm:$0xf] %vm881, %v961
      %1547 = vst.msk [vmem:[#allocation3 + $0x78] sm:$0xf] %vm881, %v962
      %1548 = vst.msk [vmem:[#allocation3 + $0x7c] sm:$0xf] %vm881, %v963
      %v1549 = vld [vmem:[#allocation2] sm:$0x8]
      %v1550 = vld [vmem:[#allocation2 + $0x4] sm:$0xf]
      %v1551 = vld [vmem:[#allocation2 + $0x8] sm:$0xf]
      %v1552 = vld [vmem:[#allocation2 + $0xc] sm:$0xf]
      %v1553 = vld [vmem:[#allocation2 + $0x10] sm:$0xf]
      %v1554 = vld [vmem:[#allocation2 + $0x14] sm:$0xf]
      %v1555 = vld [vmem:[#allocation2 + $0x18] sm:$0xf]
      %v1556 = vld [vmem:[#allocation2 + $0x1c] sm:$0xf]
      %v1557 = vld [vmem:[#allocation2 + $0x20] sm:$0xf]
      %v1558 = vld [vmem:[#allocation2 + $0x24] sm:$0xf]
      %v1559 = vld [vmem:[#allocation2 + $0x28] sm:$0xf]
      %v1560 = vld [vmem:[#allocation2 + $0x2c] sm:$0xf]
      %v1561 = vld [vmem:[#allocation2 + $0x30] sm:$0xf]
      %v1562 = vld [vmem:[#allocation2 + $0x34] sm:$0xf]
      %v1563 = vld [vmem:[#allocation2 + $0x38] sm:$0xf]
      %v1564 = vld [vmem:[#allocation2 + $0x3c] sm:$0xf]
      %v1565 = vld [vmem:[#allocation2 + $0x40] sm:$0xf]
      %v1566 = vld [vmem:[#allocation2 + $0x44] sm:$0xf]
      %v1567 = vld [vmem:[#allocation2 + $0x48] sm:$0xf]
      %v1568 = vld [vmem:[#allocation2 + $0x4c] sm:$0xf]
      %v1569 = vld [vmem:[#allocation2 + $0x50] sm:$0xf]
      %v1570 = vld [vmem:[#allocation2 + $0x54] sm:$0xf]
      %v1571 = vld [vmem:[#allocation2 + $0x58] sm:$0xf]
      %v1572 = vld [vmem:[#allocation2 + $0x5c] sm:$0xf]
      %v1573 = vld [vmem:[#allocation2 + $0x60] sm:$0xf]
      %v1574 = vld [vmem:[#allocation2 + $0x64] sm:$0xf]
      %v1575 = vld [vmem:[#allocation2 + $0x68] sm:$0xf]
      %v1576 = vld [vmem:[#allocation2 + $0x6c] sm:$0xf]
      %v1577 = vld [vmem:[#allocation2 + $0x70] sm:$0xf]
      %v1578 = vld [vmem:[#allocation2 + $0x74] sm:$0xf]
      %v1579 = vld [vmem:[#allocation2 + $0x78] sm:$0xf]
      %v1580 = vld [vmem:[#allocation2 + $0x7c] sm:$0xf]
      %v1581 = vld [vmem:[#allocation2 + $0x80] sm:$0xf]
      %v1582 = vsel %vm1453, 1, 0
      %v1583 = vsel %vm1454, 1, 0
      %v1584 = vsel %vm1455, 1, 0
      %v1585 = vsel %vm1456, 1, 0
      %v1586 = vsel %vm1457, 1, 0
      %v1587 = vsel %vm1458, 1, 0
      %v1588 = vsel %vm1459, 1, 0
      %v1589 = vsel %vm1460, 1, 0
      %v1590 = vsel %vm1461, 1, 0
      %v1591 = vsel %vm1462, 1, 0
      %v1592 = vsel %vm1463, 1, 0
      %v1593 = vsel %vm1464, 1, 0
      %v1594 = vsel %vm1465, 1, 0
      %v1595 = vsel %vm1466, 1, 0
      %v1596 = vsel %vm1467, 1, 0
      %v1597 = vsel %vm1468, 1, 0
      %v1598 = vsel %vm1469, 1, 0
      %v1599 = vsel %vm1470, 1, 0
      %v1600 = vsel %vm1471, 1, 0
      %v1601 = vsel %vm1472, 1, 0
      %v1602 = vsel %vm1473, 1, 0
      %v1603 = vsel %vm1474, 1, 0
      %v1604 = vsel %vm1475, 1, 0
      %v1605 = vsel %vm1476, 1, 0
      %v1606 = vsel %vm1477, 1, 0
      %v1607 = vsel %vm1478, 1, 0
      %v1608 = vsel %vm1479, 1, 0
      %v1609 = vsel %vm1480, 1, 0
      %v1610 = vsel %vm1481, 1, 0
      %v1611 = vsel %vm1482, 1, 0
      %v1612 = vsel %vm1483, 1, 0
      %v1613 = vsel %vm1484, 1, 0
      %vm1614 = vcmp.eq.s32.totalorder %v1582, 1
      %vm1615 = vcmp.eq.s32.totalorder %v1583, 1
      %vm1616 = vcmp.eq.s32.totalorder %v1584, 1
      %vm1617 = vcmp.eq.s32.totalorder %v1585, 1
      %vm1618 = vcmp.eq.s32.totalorder %v1586, 1
      %vm1619 = vcmp.eq.s32.totalorder %v1587, 1
      %vm1620 = vcmp.eq.s32.totalorder %v1588, 1
      %vm1621 = vcmp.eq.s32.totalorder %v1589, 1
      %vm1622 = vcmp.eq.s32.totalorder %v1590, 1
      %vm1623 = vcmp.eq.s32.totalorder %v1591, 1
      %vm1624 = vcmp.eq.s32.totalorder %v1592, 1
      %vm1625 = vcmp.eq.s32.totalorder %v1593, 1
      %vm1626 = vcmp.eq.s32.totalorder %v1594, 1
      %vm1627 = vcmp.eq.s32.totalorder %v1595, 1
      %vm1628 = vcmp.eq.s32.totalorder %v1596, 1
      %vm1629 = vcmp.eq.s32.totalorder %v1597, 1
      %vm1630 = vcmp.eq.s32.totalorder %v1598, 1
      %vm1631 = vcmp.eq.s32.totalorder %v1599, 1
      %vm1632 = vcmp.eq.s32.totalorder %v1600, 1
      %vm1633 = vcmp.eq.s32.totalorder %v1601, 1
      %vm1634 = vcmp.eq.s32.totalorder %v1602, 1
      %vm1635 = vcmp.eq.s32.totalorder %v1603, 1
      %vm1636 = vcmp.eq.s32.totalorder %v1604, 1
      %vm1637 = vcmp.eq.s32.totalorder %v1605, 1
      %vm1638 = vcmp.eq.s32.totalorder %v1606, 1
      %vm1639 = vcmp.eq.s32.totalorder %v1607, 1
      %vm1640 = vcmp.eq.s32.totalorder %v1608, 1
      %vm1641 = vcmp.eq.s32.totalorder %v1609, 1
      %vm1642 = vcmp.eq.s32.totalorder %v1610, 1
      %vm1643 = vcmp.eq.s32.totalorder %v1611, 1
      %vm1644 = vcmp.eq.s32.totalorder %v1612, 1
      %vm1645 = vcmp.eq.s32.totalorder %v1613, 1
      %vm1646 = vmpackc.low %vm1614, %vm1614
      %vm1647 = vmpackc.low %vm1615, %vm1615
      %vm1648 = vmpackc.low %vm1616, %vm1616
      %vm1649 = vmpackc.low %vm1617, %vm1617
      %vm1650 = vmpackc.low %vm1618, %vm1618
      %vm1651 = vmpackc.low %vm1619, %vm1619
      %vm1652 = vmpackc.low %vm1620, %vm1620
      %vm1653 = vmpackc.low %vm1621, %vm1621
      %vm1654 = vmpackc.low %vm1622, %vm1622
      %vm1655 = vmpackc.low %vm1623, %vm1623
      %vm1656 = vmpackc.low %vm1624, %vm1624
      %vm1657 = vmpackc.low %vm1625, %vm1625
      %vm1658 = vmpackc.low %vm1626, %vm1626
      %vm1659 = vmpackc.low %vm1627, %vm1627
      %vm1660 = vmpackc.low %vm1628, %vm1628
      %vm1661 = vmpackc.low %vm1629, %vm1629
      %vm1662 = vmpackc.low %vm1630, %vm1630
      %vm1663 = vmpackc.low %vm1631, %vm1631
      %vm1664 = vmpackc.low %vm1632, %vm1632
      %vm1665 = vmpackc.low %vm1633, %vm1633
      %vm1666 = vmpackc.low %vm1634, %vm1634
      %vm1667 = vmpackc.low %vm1635, %vm1635
      %vm1668 = vmpackc.low %vm1636, %vm1636
      %vm1669 = vmpackc.low %vm1637, %vm1637
      %vm1670 = vmpackc.low %vm1638, %vm1638
      %vm1671 = vmpackc.low %vm1639, %vm1639
      %vm1672 = vmpackc.low %vm1640, %vm1640
      %vm1673 = vmpackc.low %vm1641, %vm1641
      %vm1674 = vmpackc.low %vm1642, %vm1642
      %vm1675 = vmpackc.low %vm1643, %vm1643
      %vm1676 = vmpackc.low %vm1644, %vm1644
      %vm1677 = vmpackc.low %vm1645, %vm1645
      %v1678 = vsel %vm1646, 65537, 0
      %v1679 = vsel %vm1647, 65537, 0
      %v1680 = vsel %vm1648, 65537, 0
      %v1681 = vsel %vm1649, 65537, 0
      %v1682 = vsel %vm1650, 65537, 0
      %v1683 = vsel %vm1651, 65537, 0
      %v1684 = vsel %vm1652, 65537, 0
      %v1685 = vsel %vm1653, 65537, 0
      %v1686 = vsel %vm1654, 65537, 0
      %v1687 = vsel %vm1655, 65537, 0
      %v1688 = vsel %vm1656, 65537, 0
      %v1689 = vsel %vm1657, 65537, 0
      %v1690 = vsel %vm1658, 65537, 0
      %v1691 = vsel %vm1659, 65537, 0
      %v1692 = vsel %vm1660, 65537, 0
      %v1693 = vsel %vm1661, 65537, 0
      %v1694 = vsel %vm1662, 65537, 0
      %v1695 = vsel %vm1663, 65537, 0
      %v1696 = vsel %vm1664, 65537, 0
      %v1697 = vsel %vm1665, 65537, 0
      %v1698 = vsel %vm1666, 65537, 0
      %v1699 = vsel %vm1667, 65537, 0
      %v1700 = vsel %vm1668, 65537, 0
      %v1701 = vsel %vm1669, 65537, 0
      %v1702 = vsel %vm1670, 65537, 0
      %v1703 = vsel %vm1671, 65537, 0
      %v1704 = vsel %vm1672, 65537, 0
      %v1705 = vsel %vm1673, 65537, 0
      %v1706 = vsel %vm1674, 65537, 0
      %v1707 = vsel %vm1675, 65537, 0
      %v1708 = vsel %vm1676, 65537, 0
      %v1709 = vsel %vm1677, 65537, 0
      %vm1710 = vsmask.f32 3328
      %vm1711 = vsmask.f32 7440
      %vm1712 = vmor %vm1710, %vm1711
      %v1714 = vshll.u32 %v1678, 16
      %v1716 = vrot.slane %v1714, 5
      %v1717 = vshrl.u32 %v1678, 16
      %v1719 = vrot.slane %v1717, 4
      %v1720 = vor.u32 %v1719, %v1716
      %v1721 = vrot.slane %v1720, 4
      %v1723 = vshll.u32 %v1679, 16
      %v1725 = vrot.slane %v1723, 5
      %v1726 = vsel %vm1712, %v1721, %v1725
      %v1727 = vshrl.u32 %v1679, 16
      %v1729 = vrot.slane %v1727, 4
      %v1730 = vor.u32 %v1729, %v1725
      %v1731 = vrot.slane %v1730, 4
      %v1733 = vshll.u32 %v1680, 16
      %v1735 = vrot.slane %v1733, 5
      %v1736 = vsel %vm1712, %v1731, %v1735
      %v1737 = vshrl.u32 %v1680, 16
      %v1739 = vrot.slane %v1737, 4
      %v1740 = vor.u32 %v1739, %v1735
      %v1741 = vrot.slane %v1740, 4
      %v1743 = vshll.u32 %v1681, 16
      %v1745 = vrot.slane %v1743, 5
      %v1746 = vsel %vm1712, %v1741, %v1745
      %v1747 = vshrl.u32 %v1681, 16
      %v1749 = vrot.slane %v1747, 4
      %v1750 = vor.u32 %v1749, %v1745
      %v1751 = vrot.slane %v1750, 4
      %v1753 = vshll.u32 %v1682, 16
      %v1755 = vrot.slane %v1753, 5
      %v1756 = vsel %vm1712, %v1751, %v1755
      %v1757 = vshrl.u32 %v1682, 16
      %v1759 = vrot.slane %v1757, 4
      %v1760 = vor.u32 %v1759, %v1755
      %v1761 = vrot.slane %v1760, 4
      %v1763 = vshll.u32 %v1683, 16
      %v1765 = vrot.slane %v1763, 5
      %v1766 = vsel %vm1712, %v1761, %v1765
      %v1767 = vshrl.u32 %v1683, 16
      %v1769 = vrot.slane %v1767, 4
      %v1770 = vor.u32 %v1769, %v1765
      %v1771 = vrot.slane %v1770, 4
      %v1773 = vshll.u32 %v1684, 16
      %v1775 = vrot.slane %v1773, 5
      %v1776 = vsel %vm1712, %v1771, %v1775
      %v1777 = vshrl.u32 %v1684, 16
      %v1779 = vrot.slane %v1777, 4
      %v1780 = vor.u32 %v1779, %v1775
      %v1781 = vrot.slane %v1780, 4
      %v1783 = vshll.u32 %v1685, 16
      %v1785 = vrot.slane %v1783, 5
      %v1786 = vsel %vm1712, %v1781, %v1785
      %v1787 = vshrl.u32 %v1685, 16
      %v1789 = vrot.slane %v1787, 4
      %v1790 = vor.u32 %v1789, %v1785
      %v1791 = vrot.slane %v1790, 4
      %v1793 = vshll.u32 %v1686, 16
      %v1795 = vrot.slane %v1793, 5
      %v1796 = vsel %vm1712, %v1791, %v1795
      %v1797 = vshrl.u32 %v1686, 16
      %v1799 = vrot.slane %v1797, 4
      %v1800 = vor.u32 %v1799, %v1795
      %v1801 = vrot.slane %v1800, 4
      %v1803 = vshll.u32 %v1687, 16
      %v1805 = vrot.slane %v1803, 5
      %v1806 = vsel %vm1712, %v1801, %v1805
      %v1807 = vshrl.u32 %v1687, 16
      %v1809 = vrot.slane %v1807, 4
      %v1810 = vor.u32 %v1809, %v1805
      %v1811 = vrot.slane %v1810, 4
      %v1813 = vshll.u32 %v1688, 16
      %v1815 = vrot.slane %v1813, 5
      %v1816 = vsel %vm1712, %v1811, %v1815
      %v1817 = vshrl.u32 %v1688, 16
      %v1819 = vrot.slane %v1817, 4
      %v1820 = vor.u32 %v1819, %v1815
      %v1821 = vrot.slane %v1820, 4
      %v1823 = vshll.u32 %v1689, 16
      %v1825 = vrot.slane %v1823, 5
      %v1826 = vsel %vm1712, %v1821, %v1825
      %v1827 = vshrl.u32 %v1689, 16
      %v1829 = vrot.slane %v1827, 4
      %v1830 = vor.u32 %v1829, %v1825
      %v1831 = vrot.slane %v1830, 4
      %v1833 = vshll.u32 %v1690, 16
      %v1835 = vrot.slane %v1833, 5
      %v1836 = vsel %vm1712, %v1831, %v1835
      %v1837 = vshrl.u32 %v1690, 16
      %v1839 = vrot.slane %v1837, 4
      %v1840 = vor.u32 %v1839, %v1835
      %v1841 = vrot.slane %v1840, 4
      %v1843 = vshll.u32 %v1691, 16
      %v1845 = vrot.slane %v1843, 5
      %v1846 = vsel %vm1712, %v1841, %v1845
      %v1847 = vshrl.u32 %v1691, 16
      %v1849 = vrot.slane %v1847, 4
      %v1850 = vor.u32 %v1849, %v1845
      %v1851 = vrot.slane %v1850, 4
      %v1853 = vshll.u32 %v1692, 16
      %v1855 = vrot.slane %v1853, 5
      %v1856 = vsel %vm1712, %v1851, %v1855
      %v1857 = vshrl.u32 %v1692, 16
      %v1859 = vrot.slane %v1857, 4
      %v1860 = vor.u32 %v1859, %v1855
      %v1861 = vrot.slane %v1860, 4
      %v1863 = vshll.u32 %v1693, 16
      %v1865 = vrot.slane %v1863, 5
      %v1866 = vsel %vm1712, %v1861, %v1865
      %v1867 = vshrl.u32 %v1693, 16
      %v1869 = vrot.slane %v1867, 4
      %v1870 = vor.u32 %v1869, %v1865
      %v1871 = vrot.slane %v1870, 4
      %v1873 = vshll.u32 %v1694, 16
      %v1875 = vrot.slane %v1873, 5
      %v1876 = vsel %vm1712, %v1871, %v1875
      %v1877 = vshrl.u32 %v1694, 16
      %v1879 = vrot.slane %v1877, 4
      %v1880 = vor.u32 %v1879, %v1875
      %v1881 = vrot.slane %v1880, 4
      %v1883 = vshll.u32 %v1695, 16
      %v1885 = vrot.slane %v1883, 5
      %v1886 = vsel %vm1712, %v1881, %v1885
      %v1887 = vshrl.u32 %v1695, 16
      %v1889 = vrot.slane %v1887, 4
      %v1890 = vor.u32 %v1889, %v1885
      %v1891 = vrot.slane %v1890, 4
      %v1893 = vshll.u32 %v1696, 16
      %v1895 = vrot.slane %v1893, 5
      %v1896 = vsel %vm1712, %v1891, %v1895
      %v1897 = vshrl.u32 %v1696, 16
      %v1899 = vrot.slane %v1897, 4
      %v1900 = vor.u32 %v1899, %v1895
      %v1901 = vrot.slane %v1900, 4
      %v1903 = vshll.u32 %v1697, 16
      %v1905 = vrot.slane %v1903, 5
      %v1906 = vsel %vm1712, %v1901, %v1905
      %v1907 = vshrl.u32 %v1697, 16
      %v1909 = vrot.slane %v1907, 4
      %v1910 = vor.u32 %v1909, %v1905
      %v1911 = vrot.slane %v1910, 4
      %v1913 = vshll.u32 %v1698, 16
      %v1915 = vrot.slane %v1913, 5
      %v1916 = vsel %vm1712, %v1911, %v1915
      %v1917 = vshrl.u32 %v1698, 16
      %v1919 = vrot.slane %v1917, 4
      %v1920 = vor.u32 %v1919, %v1915
      %v1921 = vrot.slane %v1920, 4
      %v1923 = vshll.u32 %v1699, 16
      %v1925 = vrot.slane %v1923, 5
      %v1926 = vsel %vm1712, %v1921, %v1925
      %v1927 = vshrl.u32 %v1699, 16
      %v1929 = vrot.slane %v1927, 4
      %v1930 = vor.u32 %v1929, %v1925
      %v1931 = vrot.slane %v1930, 4
      %v1933 = vshll.u32 %v1700, 16
      %v1935 = vrot.slane %v1933, 5
      %v1936 = vsel %vm1712, %v1931, %v1935
      %v1937 = vshrl.u32 %v1700, 16
      %v1939 = vrot.slane %v1937, 4
      %v1940 = vor.u32 %v1939, %v1935
      %v1941 = vrot.slane %v1940, 4
      %v1943 = vshll.u32 %v1701, 16
      %v1945 = vrot.slane %v1943, 5
      %v1946 = vsel %vm1712, %v1941, %v1945
      %v1947 = vshrl.u32 %v1701, 16
      %v1949 = vrot.slane %v1947, 4
      %v1950 = vor.u32 %v1949, %v1945
      %v1951 = vrot.slane %v1950, 4
      %v1953 = vshll.u32 %v1702, 16
      %v1955 = vrot.slane %v1953, 5
      %v1956 = vsel %vm1712, %v1951, %v1955
      %v1957 = vshrl.u32 %v1702, 16
      %v1959 = vrot.slane %v1957, 4
      %v1960 = vor.u32 %v1959, %v1955
      %v1961 = vrot.slane %v1960, 4
      %v1963 = vshll.u32 %v1703, 16
      %v1965 = vrot.slane %v1963, 5
      %v1966 = vsel %vm1712, %v1961, %v1965
      %v1967 = vshrl.u32 %v1703, 16
      %v1969 = vrot.slane %v1967, 4
      %v1970 = vor.u32 %v1969, %v1965
      %v1971 = vrot.slane %v1970, 4
      %v1973 = vshll.u32 %v1704, 16
      %v1975 = vrot.slane %v1973, 5
      %v1976 = vsel %vm1712, %v1971, %v1975
      %v1977 = vshrl.u32 %v1704, 16
      %v1979 = vrot.slane %v1977, 4
      %v1980 = vor.u32 %v1979, %v1975
      %v1981 = vrot.slane %v1980, 4
      %v1983 = vshll.u32 %v1705, 16
      %v1985 = vrot.slane %v1983, 5
      %v1986 = vsel %vm1712, %v1981, %v1985
      %v1987 = vshrl.u32 %v1705, 16
      %v1989 = vrot.slane %v1987, 4
      %v1990 = vor.u32 %v1989, %v1985
      %v1991 = vrot.slane %v1990, 4
      %v1993 = vshll.u32 %v1706, 16
      %v1995 = vrot.slane %v1993, 5
      %v1996 = vsel %vm1712, %v1991, %v1995
      %v1997 = vshrl.u32 %v1706, 16
      %v1999 = vrot.slane %v1997, 4
      %v2000 = vor.u32 %v1999, %v1995
      %v2001 = vrot.slane %v2000, 4
      %v2003 = vshll.u32 %v1707, 16
      %v2005 = vrot.slane %v2003, 5
      %v2006 = vsel %vm1712, %v2001, %v2005
      %v2007 = vshrl.u32 %v1707, 16
      %v2009 = vrot.slane %v2007, 4
      %v2010 = vor.u32 %v2009, %v2005
      %v2011 = vrot.slane %v2010, 4
      %v2013 = vshll.u32 %v1708, 16
      %v2015 = vrot.slane %v2013, 5
      %v2016 = vsel %vm1712, %v2011, %v2015
      %v2017 = vshrl.u32 %v1708, 16
      %v2019 = vrot.slane %v2017, 4
      %v2020 = vor.u32 %v2019, %v2015
      %v2021 = vrot.slane %v2020, 4
      %v2023 = vshll.u32 %v1709, 16
      %v2025 = vrot.slane %v2023, 5
      %v2026 = vsel %vm1712, %v2021, %v2025
      %v2027 = vshrl.u32 %v1709, 16
      %v2029 = vrot.slane %v2027, 4
      %v2030 = vor.u32 %v2029, %v2025
      %v2031 = vrot.slane %v2030, 4
      %vm2032 = vcmp.ne.s16.totalorder %v1716, 0
      %vm2033 = vcmp.ne.s16.totalorder %v1726, 0
      %vm2034 = vcmp.ne.s16.totalorder %v1736, 0
      %vm2035 = vcmp.ne.s16.totalorder %v1746, 0
      %vm2036 = vcmp.ne.s16.totalorder %v1756, 0
      %vm2037 = vcmp.ne.s16.totalorder %v1766, 0
      %vm2038 = vcmp.ne.s16.totalorder %v1776, 0
      %vm2039 = vcmp.ne.s16.totalorder %v1786, 0
      %vm2040 = vcmp.ne.s16.totalorder %v1796, 0
      %vm2041 = vcmp.ne.s16.totalorder %v1806, 0
      %vm2042 = vcmp.ne.s16.totalorder %v1816, 0
      %vm2043 = vcmp.ne.s16.totalorder %v1826, 0
      %vm2044 = vcmp.ne.s16.totalorder %v1836, 0
      %vm2045 = vcmp.ne.s16.totalorder %v1846, 0
      %vm2046 = vcmp.ne.s16.totalorder %v1856, 0
      %vm2047 = vcmp.ne.s16.totalorder %v1866, 0
      %vm2048 = vcmp.ne.s16.totalorder %v1876, 0
      %vm2049 = vcmp.ne.s16.totalorder %v1886, 0
      %vm2050 = vcmp.ne.s16.totalorder %v1896, 0
      %vm2051 = vcmp.ne.s16.totalorder %v1906, 0
      %vm2052 = vcmp.ne.s16.totalorder %v1916, 0
      %vm2053 = vcmp.ne.s16.totalorder %v1926, 0
      %vm2054 = vcmp.ne.s16.totalorder %v1936, 0
      %vm2055 = vcmp.ne.s16.totalorder %v1946, 0
      %vm2056 = vcmp.ne.s16.totalorder %v1956, 0
      %vm2057 = vcmp.ne.s16.totalorder %v1966, 0
      %vm2058 = vcmp.ne.s16.totalorder %v1976, 0
      %vm2059 = vcmp.ne.s16.totalorder %v1986, 0
      %vm2060 = vcmp.ne.s16.totalorder %v1996, 0
      %vm2061 = vcmp.ne.s16.totalorder %v2006, 0
      %vm2062 = vcmp.ne.s16.totalorder %v2016, 0
      %vm2063 = vcmp.ne.s16.totalorder %v2026, 0
      %vm2064 = vcmp.ne.s16.totalorder %v2031, 0
      %v2065 = vsel %vm2032, %v1549, 0
      %v2066 = vsel %vm2033, %v1550, 0
      %v2067 = vsel %vm2034, %v1551, 0
      %v2068 = vsel %vm2035, %v1552, 0
      %v2069 = vsel %vm2036, %v1553, 0
      %v2070 = vsel %vm2037, %v1554, 0
      %v2071 = vsel %vm2038, %v1555, 0
      %v2072 = vsel %vm2039, %v1556, 0
      %v2073 = vsel %vm2040, %v1557, 0
      %v2074 = vsel %vm2041, %v1558, 0
      %v2075 = vsel %vm2042, %v1559, 0
      %v2076 = vsel %vm2043, %v1560, 0
      %v2077 = vsel %vm2044, %v1561, 0
      %v2078 = vsel %vm2045, %v1562, 0
      %v2079 = vsel %vm2046, %v1563, 0
      %v2080 = vsel %vm2047, %v1564, 0
      %v2081 = vsel %vm2048, %v1565, 0
      %v2082 = vsel %vm2049, %v1566, 0
      %v2083 = vsel %vm2050, %v1567, 0
      %v2084 = vsel %vm2051, %v1568, 0
      %v2085 = vsel %vm2052, %v1569, 0
      %v2086 = vsel %vm2053, %v1570, 0
      %v2087 = vsel %vm2054, %v1571, 0
      %v2088 = vsel %vm2055, %v1572, 0
      %v2089 = vsel %vm2056, %v1573, 0
      %v2090 = vsel %vm2057, %v1574, 0
      %v2091 = vsel %vm2058, %v1575, 0
      %v2092 = vsel %vm2059, %v1576, 0
      %v2093 = vsel %vm2060, %v1577, 0
      %v2094 = vsel %vm2061, %v1578, 0
      %v2095 = vsel %vm2062, %v1579, 0
      %v2096 = vsel %vm2063, %v1580, 0
      %v2097 = vsel %vm2064, %v1581, 0
      %vm2098 = vsmask.f32 4368
      %vm2099 = vmor %vm1031, %vm2098
      %v2101 = vshrl.u32 %v2065, 16
      %v2103 = vrot.slane %v2101, 7
      %v2104 = vrot.slane %v2103, 4
      %v2106 = vshrl.u32 %v2066, 16
      %v2108 = vrot.slane %v2106, 7
      %v2109 = vshll.u32 %v2066, 16
      %v2111 = vor.u32 %v2108, %v2109
      %v2112 = vsel %vm2099, %v2104, %v2111
      %v2113 = vrot.slane %v2108, 4
      %v2115 = vshrl.u32 %v2067, 16
      %v2117 = vrot.slane %v2115, 7
      %v2118 = vshll.u32 %v2067, 16
      %v2120 = vor.u32 %v2117, %v2118
      %v2121 = vsel %vm2099, %v2113, %v2120
      %v2122 = vrot.slane %v2117, 4
      %v2124 = vshrl.u32 %v2068, 16
      %v2126 = vrot.slane %v2124, 7
      %v2127 = vshll.u32 %v2068, 16
      %v2129 = vor.u32 %v2126, %v2127
      %v2130 = vsel %vm2099, %v2122, %v2129
      %v2131 = vrot.slane %v2126, 4
      %v2133 = vshrl.u32 %v2069, 16
      %v2135 = vrot.slane %v2133, 7
      %v2136 = vshll.u32 %v2069, 16
      %v2138 = vor.u32 %v2135, %v2136
      %v2139 = vsel %vm2099, %v2131, %v2138
      %v2140 = vrot.slane %v2135, 4
      %v2142 = vshrl.u32 %v2070, 16
      %v2144 = vrot.slane %v2142, 7
      %v2145 = vshll.u32 %v2070, 16
      %v2147 = vor.u32 %v2144, %v2145
      %v2148 = vsel %vm2099, %v2140, %v2147
      %v2149 = vrot.slane %v2144, 4
      %v2151 = vshrl.u32 %v2071, 16
      %v2153 = vrot.slane %v2151, 7
      %v2154 = vshll.u32 %v2071, 16
      %v2156 = vor.u32 %v2153, %v2154
      %v2157 = vsel %vm2099, %v2149, %v2156
      %v2158 = vrot.slane %v2153, 4
      %v2160 = vshrl.u32 %v2072, 16
      %v2162 = vrot.slane %v2160, 7
      %v2163 = vshll.u32 %v2072, 16
      %v2165 = vor.u32 %v2162, %v2163
      %v2166 = vsel %vm2099, %v2158, %v2165
      %v2167 = vrot.slane %v2162, 4
      %v2169 = vshrl.u32 %v2073, 16
      %v2171 = vrot.slane %v2169, 7
      %v2172 = vshll.u32 %v2073, 16
      %v2174 = vor.u32 %v2171, %v2172
      %v2175 = vsel %vm2099, %v2167, %v2174
      %v2176 = vrot.slane %v2171, 4
      %v2178 = vshrl.u32 %v2074, 16
      %v2180 = vrot.slane %v2178, 7
      %v2181 = vshll.u32 %v2074, 16
      %v2183 = vor.u32 %v2180, %v2181
      %v2184 = vsel %vm2099, %v2176, %v2183
      %v2185 = vrot.slane %v2180, 4
      %v2187 = vshrl.u32 %v2075, 16
      %v2189 = vrot.slane %v2187, 7
      %v2190 = vshll.u32 %v2075, 16
      %v2192 = vor.u32 %v2189, %v2190
      %v2193 = vsel %vm2099, %v2185, %v2192
      %v2194 = vrot.slane %v2189, 4
      %v2196 = vshrl.u32 %v2076, 16
      %v2198 = vrot.slane %v2196, 7
      %v2199 = vshll.u32 %v2076, 16
      %v2201 = vor.u32 %v2198, %v2199
      %v2202 = vsel %vm2099, %v2194, %v2201
      %v2203 = vrot.slane %v2198, 4
      %v2205 = vshrl.u32 %v2077, 16
      %v2207 = vrot.slane %v2205, 7
      %v2208 = vshll.u32 %v2077, 16
      %v2210 = vor.u32 %v2207, %v2208
      %v2211 = vsel %vm2099, %v2203, %v2210
      %v2212 = vrot.slane %v2207, 4
      %v2214 = vshrl.u32 %v2078, 16
      %v2216 = vrot.slane %v2214, 7
      %v2217 = vshll.u32 %v2078, 16
      %v2219 = vor.u32 %v2216, %v2217
      %v2220 = vsel %vm2099, %v2212, %v2219
      %v2221 = vrot.slane %v2216, 4
      %v2223 = vshrl.u32 %v2079, 16
      %v2225 = vrot.slane %v2223, 7
      %v2226 = vshll.u32 %v2079, 16
      %v2228 = vor.u32 %v2225, %v2226
      %v2229 = vsel %vm2099, %v2221, %v2228
      %v2230 = vrot.slane %v2225, 4
      %v2232 = vshrl.u32 %v2080, 16
      %v2234 = vrot.slane %v2232, 7
      %v2235 = vshll.u32 %v2080, 16
      %v2237 = vor.u32 %v2234, %v2235
      %v2238 = vsel %vm2099, %v2230, %v2237
      %v2239 = vrot.slane %v2234, 4
      %v2241 = vshrl.u32 %v2081, 16
      %v2243 = vrot.slane %v2241, 7
      %v2244 = vshll.u32 %v2081, 16
      %v2246 = vor.u32 %v2243, %v2244
      %v2247 = vsel %vm2099, %v2239, %v2246
      %v2248 = vrot.slane %v2243, 4
      %v2250 = vshrl.u32 %v2082, 16
      %v2252 = vrot.slane %v2250, 7
      %v2253 = vshll.u32 %v2082, 16
      %v2255 = vor.u32 %v2252, %v2253
      %v2256 = vsel %vm2099, %v2248, %v2255
      %v2257 = vrot.slane %v2252, 4
      %v2259 = vshrl.u32 %v2083, 16
      %v2261 = vrot.slane %v2259, 7
      %v2262 = vshll.u32 %v2083, 16
      %v2264 = vor.u32 %v2261, %v2262
      %v2265 = vsel %vm2099, %v2257, %v2264
      %v2266 = vrot.slane %v2261, 4
      %v2268 = vshrl.u32 %v2084, 16
      %v2270 = vrot.slane %v2268, 7
      %v2271 = vshll.u32 %v2084, 16
      %v2273 = vor.u32 %v2270, %v2271
      %v2274 = vsel %vm2099, %v2266, %v2273
      %v2275 = vrot.slane %v2270, 4
      %v2277 = vshrl.u32 %v2085, 16
      %v2279 = vrot.slane %v2277, 7
      %v2280 = vshll.u32 %v2085, 16
      %v2282 = vor.u32 %v2279, %v2280
      %v2283 = vsel %vm2099, %v2275, %v2282
      %v2284 = vrot.slane %v2279, 4
      %v2286 = vshrl.u32 %v2086, 16
      %v2288 = vrot.slane %v2286, 7
      %v2289 = vshll.u32 %v2086, 16
      %v2291 = vor.u32 %v2288, %v2289
      %v2292 = vsel %vm2099, %v2284, %v2291
      %v2293 = vrot.slane %v2288, 4
      %v2295 = vshrl.u32 %v2087, 16
      %v2297 = vrot.slane %v2295, 7
      %v2298 = vshll.u32 %v2087, 16
      %v2300 = vor.u32 %v2297, %v2298
      %v2301 = vsel %vm2099, %v2293, %v2300
      %v2302 = vrot.slane %v2297, 4
      %v2304 = vshrl.u32 %v2088, 16
      %v2306 = vrot.slane %v2304, 7
      %v2307 = vshll.u32 %v2088, 16
      %v2309 = vor.u32 %v2306, %v2307
      %v2310 = vsel %vm2099, %v2302, %v2309
      %v2311 = vrot.slane %v2306, 4
      %v2313 = vshrl.u32 %v2089, 16
      %v2315 = vrot.slane %v2313, 7
      %v2316 = vshll.u32 %v2089, 16
      %v2318 = vor.u32 %v2315, %v2316
      %v2319 = vsel %vm2099, %v2311, %v2318
      %v2320 = vrot.slane %v2315, 4
      %v2322 = vshrl.u32 %v2090, 16
      %v2324 = vrot.slane %v2322, 7
      %v2325 = vshll.u32 %v2090, 16
      %v2327 = vor.u32 %v2324, %v2325
      %v2328 = vsel %vm2099, %v2320, %v2327
      %v2329 = vrot.slane %v2324, 4
      %v2331 = vshrl.u32 %v2091, 16
      %v2333 = vrot.slane %v2331, 7
      %v2334 = vshll.u32 %v2091, 16
      %v2336 = vor.u32 %v2333, %v2334
      %v2337 = vsel %vm2099, %v2329, %v2336
      %v2338 = vrot.slane %v2333, 4
      %v2340 = vshrl.u32 %v2092, 16
      %v2342 = vrot.slane %v2340, 7
      %v2343 = vshll.u32 %v2092, 16
      %v2345 = vor.u32 %v2342, %v2343
      %v2346 = vsel %vm2099, %v2338, %v2345
      %v2347 = vrot.slane %v2342, 4
      %v2349 = vshrl.u32 %v2093, 16
      %v2351 = vrot.slane %v2349, 7
      %v2352 = vshll.u32 %v2093, 16
      %v2354 = vor.u32 %v2351, %v2352
      %v2355 = vsel %vm2099, %v2347, %v2354
      %v2356 = vrot.slane %v2351, 4
      %v2358 = vshrl.u32 %v2094, 16
      %v2360 = vrot.slane %v2358, 7
      %v2361 = vshll.u32 %v2094, 16
      %v2363 = vor.u32 %v2360, %v2361
      %v2364 = vsel %vm2099, %v2356, %v2363
      %v2365 = vrot.slane %v2360, 4
      %v2367 = vshrl.u32 %v2095, 16
      %v2369 = vrot.slane %v2367, 7
      %v2370 = vshll.u32 %v2095, 16
      %v2372 = vor.u32 %v2369, %v2370
      %v2373 = vsel %vm2099, %v2365, %v2372
      %v2374 = vrot.slane %v2369, 4
      %v2376 = vshrl.u32 %v2096, 16
      %v2378 = vrot.slane %v2376, 7
      %v2379 = vshll.u32 %v2096, 16
      %v2381 = vor.u32 %v2378, %v2379
      %v2382 = vsel %vm2099, %v2374, %v2381
      %v2383 = vrot.slane %v2378, 4
      %v2385 = vshrl.u32 %v2097, 16
      %v2387 = vrot.slane %v2385, 7
      %v2388 = vshll.u32 %v2097, 16
      %v2390 = vor.u32 %v2387, %v2388
      %v2391 = vsel %vm2099, %v2383, %v2390
      %2392 = vrot.lane.b32.xlu0 %v2112, 4
      %v2393 = vpop.permute.xlu0 %2392
      %2394 = vrot.lane.b32.xlu0 %v2121, 4
      %v2395 = vpop.permute.xlu0 %2394
      %2396 = vrot.lane.b32.xlu0 %v2130, 4
      %v2397 = vpop.permute.xlu0 %2396
      %2398 = vrot.lane.b32.xlu0 %v2139, 4
      %v2399 = vpop.permute.xlu0 %2398
      %2400 = vrot.lane.b32.xlu0 %v2148, 4
      %v2401 = vpop.permute.xlu0 %2400
      %2402 = vrot.lane.b32.xlu0 %v2157, 4
      %v2403 = vpop.permute.xlu0 %2402
      %2404 = vrot.lane.b32.xlu0 %v2166, 4
      %v2405 = vpop.permute.xlu0 %2404
      %2406 = vrot.lane.b32.xlu0 %v2175, 4
      %v2407 = vpop.permute.xlu0 %2406
      %2408 = vrot.lane.b32.xlu0 %v2184, 4
      %v2409 = vpop.permute.xlu0 %2408
      %2410 = vrot.lane.b32.xlu0 %v2193, 4
      %v2411 = vpop.permute.xlu0 %2410
      %2412 = vrot.lane.b32.xlu0 %v2202, 4
      %v2413 = vpop.permute.xlu0 %2412
      %2414 = vrot.lane.b32.xlu0 %v2211, 4
      %v2415 = vpop.permute.xlu0 %2414
      %2416 = vrot.lane.b32.xlu0 %v2220, 4
      %v2417 = vpop.permute.xlu0 %2416
      %2418 = vrot.lane.b32.xlu0 %v2229, 4
      %v2419 = vpop.permute.xlu0 %2418
      %2420 = vrot.lane.b32.xlu0 %v2238, 4
      %v2421 = vpop.permute.xlu0 %2420
      %2422 = vrot.lane.b32.xlu0 %v2247, 4
      %v2423 = vpop.permute.xlu0 %2422
      %2424 = vrot.lane.b32.xlu0 %v2256, 4
      %v2425 = vpop.permute.xlu0 %2424
      %2426 = vrot.lane.b32.xlu0 %v2265, 4
      %v2427 = vpop.permute.xlu0 %2426
      %2428 = vrot.lane.b32.xlu0 %v2274, 4
      %v2429 = vpop.permute.xlu0 %2428
      %2430 = vrot.lane.b32.xlu0 %v2283, 4
      %v2431 = vpop.permute.xlu0 %2430
      %2432 = vrot.lane.b32.xlu0 %v2292, 4
      %v2433 = vpop.permute.xlu0 %2432
      %2434 = vrot.lane.b32.xlu0 %v2301, 4
      %v2435 = vpop.permute.xlu0 %2434
      %2436 = vrot.lane.b32.xlu0 %v2310, 4
      %v2437 = vpop.permute.xlu0 %2436
      %2438 = vrot.lane.b32.xlu0 %v2319, 4
      %v2439 = vpop.permute.xlu0 %2438
      %2440 = vrot.lane.b32.xlu0 %v2328, 4
      %v2441 = vpop.permute.xlu0 %2440
      %2442 = vrot.lane.b32.xlu0 %v2337, 4
      %v2443 = vpop.permute.xlu0 %2442
      %2444 = vrot.lane.b32.xlu0 %v2346, 4
      %v2445 = vpop.permute.xlu0 %2444
      %2446 = vrot.lane.b32.xlu0 %v2355, 4
      %v2447 = vpop.permute.xlu0 %2446
      %2448 = vrot.lane.b32.xlu0 %v2364, 4
      %v2449 = vpop.permute.xlu0 %2448
      %2450 = vrot.lane.b32.xlu0 %v2373, 4
      %v2451 = vpop.permute.xlu0 %2450
      %2452 = vrot.lane.b32.xlu0 %v2382, 4
      %v2453 = vpop.permute.xlu0 %2452
      %2454 = vrot.lane.b32.xlu0 %v2391, 4
      %v2455 = vpop.permute.xlu0 %2454
      %vm2488 = vcmask 60448
      %2489 = vst.msk [vmem:[#allocation3] sm:$0xf] %vm2488, %v2393
      %2490 = vst.msk [vmem:[#allocation3 + $0x4] sm:$0xf] %vm2488, %v2395
      %2491 = vst.msk [vmem:[#allocation3 + $0x8] sm:$0xf] %vm2488, %v2397
      %2492 = vst.msk [vmem:[#allocation3 + $0xc] sm:$0xf] %vm2488, %v2399
      %2493 = vst.msk [vmem:[#allocation3 + $0x10] sm:$0xf] %vm2488, %v2401
      %2494 = vst.msk [vmem:[#allocation3 + $0x14] sm:$0xf] %vm2488, %v2403
      %2495 = vst.msk [vmem:[#allocation3 + $0x18] sm:$0xf] %vm2488, %v2405
      %2496 = vst.msk [vmem:[#allocation3 + $0x1c] sm:$0xf] %vm2488, %v2407
      %2497 = vst.msk [vmem:[#allocation3 + $0x20] sm:$0xf] %vm2488, %v2409
      %2498 = vst.msk [vmem:[#allocation3 + $0x24] sm:$0xf] %vm2488, %v2411
      %2499 = vst.msk [vmem:[#allocation3 + $0x28] sm:$0xf] %vm2488, %v2413
      %2500 = vst.msk [vmem:[#allocation3 + $0x2c] sm:$0xf] %vm2488, %v2415
      %2501 = vst.msk [vmem:[#allocation3 + $0x30] sm:$0xf] %vm2488, %v2417
      %2502 = vst.msk [vmem:[#allocation3 + $0x34] sm:$0xf] %vm2488, %v2419
      %2503 = vst.msk [vmem:[#allocation3 + $0x38] sm:$0xf] %vm2488, %v2421
      %2504 = vst.msk [vmem:[#allocation3 + $0x3c] sm:$0xf] %vm2488, %v2423
      %2505 = vst.msk [vmem:[#allocation3 + $0x40] sm:$0xf] %vm2488, %v2425
      %2506 = vst.msk [vmem:[#allocation3 + $0x44] sm:$0xf] %vm2488, %v2427
      %2507 = vst.msk [vmem:[#allocation3 + $0x48] sm:$0xf] %vm2488, %v2429
      %2508 = vst.msk [vmem:[#allocation3 + $0x4c] sm:$0xf] %vm2488, %v2431
      %2509 = vst.msk [vmem:[#allocation3 + $0x50] sm:$0xf] %vm2488, %v2433
      %2510 = vst.msk [vmem:[#allocation3 + $0x54] sm:$0xf] %vm2488, %v2435
      %2511 = vst.msk [vmem:[#allocation3 + $0x58] sm:$0xf] %vm2488, %v2437
      %2512 = vst.msk [vmem:[#allocation3 + $0x5c] sm:$0xf] %vm2488, %v2439
      %2513 = vst.msk [vmem:[#allocation3 + $0x60] sm:$0xf] %vm2488, %v2441
      %2514 = vst.msk [vmem:[#allocation3 + $0x64] sm:$0xf] %vm2488, %v2443
      %2515 = vst.msk [vmem:[#allocation3 + $0x68] sm:$0xf] %vm2488, %v2445
      %2516 = vst.msk [vmem:[#allocation3 + $0x6c] sm:$0xf] %vm2488, %v2447
      %2517 = vst.msk [vmem:[#allocation3 + $0x70] sm:$0xf] %vm2488, %v2449
      %2518 = vst.msk [vmem:[#allocation3 + $0x74] sm:$0xf] %vm2488, %v2451
      %2519 = vst.msk [vmem:[#allocation3 + $0x78] sm:$0xf] %vm2488, %v2453
      %2520 = vst.msk [vmem:[#allocation3 + $0x7c] sm:$0xf] %vm2488, %v2455
      %v2521 = vld [vmem:[#allocation2 + $0x4] sm:$0xf]
      %v2522 = vld [vmem:[#allocation2 + $0x8] sm:$0xf]
      %v2523 = vld [vmem:[#allocation2 + $0xc] sm:$0xf]
      %v2524 = vld [vmem:[#allocation2 + $0x10] sm:$0xf]
      %v2525 = vld [vmem:[#allocation2 + $0x14] sm:$0xf]
      %v2526 = vld [vmem:[#allocation2 + $0x18] sm:$0xf]
      %v2527 = vld [vmem:[#allocation2 + $0x1c] sm:$0xf]
      %v2528 = vld [vmem:[#allocation2 + $0x20] sm:$0xf]
      %v2529 = vld [vmem:[#allocation2 + $0x24] sm:$0xf]
      %v2530 = vld [vmem:[#allocation2 + $0x28] sm:$0xf]
      %v2531 = vld [vmem:[#allocation2 + $0x2c] sm:$0xf]
      %v2532 = vld [vmem:[#allocation2 + $0x30] sm:$0xf]
      %v2533 = vld [vmem:[#allocation2 + $0x34] sm:$0xf]
      %v2534 = vld [vmem:[#allocation2 + $0x38] sm:$0xf]
      %v2535 = vld [vmem:[#allocation2 + $0x3c] sm:$0xf]
      %v2536 = vld [vmem:[#allocation2 + $0x40] sm:$0xf]
      %v2537 = vld [vmem:[#allocation2 + $0x44] sm:$0xf]
      %v2538 = vld [vmem:[#allocation2 + $0x48] sm:$0xf]
      %v2539 = vld [vmem:[#allocation2 + $0x4c] sm:$0xf]
      %v2540 = vld [vmem:[#allocation2 + $0x50] sm:$0xf]
      %v2541 = vld [vmem:[#allocation2 + $0x54] sm:$0xf]
      %v2542 = vld [vmem:[#allocation2 + $0x58] sm:$0xf]
      %v2543 = vld [vmem:[#allocation2 + $0x5c] sm:$0xf]
      %v2544 = vld [vmem:[#allocation2 + $0x60] sm:$0xf]
      %v2545 = vld [vmem:[#allocation2 + $0x64] sm:$0xf]
      %v2546 = vld [vmem:[#allocation2 + $0x68] sm:$0xf]
      %v2547 = vld [vmem:[#allocation2 + $0x6c] sm:$0xf]
      %v2548 = vld [vmem:[#allocation2 + $0x70] sm:$0xf]
      %v2549 = vld [vmem:[#allocation2 + $0x74] sm:$0xf]
      %v2550 = vld [vmem:[#allocation2 + $0x78] sm:$0xf]
      %v2551 = vld [vmem:[#allocation2 + $0x7c] sm:$0xf]
      %v2552 = vld [vmem:[#allocation2 + $0x80] sm:$0xf]
      %2585 = vrot.lane.b32.xlu0 %v2521, 8
      %v2586 = vpop.permute.xlu0 %2585
      %2587 = vrot.lane.b32.xlu0 %v2522, 8
      %v2588 = vpop.permute.xlu0 %2587
      %2589 = vrot.lane.b32.xlu0 %v2523, 8
      %v2590 = vpop.permute.xlu0 %2589
      %2591 = vrot.lane.b32.xlu0 %v2524, 8
      %v2592 = vpop.permute.xlu0 %2591
      %2593 = vrot.lane.b32.xlu0 %v2525, 8
      %v2594 = vpop.permute.xlu0 %2593
      %2595 = vrot.lane.b32.xlu0 %v2526, 8
      %v2596 = vpop.permute.xlu0 %2595
      %2597 = vrot.lane.b32.xlu0 %v2527, 8
      %v2598 = vpop.permute.xlu0 %2597
      %2599 = vrot.lane.b32.xlu0 %v2528, 8
      %v2600 = vpop.permute.xlu0 %2599
      %2601 = vrot.lane.b32.xlu0 %v2529, 8
      %v2602 = vpop.permute.xlu0 %2601
      %2603 = vrot.lane.b32.xlu0 %v2530, 8
      %v2604 = vpop.permute.xlu0 %2603
      %2605 = vrot.lane.b32.xlu0 %v2531, 8
      %v2606 = vpop.permute.xlu0 %2605
      %2607 = vrot.lane.b32.xlu0 %v2532, 8
      %v2608 = vpop.permute.xlu0 %2607
      %2609 = vrot.lane.b32.xlu0 %v2533, 8
      %v2610 = vpop.permute.xlu0 %2609
      %2611 = vrot.lane.b32.xlu0 %v2534, 8
      %v2612 = vpop.permute.xlu0 %2611
      %2613 = vrot.lane.b32.xlu0 %v2535, 8
      %v2614 = vpop.permute.xlu0 %2613
      %2615 = vrot.lane.b32.xlu0 %v2536, 8
      %v2616 = vpop.permute.xlu0 %2615
      %2617 = vrot.lane.b32.xlu0 %v2537, 8
      %v2618 = vpop.permute.xlu0 %2617
      %2619 = vrot.lane.b32.xlu0 %v2538, 8
      %v2620 = vpop.permute.xlu0 %2619
      %2621 = vrot.lane.b32.xlu0 %v2539, 8
      %v2622 = vpop.permute.xlu0 %2621
      %2623 = vrot.lane.b32.xlu0 %v2540, 8
      %v2624 = vpop.permute.xlu0 %2623
      %2625 = vrot.lane.b32.xlu0 %v2541, 8
      %v2626 = vpop.permute.xlu0 %2625
      %2627 = vrot.lane.b32.xlu0 %v2542, 8
      %v2628 = vpop.permute.xlu0 %2627
      %2629 = vrot.lane.b32.xlu0 %v2543, 8
      %v2630 = vpop.permute.xlu0 %2629
      %2631 = vrot.lane.b32.xlu0 %v2544, 8
      %v2632 = vpop.permute.xlu0 %2631
      %2633 = vrot.lane.b32.xlu0 %v2545, 8
      %v2634 = vpop.permute.xlu0 %2633
      %2635 = vrot.lane.b32.xlu0 %v2546, 8
      %v2636 = vpop.permute.xlu0 %2635
      %2637 = vrot.lane.b32.xlu0 %v2547, 8
      %v2638 = vpop.permute.xlu0 %2637
      %2639 = vrot.lane.b32.xlu0 %v2548, 8
      %v2640 = vpop.permute.xlu0 %2639
      %2641 = vrot.lane.b32.xlu0 %v2549, 8
      %v2642 = vpop.permute.xlu0 %2641
      %2643 = vrot.lane.b32.xlu0 %v2550, 8
      %v2644 = vpop.permute.xlu0 %2643
      %2645 = vrot.lane.b32.xlu0 %v2551, 8
      %v2646 = vpop.permute.xlu0 %2645
      %2647 = vrot.lane.b32.xlu0 %v2552, 8
      %v2648 = vpop.permute.xlu0 %2647
      %vm2681 = vcmask 93248
      %2682 = vst.msk [vmem:[#allocation3] sm:$0xf] %vm2681, %v2586
      %2683 = vst.msk [vmem:[#allocation3 + $0x4] sm:$0xf] %vm2681, %v2588
      %2684 = vst.msk [vmem:[#allocation3 + $0x8] sm:$0xf] %vm2681, %v2590
      %2685 = vst.msk [vmem:[#allocation3 + $0xc] sm:$0xf] %vm2681, %v2592
      %2686 = vst.msk [vmem:[#allocation3 + $0x10] sm:$0xf] %vm2681, %v2594
      %2687 = vst.msk [vmem:[#allocation3 + $0x14] sm:$0xf] %vm2681, %v2596
      %2688 = vst.msk [vmem:[#allocation3 + $0x18] sm:$0xf] %vm2681, %v2598
      %2689 = vst.msk [vmem:[#allocation3 + $0x1c] sm:$0xf] %vm2681, %v2600
      %2690 = vst.msk [vmem:[#allocation3 + $0x20] sm:$0xf] %vm2681, %v2602
      %2691 = vst.msk [vmem:[#allocation3 + $0x24] sm:$0xf] %vm2681, %v2604
      %2692 = vst.msk [vmem:[#allocation3 + $0x28] sm:$0xf] %vm2681, %v2606
      %2693 = vst.msk [vmem:[#allocation3 + $0x2c] sm:$0xf] %vm2681, %v2608
      %2694 = vst.msk [vmem:[#allocation3 + $0x30] sm:$0xf] %vm2681, %v2610
      %2695 = vst.msk [vmem:[#allocation3 + $0x34] sm:$0xf] %vm2681, %v2612
      %2696 = vst.msk [vmem:[#allocation3 + $0x38] sm:$0xf] %vm2681, %v2614
      %2697 = vst.msk [vmem:[#allocation3 + $0x3c] sm:$0xf] %vm2681, %v2616
      %2698 = vst.msk [vmem:[#allocation3 + $0x40] sm:$0xf] %vm2681, %v2618
      %2699 = vst.msk [vmem:[#allocation3 + $0x44] sm:$0xf] %vm2681, %v2620
      %2700 = vst.msk [vmem:[#allocation3 + $0x48] sm:$0xf] %vm2681, %v2622
      %2701 = vst.msk [vmem:[#allocation3 + $0x4c] sm:$0xf] %vm2681, %v2624
      %2702 = vst.msk [vmem:[#allocation3 + $0x50] sm:$0xf] %vm2681, %v2626
      %2703 = vst.msk [vmem:[#allocation3 + $0x54] sm:$0xf] %vm2681, %v2628
      %2704 = vst.msk [vmem:[#allocation3 + $0x58] sm:$0xf] %vm2681, %v2630
      %2705 = vst.msk [vmem:[#allocation3 + $0x5c] sm:$0xf] %vm2681, %v2632
      %2706 = vst.msk [vmem:[#allocation3 + $0x60] sm:$0xf] %vm2681, %v2634
      %2707 = vst.msk [vmem:[#allocation3 + $0x64] sm:$0xf] %vm2681, %v2636
      %2708 = vst.msk [vmem:[#allocation3 + $0x68] sm:$0xf] %vm2681, %v2638
      %2709 = vst.msk [vmem:[#allocation3 + $0x6c] sm:$0xf] %vm2681, %v2640
      %2710 = vst.msk [vmem:[#allocation3 + $0x70] sm:$0xf] %vm2681, %v2642
      %2711 = vst.msk [vmem:[#allocation3 + $0x74] sm:$0xf] %vm2681, %v2644
      %2712 = vst.msk [vmem:[#allocation3 + $0x78] sm:$0xf] %vm2681, %v2646
      %2713 = vst.msk [vmem:[#allocation3 + $0x7c] sm:$0xf] %vm2681, %v2648
      %v2714 = vld [vmem:[#allocation2 + $0x4] sm:$0xf]
      %v2715 = vld [vmem:[#allocation2 + $0x8] sm:$0xf]
      %v2716 = vld [vmem:[#allocation2 + $0xc] sm:$0xf]
      %v2717 = vld [vmem:[#allocation2 + $0x10] sm:$0xf]
      %v2718 = vld [vmem:[#allocation2 + $0x14] sm:$0xf]
      %v2719 = vld [vmem:[#allocation2 + $0x18] sm:$0xf]
      %v2720 = vld [vmem:[#allocation2 + $0x1c] sm:$0xf]
      %v2721 = vld [vmem:[#allocation2 + $0x20] sm:$0xf]
      %v2722 = vld [vmem:[#allocation2 + $0x24] sm:$0xf]
      %v2723 = vld [vmem:[#allocation2 + $0x28] sm:$0xf]
      %v2724 = vld [vmem:[#allocation2 + $0x2c] sm:$0xf]
      %v2725 = vld [vmem:[#allocation2 + $0x30] sm:$0xf]
      %v2726 = vld [vmem:[#allocation2 + $0x34] sm:$0xf]
      %v2727 = vld [vmem:[#allocation2 + $0x38] sm:$0xf]
      %v2728 = vld [vmem:[#allocation2 + $0x3c] sm:$0xf]
      %v2729 = vld [vmem:[#allocation2 + $0x40] sm:$0xf]
      %v2730 = vld [vmem:[#allocation2 + $0x44] sm:$0xf]
      %v2731 = vld [vmem:[#allocation2 + $0x48] sm:$0xf]
      %v2732 = vld [vmem:[#allocation2 + $0x4c] sm:$0xf]
      %v2733 = vld [vmem:[#allocation2 + $0x50] sm:$0xf]
      %v2734 = vld [vmem:[#allocation2 + $0x54] sm:$0xf]
      %v2735 = vld [vmem:[#allocation2 + $0x58] sm:$0xf]
      %v2736 = vld [vmem:[#allocation2 + $0x5c] sm:$0xf]
      %v2737 = vld [vmem:[#allocation2 + $0x60] sm:$0xf]
      %v2738 = vld [vmem:[#allocation2 + $0x64] sm:$0xf]
      %v2739 = vld [vmem:[#allocation2 + $0x68] sm:$0xf]
      %v2740 = vld [vmem:[#allocation2 + $0x6c] sm:$0xf]
      %v2741 = vld [vmem:[#allocation2 + $0x70] sm:$0xf]
      %v2742 = vld [vmem:[#allocation2 + $0x74] sm:$0xf]
      %v2743 = vld [vmem:[#allocation2 + $0x78] sm:$0xf]
      %v2744 = vld [vmem:[#allocation2 + $0x7c] sm:$0xf]
      %v2745 = vld [vmem:[#allocation2 + $0x80] sm:$0xf]
      %v2746 = vld [vmem:[#allocation2 + $0x84] sm:$0x1]
      %v2747 = vsel %vm1485, 1, 0
      %v2748 = vsel %vm1486, 1, 0
      %v2749 = vsel %vm1487, 1, 0
      %v2750 = vsel %vm1488, 1, 0
      %v2751 = vsel %vm1489, 1, 0
      %v2752 = vsel %vm1490, 1, 0
      %v2753 = vsel %vm1491, 1, 0
      %v2754 = vsel %vm1492, 1, 0
      %v2755 = vsel %vm1493, 1, 0
      %v2756 = vsel %vm1494, 1, 0
      %v2757 = vsel %vm1495, 1, 0
      %v2758 = vsel %vm1496, 1, 0
      %v2759 = vsel %vm1497, 1, 0
      %v2760 = vsel %vm1498, 1, 0
      %v2761 = vsel %vm1499, 1, 0
      %v2762 = vsel %vm1500, 1, 0
      %v2763 = vsel %vm1501, 1, 0
      %v2764 = vsel %vm1502, 1, 0
      %v2765 = vsel %vm1503, 1, 0
      %v2766 = vsel %vm1504, 1, 0
      %v2767 = vsel %vm1505, 1, 0
      %v2768 = vsel %vm1506, 1, 0
      %v2769 = vsel %vm1507, 1, 0
      %v2770 = vsel %vm1508, 1, 0
      %v2771 = vsel %vm1509, 1, 0
      %v2772 = vsel %vm1510, 1, 0
      %v2773 = vsel %vm1511, 1, 0
      %v2774 = vsel %vm1512, 1, 0
      %v2775 = vsel %vm1513, 1, 0
      %v2776 = vsel %vm1514, 1, 0
      %v2777 = vsel %vm1515, 1, 0
      %v2778 = vsel %vm1516, 1, 0
      %vm2779 = vcmp.eq.s32.totalorder %v2747, 1
      %vm2780 = vcmp.eq.s32.totalorder %v2748, 1
      %vm2781 = vcmp.eq.s32.totalorder %v2749, 1
      %vm2782 = vcmp.eq.s32.totalorder %v2750, 1
      %vm2783 = vcmp.eq.s32.totalorder %v2751, 1
      %vm2784 = vcmp.eq.s32.totalorder %v2752, 1
      %vm2785 = vcmp.eq.s32.totalorder %v2753, 1
      %vm2786 = vcmp.eq.s32.totalorder %v2754, 1
      %vm2787 = vcmp.eq.s32.totalorder %v2755, 1
      %vm2788 = vcmp.eq.s32.totalorder %v2756, 1
      %vm2789 = vcmp.eq.s32.totalorder %v2757, 1
      %vm2790 = vcmp.eq.s32.totalorder %v2758, 1
      %vm2791 = vcmp.eq.s32.totalorder %v2759, 1
      %vm2792 = vcmp.eq.s32.totalorder %v2760, 1
      %vm2793 = vcmp.eq.s32.totalorder %v2761, 1
      %vm2794 = vcmp.eq.s32.totalorder %v2762, 1
      %vm2795 = vcmp.eq.s32.totalorder %v2763, 1
      %vm2796 = vcmp.eq.s32.totalorder %v2764, 1
      %vm2797 = vcmp.eq.s32.totalorder %v2765, 1
      %vm2798 = vcmp.eq.s32.totalorder %v2766, 1
      %vm2799 = vcmp.eq.s32.totalorder %v2767, 1
      %vm2800 = vcmp.eq.s32.totalorder %v2768, 1
      %vm2801 = vcmp.eq.s32.totalorder %v2769, 1
      %vm2802 = vcmp.eq.s32.totalorder %v2770, 1
      %vm2803 = vcmp.eq.s32.totalorder %v2771, 1
      %vm2804 = vcmp.eq.s32.totalorder %v2772, 1
      %vm2805 = vcmp.eq.s32.totalorder %v2773, 1
      %vm2806 = vcmp.eq.s32.totalorder %v2774, 1
      %vm2807 = vcmp.eq.s32.totalorder %v2775, 1
      %vm2808 = vcmp.eq.s32.totalorder %v2776, 1
      %vm2809 = vcmp.eq.s32.totalorder %v2777, 1
      %vm2810 = vcmp.eq.s32.totalorder %v2778, 1
      %vm2811 = vmpackc.low %vm2779, %vm2779
      %vm2812 = vmpackc.low %vm2780, %vm2780
      %vm2813 = vmpackc.low %vm2781, %vm2781
      %vm2814 = vmpackc.low %vm2782, %vm2782
      %vm2815 = vmpackc.low %vm2783, %vm2783
      %vm2816 = vmpackc.low %vm2784, %vm2784
      %vm2817 = vmpackc.low %vm2785, %vm2785
      %vm2818 = vmpackc.low %vm2786, %vm2786
      %vm2819 = vmpackc.low %vm2787, %vm2787
      %vm2820 = vmpackc.low %vm2788, %vm2788
      %vm2821 = vmpackc.low %vm2789, %vm2789
      %vm2822 = vmpackc.low %vm2790, %vm2790
      %vm2823 = vmpackc.low %vm2791, %vm2791
      %vm2824 = vmpackc.low %vm2792, %vm2792
      %vm2825 = vmpackc.low %vm2793, %vm2793
      %vm2826 = vmpackc.low %vm2794, %vm2794
      %vm2827 = vmpackc.low %vm2795, %vm2795
      %vm2828 = vmpackc.low %vm2796, %vm2796
      %vm2829 = vmpackc.low %vm2797, %vm2797
      %vm2830 = vmpackc.low %vm2798, %vm2798
      %vm2831 = vmpackc.low %vm2799, %vm2799
      %vm2832 = vmpackc.low %vm2800, %vm2800
      %vm2833 = vmpackc.low %vm2801, %vm2801
      %vm2834 = vmpackc.low %vm2802, %vm2802
      %vm2835 = vmpackc.low %vm2803, %vm2803
      %vm2836 = vmpackc.low %vm2804, %vm2804
      %vm2837 = vmpackc.low %vm2805, %vm2805
      %vm2838 = vmpackc.low %vm2806, %vm2806
      %vm2839 = vmpackc.low %vm2807, %vm2807
      %vm2840 = vmpackc.low %vm2808, %vm2808
      %vm2841 = vmpackc.low %vm2809, %vm2809
      %vm2842 = vmpackc.low %vm2810, %vm2810
      %v2843 = vsel %vm2811, 65537, 0
      %v2844 = vsel %vm2812, 65537, 0
      %v2845 = vsel %vm2813, 65537, 0
      %v2846 = vsel %vm2814, 65537, 0
      %v2847 = vsel %vm2815, 65537, 0
      %v2848 = vsel %vm2816, 65537, 0
      %v2849 = vsel %vm2817, 65537, 0
      %v2850 = vsel %vm2818, 65537, 0
      %v2851 = vsel %vm2819, 65537, 0
      %v2852 = vsel %vm2820, 65537, 0
      %v2853 = vsel %vm2821, 65537, 0
      %v2854 = vsel %vm2822, 65537, 0
      %v2855 = vsel %vm2823, 65537, 0
      %v2856 = vsel %vm2824, 65537, 0
      %v2857 = vsel %vm2825, 65537, 0
      %v2858 = vsel %vm2826, 65537, 0
      %v2859 = vsel %vm2827, 65537, 0
      %v2860 = vsel %vm2828, 65537, 0
      %v2861 = vsel %vm2829, 65537, 0
      %v2862 = vsel %vm2830, 65537, 0
      %v2863 = vsel %vm2831, 65537, 0
      %v2864 = vsel %vm2832, 65537, 0
      %v2865 = vsel %vm2833, 65537, 0
      %v2866 = vsel %vm2834, 65537, 0
      %v2867 = vsel %vm2835, 65537, 0
      %v2868 = vsel %vm2836, 65537, 0
      %v2869 = vsel %vm2837, 65537, 0
      %v2870 = vsel %vm2838, 65537, 0
      %v2871 = vsel %vm2839, 65537, 0
      %v2872 = vsel %vm2840, 65537, 0
      %v2873 = vsel %vm2841, 65537, 0
      %v2874 = vsel %vm2842, 65537, 0
      %v2876 = vshrl.u32 %v2843, 16
      %v2878 = vrot.slane %v2876, 7
      %v2879 = vshll.u32 %v2843, 16
      %v2881 = vor.u32 %v2878, %v2879
      %v2882 = vrot.slane %v2878, 4
      %v2884 = vshrl.u32 %v2844, 16
      %v2886 = vrot.slane %v2884, 7
      %v2887 = vshll.u32 %v2844, 16
      %v2889 = vor.u32 %v2886, %v2887
      %v2890 = vsel %vm2099, %v2882, %v2889
      %v2891 = vrot.slane %v2886, 4
      %v2893 = vshrl.u32 %v2845, 16
      %v2895 = vrot.slane %v2893, 7
      %v2896 = vshll.u32 %v2845, 16
      %v2898 = vor.u32 %v2895, %v2896
      %v2899 = vsel %vm2099, %v2891, %v2898
      %v2900 = vrot.slane %v2895, 4
      %v2902 = vshrl.u32 %v2846, 16
      %v2904 = vrot.slane %v2902, 7
      %v2905 = vshll.u32 %v2846, 16
      %v2907 = vor.u32 %v2904, %v2905
      %v2908 = vsel %vm2099, %v2900, %v2907
      %v2909 = vrot.slane %v2904, 4
      %v2911 = vshrl.u32 %v2847, 16
      %v2913 = vrot.slane %v2911, 7
      %v2914 = vshll.u32 %v2847, 16
      %v2916 = vor.u32 %v2913, %v2914
      %v2917 = vsel %vm2099, %v2909, %v2916
      %v2918 = vrot.slane %v2913, 4
      %v2920 = vshrl.u32 %v2848, 16
      %v2922 = vrot.slane %v2920, 7
      %v2923 = vshll.u32 %v2848, 16
      %v2925 = vor.u32 %v2922, %v2923
      %v2926 = vsel %vm2099, %v2918, %v2925
      %v2927 = vrot.slane %v2922, 4
      %v2929 = vshrl.u32 %v2849, 16
      %v2931 = vrot.slane %v2929, 7
      %v2932 = vshll.u32 %v2849, 16
      %v2934 = vor.u32 %v2931, %v2932
      %v2935 = vsel %vm2099, %v2927, %v2934
      %v2936 = vrot.slane %v2931, 4
      %v2938 = vshrl.u32 %v2850, 16
      %v2940 = vrot.slane %v2938, 7
      %v2941 = vshll.u32 %v2850, 16
      %v2943 = vor.u32 %v2940, %v2941
      %v2944 = vsel %vm2099, %v2936, %v2943
      %v2945 = vrot.slane %v2940, 4
      %v2947 = vshrl.u32 %v2851, 16
      %v2949 = vrot.slane %v2947, 7
      %v2950 = vshll.u32 %v2851, 16
      %v2952 = vor.u32 %v2949, %v2950
      %v2953 = vsel %vm2099, %v2945, %v2952
      %v2954 = vrot.slane %v2949, 4
      %v2956 = vshrl.u32 %v2852, 16
      %v2958 = vrot.slane %v2956, 7
      %v2959 = vshll.u32 %v2852, 16
      %v2961 = vor.u32 %v2958, %v2959
      %v2962 = vsel %vm2099, %v2954, %v2961
      %v2963 = vrot.slane %v2958, 4
      %v2965 = vshrl.u32 %v2853, 16
      %v2967 = vrot.slane %v2965, 7
      %v2968 = vshll.u32 %v2853, 16
      %v2970 = vor.u32 %v2967, %v2968
      %v2971 = vsel %vm2099, %v2963, %v2970
      %v2972 = vrot.slane %v2967, 4
      %v2974 = vshrl.u32 %v2854, 16
      %v2976 = vrot.slane %v2974, 7
      %v2977 = vshll.u32 %v2854, 16
      %v2979 = vor.u32 %v2976, %v2977
      %v2980 = vsel %vm2099, %v2972, %v2979
      %v2981 = vrot.slane %v2976, 4
      %v2983 = vshrl.u32 %v2855, 16
      %v2985 = vrot.slane %v2983, 7
      %v2986 = vshll.u32 %v2855, 16
      %v2988 = vor.u32 %v2985, %v2986
      %v2989 = vsel %vm2099, %v2981, %v2988
      %v2990 = vrot.slane %v2985, 4
      %v2992 = vshrl.u32 %v2856, 16
      %v2994 = vrot.slane %v2992, 7
      %v2995 = vshll.u32 %v2856, 16
      %v2997 = vor.u32 %v2994, %v2995
      %v2998 = vsel %vm2099, %v2990, %v2997
      %v2999 = vrot.slane %v2994, 4
      %v3001 = vshrl.u32 %v2857, 16
      %v3003 = vrot.slane %v3001, 7
      %v3004 = vshll.u32 %v2857, 16
      %v3006 = vor.u32 %v3003, %v3004
      %v3007 = vsel %vm2099, %v2999, %v3006
      %v3008 = vrot.slane %v3003, 4
      %v3010 = vshrl.u32 %v2858, 16
      %v3012 = vrot.slane %v3010, 7
      %v3013 = vshll.u32 %v2858, 16
      %v3015 = vor.u32 %v3012, %v3013
      %v3016 = vsel %vm2099, %v3008, %v3015
      %v3017 = vrot.slane %v3012, 4
      %v3019 = vshrl.u32 %v2859, 16
      %v3021 = vrot.slane %v3019, 7
      %v3022 = vshll.u32 %v2859, 16
      %v3024 = vor.u32 %v3021, %v3022
      %v3025 = vsel %vm2099, %v3017, %v3024
      %v3026 = vrot.slane %v3021, 4
      %v3028 = vshrl.u32 %v2860, 16
      %v3030 = vrot.slane %v3028, 7
      %v3031 = vshll.u32 %v2860, 16
      %v3033 = vor.u32 %v3030, %v3031
      %v3034 = vsel %vm2099, %v3026, %v3033
      %v3035 = vrot.slane %v3030, 4
      %v3037 = vshrl.u32 %v2861, 16
      %v3039 = vrot.slane %v3037, 7
      %v3040 = vshll.u32 %v2861, 16
      %v3042 = vor.u32 %v3039, %v3040
      %v3043 = vsel %vm2099, %v3035, %v3042
      %v3044 = vrot.slane %v3039, 4
      %v3046 = vshrl.u32 %v2862, 16
      %v3048 = vrot.slane %v3046, 7
      %v3049 = vshll.u32 %v2862, 16
      %v3051 = vor.u32 %v3048, %v3049
      %v3052 = vsel %vm2099, %v3044, %v3051
      %v3053 = vrot.slane %v3048, 4
      %v3055 = vshrl.u32 %v2863, 16
      %v3057 = vrot.slane %v3055, 7
      %v3058 = vshll.u32 %v2863, 16
      %v3060 = vor.u32 %v3057, %v3058
      %v3061 = vsel %vm2099, %v3053, %v3060
      %v3062 = vrot.slane %v3057, 4
      %v3064 = vshrl.u32 %v2864, 16
      %v3066 = vrot.slane %v3064, 7
      %v3067 = vshll.u32 %v2864, 16
      %v3069 = vor.u32 %v3066, %v3067
      %v3070 = vsel %vm2099, %v3062, %v3069
      %v3071 = vrot.slane %v3066, 4
      %v3073 = vshrl.u32 %v2865, 16
      %v3075 = vrot.slane %v3073, 7
      %v3076 = vshll.u32 %v2865, 16
      %v3078 = vor.u32 %v3075, %v3076
      %v3079 = vsel %vm2099, %v3071, %v3078
      %v3080 = vrot.slane %v3075, 4
      %v3082 = vshrl.u32 %v2866, 16
      %v3084 = vrot.slane %v3082, 7
      %v3085 = vshll.u32 %v2866, 16
      %v3087 = vor.u32 %v3084, %v3085
      %v3088 = vsel %vm2099, %v3080, %v3087
      %v3089 = vrot.slane %v3084, 4
      %v3091 = vshrl.u32 %v2867, 16
      %v3093 = vrot.slane %v3091, 7
      %v3094 = vshll.u32 %v2867, 16
      %v3096 = vor.u32 %v3093, %v3094
      %v3097 = vsel %vm2099, %v3089, %v3096
      %v3098 = vrot.slane %v3093, 4
      %v3100 = vshrl.u32 %v2868, 16
      %v3102 = vrot.slane %v3100, 7
      %v3103 = vshll.u32 %v2868, 16
      %v3105 = vor.u32 %v3102, %v3103
      %v3106 = vsel %vm2099, %v3098, %v3105
      %v3107 = vrot.slane %v3102, 4
      %v3109 = vshrl.u32 %v2869, 16
      %v3111 = vrot.slane %v3109, 7
      %v3112 = vshll.u32 %v2869, 16
      %v3114 = vor.u32 %v3111, %v3112
      %v3115 = vsel %vm2099, %v3107, %v3114
      %v3116 = vrot.slane %v3111, 4
      %v3118 = vshrl.u32 %v2870, 16
      %v3120 = vrot.slane %v3118, 7
      %v3121 = vshll.u32 %v2870, 16
      %v3123 = vor.u32 %v3120, %v3121
      %v3124 = vsel %vm2099, %v3116, %v3123
      %v3125 = vrot.slane %v3120, 4
      %v3127 = vshrl.u32 %v2871, 16
      %v3129 = vrot.slane %v3127, 7
      %v3130 = vshll.u32 %v2871, 16
      %v3132 = vor.u32 %v3129, %v3130
      %v3133 = vsel %vm2099, %v3125, %v3132
      %v3134 = vrot.slane %v3129, 4
      %v3136 = vshrl.u32 %v2872, 16
      %v3138 = vrot.slane %v3136, 7
      %v3139 = vshll.u32 %v2872, 16
      %v3141 = vor.u32 %v3138, %v3139
      %v3142 = vsel %vm2099, %v3134, %v3141
      %v3143 = vrot.slane %v3138, 4
      %v3145 = vshrl.u32 %v2873, 16
      %v3147 = vrot.slane %v3145, 7
      %v3148 = vshll.u32 %v2873, 16
      %v3150 = vor.u32 %v3147, %v3148
      %v3151 = vsel %vm2099, %v3143, %v3150
      %v3152 = vrot.slane %v3147, 4
      %v3154 = vshrl.u32 %v2874, 16
      %v3156 = vrot.slane %v3154, 7
      %v3157 = vshll.u32 %v2874, 16
      %v3159 = vor.u32 %v3156, %v3157
      %v3160 = vsel %vm2099, %v3152, %v3159
      %v3161 = vrot.slane %v3156, 4
      %vm3162 = vcmp.ne.s16.totalorder %v2881, 0
      %vm3163 = vcmp.ne.s16.totalorder %v2890, 0
      %vm3164 = vcmp.ne.s16.totalorder %v2899, 0
      %vm3165 = vcmp.ne.s16.totalorder %v2908, 0
      %vm3166 = vcmp.ne.s16.totalorder %v2917, 0
      %vm3167 = vcmp.ne.s16.totalorder %v2926, 0
      %vm3168 = vcmp.ne.s16.totalorder %v2935, 0
      %vm3169 = vcmp.ne.s16.totalorder %v2944, 0
      %vm3170 = vcmp.ne.s16.totalorder %v2953, 0
      %vm3171 = vcmp.ne.s16.totalorder %v2962, 0
      %vm3172 = vcmp.ne.s16.totalorder %v2971, 0
      %vm3173 = vcmp.ne.s16.totalorder %v2980, 0
      %vm3174 = vcmp.ne.s16.totalorder %v2989, 0
      %vm3175 = vcmp.ne.s16.totalorder %v2998, 0
      %vm3176 = vcmp.ne.s16.totalorder %v3007, 0
      %vm3177 = vcmp.ne.s16.totalorder %v3016, 0
      %vm3178 = vcmp.ne.s16.totalorder %v3025, 0
      %vm3179 = vcmp.ne.s16.totalorder %v3034, 0
      %vm3180 = vcmp.ne.s16.totalorder %v3043, 0
      %vm3181 = vcmp.ne.s16.totalorder %v3052, 0
      %vm3182 = vcmp.ne.s16.totalorder %v3061, 0
      %vm3183 = vcmp.ne.s16.totalorder %v3070, 0
      %vm3184 = vcmp.ne.s16.totalorder %v3079, 0
      %vm3185 = vcmp.ne.s16.totalorder %v3088, 0
      %vm3186 = vcmp.ne.s16.totalorder %v3097, 0
      %vm3187 = vcmp.ne.s16.totalorder %v3106, 0
      %vm3188 = vcmp.ne.s16.totalorder %v3115, 0
      %vm3189 = vcmp.ne.s16.totalorder %v3124, 0
      %vm3190 = vcmp.ne.s16.totalorder %v3133, 0
      %vm3191 = vcmp.ne.s16.totalorder %v3142, 0
      %vm3192 = vcmp.ne.s16.totalorder %v3151, 0
      %vm3193 = vcmp.ne.s16.totalorder %v3160, 0
      %vm3194 = vcmp.ne.s16.totalorder %v3161, 0
      %v3195 = vsel %vm3162, %v2714, 0
      %v3196 = vsel %vm3163, %v2715, 0
      %v3197 = vsel %vm3164, %v2716, 0
      %v3198 = vsel %vm3165, %v2717, 0
      %v3199 = vsel %vm3166, %v2718, 0
      %v3200 = vsel %vm3167, %v2719, 0
      %v3201 = vsel %vm3168, %v2720, 0
      %v3202 = vsel %vm3169, %v2721, 0
      %v3203 = vsel %vm3170, %v2722, 0
      %v3204 = vsel %vm3171, %v2723, 0
      %v3205 = vsel %vm3172, %v2724, 0
      %v3206 = vsel %vm3173, %v2725, 0
      %v3207 = vsel %vm3174, %v2726, 0
      %v3208 = vsel %vm3175, %v2727, 0
      %v3209 = vsel %vm3176, %v2728, 0
      %v3210 = vsel %vm3177, %v2729, 0
      %v3211 = vsel %vm3178, %v2730, 0
      %v3212 = vsel %vm3179, %v2731, 0
      %v3213 = vsel %vm3180, %v2732, 0
      %v3214 = vsel %vm3181, %v2733, 0
      %v3215 = vsel %vm3182, %v2734, 0
      %v3216 = vsel %vm3183, %v2735, 0
      %v3217 = vsel %vm3184, %v2736, 0
      %v3218 = vsel %vm3185, %v2737, 0
      %v3219 = vsel %vm3186, %v2738, 0
      %v3220 = vsel %vm3187, %v2739, 0
      %v3221 = vsel %vm3188, %v2740, 0
      %v3222 = vsel %vm3189, %v2741, 0
      %v3223 = vsel %vm3190, %v2742, 0
      %v3224 = vsel %vm3191, %v2743, 0
      %v3225 = vsel %vm3192, %v2744, 0
      %v3226 = vsel %vm3193, %v2745, 0
      %v3227 = vsel %vm3194, %v2746, 0
      %v3229 = vshrl.u32 %v3195, 16
      %v3231 = vrot.slane %v3229, 4
      %v3232 = vshll.u32 %v3195, 16
      %v3234 = vrot.slane %v3232, 5
      %v3235 = vor.u32 %v3231, %v3234
      %v3236 = vrot.slane %v3235, 4
      %v3238 = vshll.u32 %v3196, 16
      %v3240 = vrot.slane %v3238, 5
      %v3241 = vsel %vm1712, %v3236, %v3240
      %v3242 = vshrl.u32 %v3196, 16
      %v3244 = vrot.slane %v3242, 4
      %v3245 = vor.u32 %v3244, %v3240
      %v3246 = vrot.slane %v3245, 4
      %v3248 = vshll.u32 %v3197, 16
      %v3250 = vrot.slane %v3248, 5
      %v3251 = vsel %vm1712, %v3246, %v3250
      %v3252 = vshrl.u32 %v3197, 16
      %v3254 = vrot.slane %v3252, 4
      %v3255 = vor.u32 %v3254, %v3250
      %v3256 = vrot.slane %v3255, 4
      %v3258 = vshll.u32 %v3198, 16
      %v3260 = vrot.slane %v3258, 5
      %v3261 = vsel %vm1712, %v3256, %v3260
      %v3262 = vshrl.u32 %v3198, 16
      %v3264 = vrot.slane %v3262, 4
      %v3265 = vor.u32 %v3264, %v3260
      %v3266 = vrot.slane %v3265, 4
      %v3268 = vshll.u32 %v3199, 16
      %v3270 = vrot.slane %v3268, 5
      %v3271 = vsel %vm1712, %v3266, %v3270
      %v3272 = vshrl.u32 %v3199, 16
      %v3274 = vrot.slane %v3272, 4
      %v3275 = vor.u32 %v3274, %v3270
      %v3276 = vrot.slane %v3275, 4
      %v3278 = vshll.u32 %v3200, 16
      %v3280 = vrot.slane %v3278, 5
      %v3281 = vsel %vm1712, %v3276, %v3280
      %v3282 = vshrl.u32 %v3200, 16
      %v3284 = vrot.slane %v3282, 4
      %v3285 = vor.u32 %v3284, %v3280
      %v3286 = vrot.slane %v3285, 4
      %v3288 = vshll.u32 %v3201, 16
      %v3290 = vrot.slane %v3288, 5
      %v3291 = vsel %vm1712, %v3286, %v3290
      %v3292 = vshrl.u32 %v3201, 16
      %v3294 = vrot.slane %v3292, 4
      %v3295 = vor.u32 %v3294, %v3290
      %v3296 = vrot.slane %v3295, 4
      %v3298 = vshll.u32 %v3202, 16
      %v3300 = vrot.slane %v3298, 5
      %v3301 = vsel %vm1712, %v3296, %v3300
      %v3302 = vshrl.u32 %v3202, 16
      %v3304 = vrot.slane %v3302, 4
      %v3305 = vor.u32 %v3304, %v3300
      %v3306 = vrot.slane %v3305, 4
      %v3308 = vshll.u32 %v3203, 16
      %v3310 = vrot.slane %v3308, 5
      %v3311 = vsel %vm1712, %v3306, %v3310
      %v3312 = vshrl.u32 %v3203, 16
      %v3314 = vrot.slane %v3312, 4
      %v3315 = vor.u32 %v3314, %v3310
      %v3316 = vrot.slane %v3315, 4
      %v3318 = vshll.u32 %v3204, 16
      %v3320 = vrot.slane %v3318, 5
      %v3321 = vsel %vm1712, %v3316, %v3320
      %v3322 = vshrl.u32 %v3204, 16
      %v3324 = vrot.slane %v3322, 4
      %v3325 = vor.u32 %v3324, %v3320
      %v3326 = vrot.slane %v3325, 4
      %v3328 = vshll.u32 %v3205, 16
      %v3330 = vrot.slane %v3328, 5
      %v3331 = vsel %vm1712, %v3326, %v3330
      %v3332 = vshrl.u32 %v3205, 16
      %v3334 = vrot.slane %v3332, 4
      %v3335 = vor.u32 %v3334, %v3330
      %v3336 = vrot.slane %v3335, 4
      %v3338 = vshll.u32 %v3206, 16
      %v3340 = vrot.slane %v3338, 5
      %v3341 = vsel %vm1712, %v3336, %v3340
      %v3342 = vshrl.u32 %v3206, 16
      %v3344 = vrot.slane %v3342, 4
      %v3345 = vor.u32 %v3344, %v3340
      %v3346 = vrot.slane %v3345, 4
      %v3348 = vshll.u32 %v3207, 16
      %v3350 = vrot.slane %v3348, 5
      %v3351 = vsel %vm1712, %v3346, %v3350
      %v3352 = vshrl.u32 %v3207, 16
      %v3354 = vrot.slane %v3352, 4
      %v3355 = vor.u32 %v3354, %v3350
      %v3356 = vrot.slane %v3355, 4
      %v3358 = vshll.u32 %v3208, 16
      %v3360 = vrot.slane %v3358, 5
      %v3361 = vsel %vm1712, %v3356, %v3360
      %v3362 = vshrl.u32 %v3208, 16
      %v3364 = vrot.slane %v3362, 4
      %v3365 = vor.u32 %v3364, %v3360
      %v3366 = vrot.slane %v3365, 4
      %v3368 = vshll.u32 %v3209, 16
      %v3370 = vrot.slane %v3368, 5
      %v3371 = vsel %vm1712, %v3366, %v3370
      %v3372 = vshrl.u32 %v3209, 16
      %v3374 = vrot.slane %v3372, 4
      %v3375 = vor.u32 %v3374, %v3370
      %v3376 = vrot.slane %v3375, 4
      %v3378 = vshll.u32 %v3210, 16
      %v3380 = vrot.slane %v3378, 5
      %v3381 = vsel %vm1712, %v3376, %v3380
      %v3382 = vshrl.u32 %v3210, 16
      %v3384 = vrot.slane %v3382, 4
      %v3385 = vor.u32 %v3384, %v3380
      %v3386 = vrot.slane %v3385, 4
      %v3388 = vshll.u32 %v3211, 16
      %v3390 = vrot.slane %v3388, 5
      %v3391 = vsel %vm1712, %v3386, %v3390
      %v3392 = vshrl.u32 %v3211, 16
      %v3394 = vrot.slane %v3392, 4
      %v3395 = vor.u32 %v3394, %v3390
      %v3396 = vrot.slane %v3395, 4
      %v3398 = vshll.u32 %v3212, 16
      %v3400 = vrot.slane %v3398, 5
      %v3401 = vsel %vm1712, %v3396, %v3400
      %v3402 = vshrl.u32 %v3212, 16
      %v3404 = vrot.slane %v3402, 4
      %v3405 = vor.u32 %v3404, %v3400
      %v3406 = vrot.slane %v3405, 4
      %v3408 = vshll.u32 %v3213, 16
      %v3410 = vrot.slane %v3408, 5
      %v3411 = vsel %vm1712, %v3406, %v3410
      %v3412 = vshrl.u32 %v3213, 16
      %v3414 = vrot.slane %v3412, 4
      %v3415 = vor.u32 %v3414, %v3410
      %v3416 = vrot.slane %v3415, 4
      %v3418 = vshll.u32 %v3214, 16
      %v3420 = vrot.slane %v3418, 5
      %v3421 = vsel %vm1712, %v3416, %v3420
      %v3422 = vshrl.u32 %v3214, 16
      %v3424 = vrot.slane %v3422, 4
      %v3425 = vor.u32 %v3424, %v3420
      %v3426 = vrot.slane %v3425, 4
      %v3428 = vshll.u32 %v3215, 16
      %v3430 = vrot.slane %v3428, 5
      %v3431 = vsel %vm1712, %v3426, %v3430
      %v3432 = vshrl.u32 %v3215, 16
      %v3434 = vrot.slane %v3432, 4
      %v3435 = vor.u32 %v3434, %v3430
      %v3436 = vrot.slane %v3435, 4
      %v3438 = vshll.u32 %v3216, 16
      %v3440 = vrot.slane %v3438, 5
      %v3441 = vsel %vm1712, %v3436, %v3440
      %v3442 = vshrl.u32 %v3216, 16
      %v3444 = vrot.slane %v3442, 4
      %v3445 = vor.u32 %v3444, %v3440
      %v3446 = vrot.slane %v3445, 4
      %v3448 = vshll.u32 %v3217, 16
      %v3450 = vrot.slane %v3448, 5
      %v3451 = vsel %vm1712, %v3446, %v3450
      %v3452 = vshrl.u32 %v3217, 16
      %v3454 = vrot.slane %v3452, 4
      %v3455 = vor.u32 %v3454, %v3450
      %v3456 = vrot.slane %v3455, 4
      %v3458 = vshll.u32 %v3218, 16
      %v3460 = vrot.slane %v3458, 5
      %v3461 = vsel %vm1712, %v3456, %v3460
      %v3462 = vshrl.u32 %v3218, 16
      %v3464 = vrot.slane %v3462, 4
      %v3465 = vor.u32 %v3464, %v3460
      %v3466 = vrot.slane %v3465, 4
      %v3468 = vshll.u32 %v3219, 16
      %v3470 = vrot.slane %v3468, 5
      %v3471 = vsel %vm1712, %v3466, %v3470
      %v3472 = vshrl.u32 %v3219, 16
      %v3474 = vrot.slane %v3472, 4
      %v3475 = vor.u32 %v3474, %v3470
      %v3476 = vrot.slane %v3475, 4
      %v3478 = vshll.u32 %v3220, 16
      %v3480 = vrot.slane %v3478, 5
      %v3481 = vsel %vm1712, %v3476, %v3480
      %v3482 = vshrl.u32 %v3220, 16
      %v3484 = vrot.slane %v3482, 4
      %v3485 = vor.u32 %v3484, %v3480
      %v3486 = vrot.slane %v3485, 4
      %v3488 = vshll.u32 %v3221, 16
      %v3490 = vrot.slane %v3488, 5
      %v3491 = vsel %vm1712, %v3486, %v3490
      %v3492 = vshrl.u32 %v3221, 16
      %v3494 = vrot.slane %v3492, 4
      %v3495 = vor.u32 %v3494, %v3490
      %v3496 = vrot.slane %v3495, 4
      %v3498 = vshll.u32 %v3222, 16
      %v3500 = vrot.slane %v3498, 5
      %v3501 = vsel %vm1712, %v3496, %v3500
      %v3502 = vshrl.u32 %v3222, 16
      %v3504 = vrot.slane %v3502, 4
      %v3505 = vor.u32 %v3504, %v3500
      %v3506 = vrot.slane %v3505, 4
      %v3508 = vshll.u32 %v3223, 16
      %v3510 = vrot.slane %v3508, 5
      %v3511 = vsel %vm1712, %v3506, %v3510
      %v3512 = vshrl.u32 %v3223, 16
      %v3514 = vrot.slane %v3512, 4
      %v3515 = vor.u32 %v3514, %v3510
      %v3516 = vrot.slane %v3515, 4
      %v3518 = vshll.u32 %v3224, 16
      %v3520 = vrot.slane %v3518, 5
      %v3521 = vsel %vm1712, %v3516, %v3520
      %v3522 = vshrl.u32 %v3224, 16
      %v3524 = vrot.slane %v3522, 4
      %v3525 = vor.u32 %v3524, %v3520
      %v3526 = vrot.slane %v3525, 4
      %v3528 = vshll.u32 %v3225, 16
      %v3530 = vrot.slane %v3528, 5
      %v3531 = vsel %vm1712, %v3526, %v3530
      %v3532 = vshrl.u32 %v3225, 16
      %v3534 = vrot.slane %v3532, 4
      %v3535 = vor.u32 %v3534, %v3530
      %v3536 = vrot.slane %v3535, 4
      %v3538 = vshll.u32 %v3226, 16
      %v3540 = vrot.slane %v3538, 5
      %v3541 = vsel %vm1712, %v3536, %v3540
      %v3542 = vshrl.u32 %v3226, 16
      %v3544 = vrot.slane %v3542, 4
      %v3545 = vor.u32 %v3544, %v3540
      %v3546 = vrot.slane %v3545, 4
      %v3548 = vshll.u32 %v3227, 16
      %v3550 = vrot.slane %v3548, 5
      %v3551 = vsel %vm1712, %v3546, %v3550
      %3552 = vrot.lane.b32.xlu0 %v3241, 12
      %v3553 = vpop.permute.xlu0 %3552
      %3554 = vrot.lane.b32.xlu0 %v3251, 12
      %v3555 = vpop.permute.xlu0 %3554
      %3556 = vrot.lane.b32.xlu0 %v3261, 12
      %v3557 = vpop.permute.xlu0 %3556
      %3558 = vrot.lane.b32.xlu0 %v3271, 12
      %v3559 = vpop.permute.xlu0 %3558
      %3560 = vrot.lane.b32.xlu0 %v3281, 12
      %v3561 = vpop.permute.xlu0 %3560
      %3562 = vrot.lane.b32.xlu0 %v3291, 12
      %v3563 = vpop.permute.xlu0 %3562
      %3564 = vrot.lane.b32.xlu0 %v3301, 12
      %v3565 = vpop.permute.xlu0 %3564
      %3566 = vrot.lane.b32.xlu0 %v3311, 12
      %v3567 = vpop.permute.xlu0 %3566
      %3568 = vrot.lane.b32.xlu0 %v3321, 12
      %v3569 = vpop.permute.xlu0 %3568
      %3570 = vrot.lane.b32.xlu0 %v3331, 12
      %v3571 = vpop.permute.xlu0 %3570
      %3572 = vrot.lane.b32.xlu0 %v3341, 12
      %v3573 = vpop.permute.xlu0 %3572
      %3574 = vrot.lane.b32.xlu0 %v3351, 12
      %v3575 = vpop.permute.xlu0 %3574
      %3576 = vrot.lane.b32.xlu0 %v3361, 12
      %v3577 = vpop.permute.xlu0 %3576
      %3578 = vrot.lane.b32.xlu0 %v3371, 12
      %v3579 = vpop.permute.xlu0 %3578
      %3580 = vrot.lane.b32.xlu0 %v3381, 12
      %v3581 = vpop.permute.xlu0 %3580
      %3582 = vrot.lane.b32.xlu0 %v3391, 12
      %v3583 = vpop.permute.xlu0 %3582
      %3584 = vrot.lane.b32.xlu0 %v3401, 12
      %v3585 = vpop.permute.xlu0 %3584
      %3586 = vrot.lane.b32.xlu0 %v3411, 12
      %v3587 = vpop.permute.xlu0 %3586
      %3588 = vrot.lane.b32.xlu0 %v3421, 12
      %v3589 = vpop.permute.xlu0 %3588
      %3590 = vrot.lane.b32.xlu0 %v3431, 12
      %v3591 = vpop.permute.xlu0 %3590
      %3592 = vrot.lane.b32.xlu0 %v3441, 12
      %v3593 = vpop.permute.xlu0 %3592
      %3594 = vrot.lane.b32.xlu0 %v3451, 12
      %v3595 = vpop.permute.xlu0 %3594
      %3596 = vrot.lane.b32.xlu0 %v3461, 12
      %v3597 = vpop.permute.xlu0 %3596
      %3598 = vrot.lane.b32.xlu0 %v3471, 12
      %v3599 = vpop.permute.xlu0 %3598
      %3600 = vrot.lane.b32.xlu0 %v3481, 12
      %v3601 = vpop.permute.xlu0 %3600
      %3602 = vrot.lane.b32.xlu0 %v3491, 12
      %v3603 = vpop.permute.xlu0 %3602
      %3604 = vrot.lane.b32.xlu0 %v3501, 12
      %v3605 = vpop.permute.xlu0 %3604
      %3606 = vrot.lane.b32.xlu0 %v3511, 12
      %v3607 = vpop.permute.xlu0 %3606
      %3608 = vrot.lane.b32.xlu0 %v3521, 12
      %v3609 = vpop.permute.xlu0 %3608
      %3610 = vrot.lane.b32.xlu0 %v3531, 12
      %v3611 = vpop.permute.xlu0 %3610
      %3612 = vrot.lane.b32.xlu0 %v3541, 12
      %v3613 = vpop.permute.xlu0 %3612
      %3614 = vrot.lane.b32.xlu0 %v3551, 12
      %v3615 = vpop.permute.xlu0 %3614
      %vm3648 = vcmask 126048
      %3649 = vst.msk [vmem:[#allocation3] sm:$0xf] %vm3648, %v3553
      %3650 = vst.msk [vmem:[#allocation3 + $0x4] sm:$0xf] %vm3648, %v3555
      %3651 = vst.msk [vmem:[#allocation3 + $0x8] sm:$0xf] %vm3648, %v3557
      %3652 = vst.msk [vmem:[#allocation3 + $0xc] sm:$0xf] %vm3648, %v3559
      %3653 = vst.msk [vmem:[#allocation3 + $0x10] sm:$0xf] %vm3648, %v3561
      %3654 = vst.msk [vmem:[#allocation3 + $0x14] sm:$0xf] %vm3648, %v3563
      %3655 = vst.msk [vmem:[#allocation3 + $0x18] sm:$0xf] %vm3648, %v3565
      %3656 = vst.msk [vmem:[#allocation3 + $0x1c] sm:$0xf] %vm3648, %v3567
      %3657 = vst.msk [vmem:[#allocation3 + $0x20] sm:$0xf] %vm3648, %v3569
      %3658 = vst.msk [vmem:[#allocation3 + $0x24] sm:$0xf] %vm3648, %v3571
      %3659 = vst.msk [vmem:[#allocation3 + $0x28] sm:$0xf] %vm3648, %v3573
      %3660 = vst.msk [vmem:[#allocation3 + $0x2c] sm:$0xf] %vm3648, %v3575
      %3661 = vst.msk [vmem:[#allocation3 + $0x30] sm:$0xf] %vm3648, %v3577
      %3662 = vst.msk [vmem:[#allocation3 + $0x34] sm:$0xf] %vm3648, %v3579
      %3663 = vst.msk [vmem:[#allocation3 + $0x38] sm:$0xf] %vm3648, %v3581
      %3664 = vst.msk [vmem:[#allocation3 + $0x3c] sm:$0xf] %vm3648, %v3583
      %3665 = vst.msk [vmem:[#allocation3 + $0x40] sm:$0xf] %vm3648, %v3585
      %3666 = vst.msk [vmem:[#allocation3 + $0x44] sm:$0xf] %vm3648, %v3587
      %3667 = vst.msk [vmem:[#allocation3 + $0x48] sm:$0xf] %vm3648, %v3589
      %3668 = vst.msk [vmem:[#allocation3 + $0x4c] sm:$0xf] %vm3648, %v3591
      %3669 = vst.msk [vmem:[#allocation3 + $0x50] sm:$0xf] %vm3648, %v3593
      %3670 = vst.msk [vmem:[#allocation3 + $0x54] sm:$0xf] %vm3648, %v3595
      %3671 = vst.msk [vmem:[#allocation3 + $0x58] sm:$0xf] %vm3648, %v3597
      %3672 = vst.msk [vmem:[#allocation3 + $0x5c] sm:$0xf] %vm3648, %v3599
      %3673 = vst.msk [vmem:[#allocation3 + $0x60] sm:$0xf] %vm3648, %v3601
      %3674 = vst.msk [vmem:[#allocation3 + $0x64] sm:$0xf] %vm3648, %v3603
      %3675 = vst.msk [vmem:[#allocation3 + $0x68] sm:$0xf] %vm3648, %v3605
      %3676 = vst.msk [vmem:[#allocation3 + $0x6c] sm:$0xf] %vm3648, %v3607
      %3677 = vst.msk [vmem:[#allocation3 + $0x70] sm:$0xf] %vm3648, %v3609
      %3678 = vst.msk [vmem:[#allocation3 + $0x74] sm:$0xf] %vm3648, %v3611
      %3679 = vst.msk [vmem:[#allocation3 + $0x78] sm:$0xf] %vm3648, %v3613
      %3680 = vst.msk [vmem:[#allocation3 + $0x7c] sm:$0xf] %vm3648, %v3615
      %v3681 = vld [vmem:[#allocation2 + $0x8] sm:$0x8]
      %v3682 = vld [vmem:[#allocation2 + $0xc] sm:$0xf]
      %v3683 = vld [vmem:[#allocation2 + $0x10] sm:$0xf]
      %v3684 = vld [vmem:[#allocation2 + $0x14] sm:$0xf]
      %v3685 = vld [vmem:[#allocation2 + $0x18] sm:$0xf]
      %v3686 = vld [vmem:[#allocation2 + $0x1c] sm:$0xf]
      %v3687 = vld [vmem:[#allocation2 + $0x20] sm:$0xf]
      %v3688 = vld [vmem:[#allocation2 + $0x24] sm:$0xf]
      %v3689 = vld [vmem:[#allocation2 + $0x28] sm:$0xf]
      %v3690 = vld [vmem:[#allocation2 + $0x2c] sm:$0xf]
      %v3691 = vld [vmem:[#allocation2 + $0x30] sm:$0xf]
      %v3692 = vld [vmem:[#allocation2 + $0x34] sm:$0xf]
      %v3693 = vld [vmem:[#allocation2 + $0x38] sm:$0xf]
      %v3694 = vld [vmem:[#allocation2 + $0x3c] sm:$0xf]
      %v3695 = vld [vmem:[#allocation2 + $0x40] sm:$0xf]
      %v3696 = vld [vmem:[#allocation2 + $0x44] sm:$0xf]
      %v3697 = vld [vmem:[#allocation2 + $0x48] sm:$0xf]
      %v3698 = vld [vmem:[#allocation2 + $0x4c] sm:$0xf]
      %v3699 = vld [vmem:[#allocation2 + $0x50] sm:$0xf]
      %v3700 = vld [vmem:[#allocation2 + $0x54] sm:$0xf]
      %v3701 = vld [vmem:[#allocation2 + $0x58] sm:$0xf]
      %v3702 = vld [vmem:[#allocation2 + $0x5c] sm:$0xf]
      %v3703 = vld [vmem:[#allocation2 + $0x60] sm:$0xf]
      %v3704 = vld [vmem:[#allocation2 + $0x64] sm:$0xf]
      %v3705 = vld [vmem:[#allocation2 + $0x68] sm:$0xf]
      %v3706 = vld [vmem:[#allocation2 + $0x6c] sm:$0xf]
      %v3707 = vld [vmem:[#allocation2 + $0x70] sm:$0xf]
      %v3708 = vld [vmem:[#allocation2 + $0x74] sm:$0xf]
      %v3709 = vld [vmem:[#allocation2 + $0x78] sm:$0xf]
      %v3710 = vld [vmem:[#allocation2 + $0x7c] sm:$0xf]
      %v3711 = vld [vmem:[#allocation2 + $0x80] sm:$0xf]
      %v3712 = vld [vmem:[#allocation2 + $0x84] sm:$0xf]
      %v3713 = vld [vmem:[#allocation2 + $0x88] sm:$0xf]
      %v3714 = vsel %vm2032, %v3681, 0
      %v3715 = vsel %vm2033, %v3682, 0
      %v3716 = vsel %vm2034, %v3683, 0
      %v3717 = vsel %vm2035, %v3684, 0
      %v3718 = vsel %vm2036, %v3685, 0
      %v3719 = vsel %vm2037, %v3686, 0
      %v3720 = vsel %vm2038, %v3687, 0
      %v3721 = vsel %vm2039, %v3688, 0
      %v3722 = vsel %vm2040, %v3689, 0
      %v3723 = vsel %vm2041, %v3690, 0
      %v3724 = vsel %vm2042, %v3691, 0
      %v3725 = vsel %vm2043, %v3692, 0
      %v3726 = vsel %vm2044, %v3693, 0
      %v3727 = vsel %vm2045, %v3694, 0
      %v3728 = vsel %vm2046, %v3695, 0
      %v3729 = vsel %vm2047, %v3696, 0
      %v3730 = vsel %vm2048, %v3697, 0
      %v3731 = vsel %vm2049, %v3698, 0
      %v3732 = vsel %vm2050, %v3699, 0
      %v3733 = vsel %vm2051, %v3700, 0
      %v3734 = vsel %vm2052, %v3701, 0
      %v3735 = vsel %vm2053, %v3702, 0
      %v3736 = vsel %vm2054, %v3703, 0
      %v3737 = vsel %vm2055, %v3704, 0
      %v3738 = vsel %vm2056, %v3705, 0
      %v3739 = vsel %vm2057, %v3706, 0
      %v3740 = vsel %vm2058, %v3707, 0
      %v3741 = vsel %vm2059, %v3708, 0
      %v3742 = vsel %vm2060, %v3709, 0
      %v3743 = vsel %vm2061, %v3710, 0
      %v3744 = vsel %vm2062, %v3711, 0
      %v3745 = vsel %vm2063, %v3712, 0
      %v3746 = vsel %vm2064, %v3713, 0
      %v3748 = vshrl.u32 %v3714, 16
      %v3750 = vrot.slane %v3748, 7
      %v3751 = vrot.slane %v3750, 4
      %v3753 = vshrl.u32 %v3715, 16
      %v3755 = vrot.slane %v3753, 7
      %v3756 = vshll.u32 %v3715, 16
      %v3758 = vor.u32 %v3755, %v3756
      %v3759 = vsel %vm2099, %v3751, %v3758
      %v3760 = vrot.slane %v3755, 4
      %v3762 = vshrl.u32 %v3716, 16
      %v3764 = vrot.slane %v3762, 7
      %v3765 = vshll.u32 %v3716, 16
      %v3767 = vor.u32 %v3764, %v3765
      %v3768 = vsel %vm2099, %v3760, %v3767
      %v3769 = vrot.slane %v3764, 4
      %v3771 = vshrl.u32 %v3717, 16
      %v3773 = vrot.slane %v3771, 7
      %v3774 = vshll.u32 %v3717, 16
      %v3776 = vor.u32 %v3773, %v3774
      %v3777 = vsel %vm2099, %v3769, %v3776
      %v3778 = vrot.slane %v3773, 4
      %v3780 = vshrl.u32 %v3718, 16
      %v3782 = vrot.slane %v3780, 7
      %v3783 = vshll.u32 %v3718, 16
      %v3785 = vor.u32 %v3782, %v3783
      %v3786 = vsel %vm2099, %v3778, %v3785
      %v3787 = vrot.slane %v3782, 4
      %v3789 = vshrl.u32 %v3719, 16
      %v3791 = vrot.slane %v3789, 7
      %v3792 = vshll.u32 %v3719, 16
      %v3794 = vor.u32 %v3791, %v3792
      %v3795 = vsel %vm2099, %v3787, %v3794
      %v3796 = vrot.slane %v3791, 4
      %v3798 = vshrl.u32 %v3720, 16
      %v3800 = vrot.slane %v3798, 7
      %v3801 = vshll.u32 %v3720, 16
      %v3803 = vor.u32 %v3800, %v3801
      %v3804 = vsel %vm2099, %v3796, %v3803
      %v3805 = vrot.slane %v3800, 4
      %v3807 = vshrl.u32 %v3721, 16
      %v3809 = vrot.slane %v3807, 7
      %v3810 = vshll.u32 %v3721, 16
      %v3812 = vor.u32 %v3809, %v3810
      %v3813 = vsel %vm2099, %v3805, %v3812
      %v3814 = vrot.slane %v3809, 4
      %v3816 = vshrl.u32 %v3722, 16
      %v3818 = vrot.slane %v3816, 7
      %v3819 = vshll.u32 %v3722, 16
      %v3821 = vor.u32 %v3818, %v3819
      %v3822 = vsel %vm2099, %v3814, %v3821
      %v3823 = vrot.slane %v3818, 4
      %v3825 = vshrl.u32 %v3723, 16
      %v3827 = vrot.slane %v3825, 7
      %v3828 = vshll.u32 %v3723, 16
      %v3830 = vor.u32 %v3827, %v3828
      %v3831 = vsel %vm2099, %v3823, %v3830
      %v3832 = vrot.slane %v3827, 4
      %v3834 = vshrl.u32 %v3724, 16
      %v3836 = vrot.slane %v3834, 7
      %v3837 = vshll.u32 %v3724, 16
      %v3839 = vor.u32 %v3836, %v3837
      %v3840 = vsel %vm2099, %v3832, %v3839
      %v3841 = vrot.slane %v3836, 4
      %v3843 = vshrl.u32 %v3725, 16
      %v3845 = vrot.slane %v3843, 7
      %v3846 = vshll.u32 %v3725, 16
      %v3848 = vor.u32 %v3845, %v3846
      %v3849 = vsel %vm2099, %v3841, %v3848
      %v3850 = vrot.slane %v3845, 4
      %v3852 = vshrl.u32 %v3726, 16
      %v3854 = vrot.slane %v3852, 7
      %v3855 = vshll.u32 %v3726, 16
      %v3857 = vor.u32 %v3854, %v3855
      %v3858 = vsel %vm2099, %v3850, %v3857
      %v3859 = vrot.slane %v3854, 4
      %v3861 = vshrl.u32 %v3727, 16
      %v3863 = vrot.slane %v3861, 7
      %v3864 = vshll.u32 %v3727, 16
      %v3866 = vor.u32 %v3863, %v3864
      %v3867 = vsel %vm2099, %v3859, %v3866
      %v3868 = vrot.slane %v3863, 4
      %v3870 = vshrl.u32 %v3728, 16
      %v3872 = vrot.slane %v3870, 7
      %v3873 = vshll.u32 %v3728, 16
      %v3875 = vor.u32 %v3872, %v3873
      %v3876 = vsel %vm2099, %v3868, %v3875
      %v3877 = vrot.slane %v3872, 4
      %v3879 = vshrl.u32 %v3729, 16
      %v3881 = vrot.slane %v3879, 7
      %v3882 = vshll.u32 %v3729, 16
      %v3884 = vor.u32 %v3881, %v3882
      %v3885 = vsel %vm2099, %v3877, %v3884
      %v3886 = vrot.slane %v3881, 4
      %v3888 = vshrl.u32 %v3730, 16
      %v3890 = vrot.slane %v3888, 7
      %v3891 = vshll.u32 %v3730, 16
      %v3893 = vor.u32 %v3890, %v3891
      %v3894 = vsel %vm2099, %v3886, %v3893
      %v3895 = vrot.slane %v3890, 4
      %v3897 = vshrl.u32 %v3731, 16
      %v3899 = vrot.slane %v3897, 7
      %v3900 = vshll.u32 %v3731, 16
      %v3902 = vor.u32 %v3899, %v3900
      %v3903 = vsel %vm2099, %v3895, %v3902
      %v3904 = vrot.slane %v3899, 4
      %v3906 = vshrl.u32 %v3732, 16
      %v3908 = vrot.slane %v3906, 7
      %v3909 = vshll.u32 %v3732, 16
      %v3911 = vor.u32 %v3908, %v3909
      %v3912 = vsel %vm2099, %v3904, %v3911
      %v3913 = vrot.slane %v3908, 4
      %v3915 = vshrl.u32 %v3733, 16
      %v3917 = vrot.slane %v3915, 7
      %v3918 = vshll.u32 %v3733, 16
      %v3920 = vor.u32 %v3917, %v3918
      %v3921 = vsel %vm2099, %v3913, %v3920
      %v3922 = vrot.slane %v3917, 4
      %v3924 = vshrl.u32 %v3734, 16
      %v3926 = vrot.slane %v3924, 7
      %v3927 = vshll.u32 %v3734, 16
      %v3929 = vor.u32 %v3926, %v3927
      %v3930 = vsel %vm2099, %v3922, %v3929
      %v3931 = vrot.slane %v3926, 4
      %v3933 = vshrl.u32 %v3735, 16
      %v3935 = vrot.slane %v3933, 7
      %v3936 = vshll.u32 %v3735, 16
      %v3938 = vor.u32 %v3935, %v3936
      %v3939 = vsel %vm2099, %v3931, %v3938
      %v3940 = vrot.slane %v3935, 4
      %v3942 = vshrl.u32 %v3736, 16
      %v3944 = vrot.slane %v3942, 7
      %v3945 = vshll.u32 %v3736, 16
      %v3947 = vor.u32 %v3944, %v3945
      %v3948 = vsel %vm2099, %v3940, %v3947
      %v3949 = vrot.slane %v3944, 4
      %v3951 = vshrl.u32 %v3737, 16
      %v3953 = vrot.slane %v3951, 7
      %v3954 = vshll.u32 %v3737, 16
      %v3956 = vor.u32 %v3953, %v3954
      %v3957 = vsel %vm2099, %v3949, %v3956
      %v3958 = vrot.slane %v3953, 4
      %v3960 = vshrl.u32 %v3738, 16
      %v3962 = vrot.slane %v3960, 7
      %v3963 = vshll.u32 %v3738, 16
      %v3965 = vor.u32 %v3962, %v3963
      %v3966 = vsel %vm2099, %v3958, %v3965
      %v3967 = vrot.slane %v3962, 4
      %v3969 = vshrl.u32 %v3739, 16
      %v3971 = vrot.slane %v3969, 7
      %v3972 = vshll.u32 %v3739, 16
      %v3974 = vor.u32 %v3971, %v3972
      %v3975 = vsel %vm2099, %v3967, %v3974
      %v3976 = vrot.slane %v3971, 4
      %v3978 = vshrl.u32 %v3740, 16
      %v3980 = vrot.slane %v3978, 7
      %v3981 = vshll.u32 %v3740, 16
      %v3983 = vor.u32 %v3980, %v3981
      %v3984 = vsel %vm2099, %v3976, %v3983
      %v3985 = vrot.slane %v3980, 4
      %v3987 = vshrl.u32 %v3741, 16
      %v3989 = vrot.slane %v3987, 7
      %v3990 = vshll.u32 %v3741, 16
      %v3992 = vor.u32 %v3989, %v3990
      %v3993 = vsel %vm2099, %v3985, %v3992
      %v3994 = vrot.slane %v3989, 4
      %v3996 = vshrl.u32 %v3742, 16
      %v3998 = vrot.slane %v3996, 7
      %v3999 = vshll.u32 %v3742, 16
      %v4001 = vor.u32 %v3998, %v3999
      %v4002 = vsel %vm2099, %v3994, %v4001
      %v4003 = vrot.slane %v3998, 4
      %v4005 = vshrl.u32 %v3743, 16
      %v4007 = vrot.slane %v4005, 7
      %v4008 = vshll.u32 %v3743, 16
      %v4010 = vor.u32 %v4007, %v4008
      %v4011 = vsel %vm2099, %v4003, %v4010
      %v4012 = vrot.slane %v4007, 4
      %v4014 = vshrl.u32 %v3744, 16
      %v4016 = vrot.slane %v4014, 7
      %v4017 = vshll.u32 %v3744, 16
      %v4019 = vor.u32 %v4016, %v4017
      %v4020 = vsel %vm2099, %v4012, %v4019
      %v4021 = vrot.slane %v4016, 4
      %v4023 = vshrl.u32 %v3745, 16
      %v4025 = vrot.slane %v4023, 7
      %v4026 = vshll.u32 %v3745, 16
      %v4028 = vor.u32 %v4025, %v4026
      %v4029 = vsel %vm2099, %v4021, %v4028
      %v4030 = vrot.slane %v4025, 4
      %v4032 = vshrl.u32 %v3746, 16
      %v4034 = vrot.slane %v4032, 7
      %v4035 = vshll.u32 %v3746, 16
      %v4037 = vor.u32 %v4034, %v4035
      %v4038 = vsel %vm2099, %v4030, %v4037
      %4039 = vrot.lane.b32.xlu0 %v3759, 16
      %v4040 = vpop.permute.xlu0 %4039
      %4041 = vrot.lane.b32.xlu0 %v3768, 16
      %v4042 = vpop.permute.xlu0 %4041
      %4043 = vrot.lane.b32.xlu0 %v3777, 16
      %v4044 = vpop.permute.xlu0 %4043
      %4045 = vrot.lane.b32.xlu0 %v3786, 16
      %v4046 = vpop.permute.xlu0 %4045
      %4047 = vrot.lane.b32.xlu0 %v3795, 16
      %v4048 = vpop.permute.xlu0 %4047
      %4049 = vrot.lane.b32.xlu0 %v3804, 16
      %v4050 = vpop.permute.xlu0 %4049
      %4051 = vrot.lane.b32.xlu0 %v3813, 16
      %v4052 = vpop.permute.xlu0 %4051
      %4053 = vrot.lane.b32.xlu0 %v3822, 16
      %v4054 = vpop.permute.xlu0 %4053
      %4055 = vrot.lane.b32.xlu0 %v3831, 16
      %v4056 = vpop.permute.xlu0 %4055
      %4057 = vrot.lane.b32.xlu0 %v3840, 16
      %v4058 = vpop.permute.xlu0 %4057
      %4059 = vrot.lane.b32.xlu0 %v3849, 16
      %v4060 = vpop.permute.xlu0 %4059
      %4061 = vrot.lane.b32.xlu0 %v3858, 16
      %v4062 = vpop.permute.xlu0 %4061
      %4063 = vrot.lane.b32.xlu0 %v3867, 16
      %v4064 = vpop.permute.xlu0 %4063
      %4065 = vrot.lane.b32.xlu0 %v3876, 16
      %v4066 = vpop.permute.xlu0 %4065
      %4067 = vrot.lane.b32.xlu0 %v3885, 16
      %v4068 = vpop.permute.xlu0 %4067
      %4069 = vrot.lane.b32.xlu0 %v3894, 16
      %v4070 = vpop.permute.xlu0 %4069
      %4071 = vrot.lane.b32.xlu0 %v3903, 16
      %v4072 = vpop.permute.xlu0 %4071
      %4073 = vrot.lane.b32.xlu0 %v3912, 16
      %v4074 = vpop.permute.xlu0 %4073
      %4075 = vrot.lane.b32.xlu0 %v3921, 16
      %v4076 = vpop.permute.xlu0 %4075
      %4077 = vrot.lane.b32.xlu0 %v3930, 16
      %v4078 = vpop.permute.xlu0 %4077
      %4079 = vrot.lane.b32.xlu0 %v3939, 16
      %v4080 = vpop.permute.xlu0 %4079
      %4081 = vrot.lane.b32.xlu0 %v3948, 16
      %v4082 = vpop.permute.xlu0 %4081
      %4083 = vrot.lane.b32.xlu0 %v3957, 16
      %v4084 = vpop.permute.xlu0 %4083
      %4085 = vrot.lane.b32.xlu0 %v3966, 16
      %v4086 = vpop.permute.xlu0 %4085
      %4087 = vrot.lane.b32.xlu0 %v3975, 16
      %v4088 = vpop.permute.xlu0 %4087
      %4089 = vrot.lane.b32.xlu0 %v3984, 16
      %v4090 = vpop.permute.xlu0 %4089
      %4091 = vrot.lane.b32.xlu0 %v3993, 16
      %v4092 = vpop.permute.xlu0 %4091
      %4093 = vrot.lane.b32.xlu0 %v4002, 16
      %v4094 = vpop.permute.xlu0 %4093
      %4095 = vrot.lane.b32.xlu0 %v4011, 16
      %v4096 = vpop.permute.xlu0 %4095
      %4097 = vrot.lane.b32.xlu0 %v4020, 16
      %v4098 = vpop.permute.xlu0 %4097
      %4099 = vrot.lane.b32.xlu0 %v4029, 16
      %v4100 = vpop.permute.xlu0 %4099
      %4101 = vrot.lane.b32.xlu0 %v4038, 16
      %v4102 = vpop.permute.xlu0 %4101
      %vm4135 = vcmask 158848
      %4136 = vst.msk [vmem:[#allocation3] sm:$0xf] %vm4135, %v4040
      %4137 = vst.msk [vmem:[#allocation3 + $0x4] sm:$0xf] %vm4135, %v4042
      %4138 = vst.msk [vmem:[#allocation3 + $0x8] sm:$0xf] %vm4135, %v4044
      %4139 = vst.msk [vmem:[#allocation3 + $0xc] sm:$0xf] %vm4135, %v4046
      %4140 = vst.msk [vmem:[#allocation3 + $0x10] sm:$0xf] %vm4135, %v4048
      %4141 = vst.msk [vmem:[#allocation3 + $0x14] sm:$0xf] %vm4135, %v4050
      %4142 = vst.msk [vmem:[#allocation3 + $0x18] sm:$0xf] %vm4135, %v4052
      %4143 = vst.msk [vmem:[#allocation3 + $0x1c] sm:$0xf] %vm4135, %v4054
      %4144 = vst.msk [vmem:[#allocation3 + $0x20] sm:$0xf] %vm4135, %v4056
      %4145 = vst.msk [vmem:[#allocation3 + $0x24] sm:$0xf] %vm4135, %v4058
      %4146 = vst.msk [vmem:[#allocation3 + $0x28] sm:$0xf] %vm4135, %v4060
      %4147 = vst.msk [vmem:[#allocation3 + $0x2c] sm:$0xf] %vm4135, %v4062
      %4148 = vst.msk [vmem:[#allocation3 + $0x30] sm:$0xf] %vm4135, %v4064
      %4149 = vst.msk [vmem:[#allocation3 + $0x34] sm:$0xf] %vm4135, %v4066
      %4150 = vst.msk [vmem:[#allocation3 + $0x38] sm:$0xf] %vm4135, %v4068
      %4151 = vst.msk [vmem:[#allocation3 + $0x3c] sm:$0xf] %vm4135, %v4070
      %4152 = vst.msk [vmem:[#allocation3 + $0x40] sm:$0xf] %vm4135, %v4072
      %4153 = vst.msk [vmem:[#allocation3 + $0x44] sm:$0xf] %vm4135, %v4074
      %4154 = vst.msk [vmem:[#allocation3 + $0x48] sm:$0xf] %vm4135, %v4076
      %4155 = vst.msk [vmem:[#allocation3 + $0x4c] sm:$0xf] %vm4135, %v4078
      %4156 = vst.msk [vmem:[#allocation3 + $0x50] sm:$0xf] %vm4135, %v4080
      %4157 = vst.msk [vmem:[#allocation3 + $0x54] sm:$0xf] %vm4135, %v4082
      %4158 = vst.msk [vmem:[#allocation3 + $0x58] sm:$0xf] %vm4135, %v4084
      %4159 = vst.msk [vmem:[#allocation3 + $0x5c] sm:$0xf] %vm4135, %v4086
      %4160 = vst.msk [vmem:[#allocation3 + $0x60] sm:$0xf] %vm4135, %v4088
      %4161 = vst.msk [vmem:[#allocation3 + $0x64] sm:$0xf] %vm4135, %v4090
      %4162 = vst.msk [vmem:[#allocation3 + $0x68] sm:$0xf] %vm4135, %v4092
      %4163 = vst.msk [vmem:[#allocation3 + $0x6c] sm:$0xf] %vm4135, %v4094
      %4164 = vst.msk [vmem:[#allocation3 + $0x70] sm:$0xf] %vm4135, %v4096
      %4165 = vst.msk [vmem:[#allocation3 + $0x74] sm:$0xf] %vm4135, %v4098
      %4166 = vst.msk [vmem:[#allocation3 + $0x78] sm:$0xf] %vm4135, %v4100
      %4167 = vst.msk [vmem:[#allocation3 + $0x7c] sm:$0xf] %vm4135, %v4102
      %4168 = vrot.lane.b32.xlu0 %v932, 20
      %v4169 = vpop.permute.xlu0 %4168
      %4170 = vrot.lane.b32.xlu0 %v933, 20
      %v4171 = vpop.permute.xlu0 %4170
      %4172 = vrot.lane.b32.xlu0 %v934, 20
      %v4173 = vpop.permute.xlu0 %4172
      %4174 = vrot.lane.b32.xlu0 %v935, 20
      %v4175 = vpop.permute.xlu0 %4174
      %4176 = vrot.lane.b32.xlu0 %v936, 20
      %v4177 = vpop.permute.xlu0 %4176
      %4178 = vrot.lane.b32.xlu0 %v937, 20
      %v4179 = vpop.permute.xlu0 %4178
      %4180 = vrot.lane.b32.xlu0 %v938, 20
      %v4181 = vpop.permute.xlu0 %4180
      %4182 = vrot.lane.b32.xlu0 %v939, 20
      %v4183 = vpop.permute.xlu0 %4182
      %4184 = vrot.lane.b32.xlu0 %v940, 20
      %v4185 = vpop.permute.xlu0 %4184
      %4186 = vrot.lane.b32.xlu0 %v941, 20
      %v4187 = vpop.permute.xlu0 %4186
      %4188 = vrot.lane.b32.xlu0 %v942, 20
      %v4189 = vpop.permute.xlu0 %4188
      %4190 = vrot.lane.b32.xlu0 %v943, 20
      %v4191 = vpop.permute.xlu0 %4190
      %4192 = vrot.lane.b32.xlu0 %v944, 20
      %v4193 = vpop.permute.xlu0 %4192
      %4194 = vrot.lane.b32.xlu0 %v945, 20
      %v4195 = vpop.permute.xlu0 %4194
      %4196 = vrot.lane.b32.xlu0 %v946, 20
      %v4197 = vpop.permute.xlu0 %4196
      %4198 = vrot.lane.b32.xlu0 %v947, 20
      %v4199 = vpop.permute.xlu0 %4198
      %4200 = vrot.lane.b32.xlu0 %v948, 20
      %v4201 = vpop.permute.xlu0 %4200
      %4202 = vrot.lane.b32.xlu0 %v949, 20
      %v4203 = vpop.permute.xlu0 %4202
      %4204 = vrot.lane.b32.xlu0 %v950, 20
      %v4205 = vpop.permute.xlu0 %4204
      %4206 = vrot.lane.b32.xlu0 %v951, 20
      %v4207 = vpop.permute.xlu0 %4206
      %4208 = vrot.lane.b32.xlu0 %v952, 20
      %v4209 = vpop.permute.xlu0 %4208
      %4210 = vrot.lane.b32.xlu0 %v953, 20
      %v4211 = vpop.permute.xlu0 %4210
      %4212 = vrot.lane.b32.xlu0 %v954, 20
      %v4213 = vpop.permute.xlu0 %4212
      %4214 = vrot.lane.b32.xlu0 %v955, 20
      %v4215 = vpop.permute.xlu0 %4214
      %4216 = vrot.lane.b32.xlu0 %v956, 20
      %v4217 = vpop.permute.xlu0 %4216
      %4218 = vrot.lane.b32.xlu0 %v957, 20
      %v4219 = vpop.permute.xlu0 %4218
      %4220 = vrot.lane.b32.xlu0 %v958, 20
      %v4221 = vpop.permute.xlu0 %4220
      %4222 = vrot.lane.b32.xlu0 %v959, 20
      %v4223 = vpop.permute.xlu0 %4222
      %4224 = vrot.lane.b32.xlu0 %v960, 20
      %v4225 = vpop.permute.xlu0 %4224
      %4226 = vrot.lane.b32.xlu0 %v961, 20
      %v4227 = vpop.permute.xlu0 %4226
      %4228 = vrot.lane.b32.xlu0 %v962, 20
      %v4229 = vpop.permute.xlu0 %4228
      %4230 = vrot.lane.b32.xlu0 %v963, 20
      %v4231 = vpop.permute.xlu0 %4230
      %vm4264 = vcmask 191648
      %4265 = vst.msk [vmem:[#allocation3] sm:$0xf] %vm4264, %v4169
      %4266 = vst.msk [vmem:[#allocation3 + $0x4] sm:$0xf] %vm4264, %v4171
      %4267 = vst.msk [vmem:[#allocation3 + $0x8] sm:$0xf] %vm4264, %v4173
      %4268 = vst.msk [vmem:[#allocation3 + $0xc] sm:$0xf] %vm4264, %v4175
      %4269 = vst.msk [vmem:[#allocation3 + $0x10] sm:$0xf] %vm4264, %v4177
      %4270 = vst.msk [vmem:[#allocation3 + $0x14] sm:$0xf] %vm4264, %v4179
      %4271 = vst.msk [vmem:[#allocation3 + $0x18] sm:$0xf] %vm4264, %v4181
      %4272 = vst.msk [vmem:[#allocation3 + $0x1c] sm:$0xf] %vm4264, %v4183
      %4273 = vst.msk [vmem:[#allocation3 + $0x20] sm:$0xf] %vm4264, %v4185
      %4274 = vst.msk [vmem:[#allocation3 + $0x24] sm:$0xf] %vm4264, %v4187
      %4275 = vst.msk [vmem:[#allocation3 + $0x28] sm:$0xf] %vm4264, %v4189
      %4276 = vst.msk [vmem:[#allocation3 + $0x2c] sm:$0xf] %vm4264, %v4191
      %4277 = vst.msk [vmem:[#allocation3 + $0x30] sm:$0xf] %vm4264, %v4193
      %4278 = vst.msk [vmem:[#allocation3 + $0x34] sm:$0xf] %vm4264, %v4195
      %4279 = vst.msk [vmem:[#allocation3 + $0x38] sm:$0xf] %vm4264, %v4197
      %4280 = vst.msk [vmem:[#allocation3 + $0x3c] sm:$0xf] %vm4264, %v4199
      %4281 = vst.msk [vmem:[#allocation3 + $0x40] sm:$0xf] %vm4264, %v4201
      %4282 = vst.msk [vmem:[#allocation3 + $0x44] sm:$0xf] %vm4264, %v4203
      %4283 = vst.msk [vmem:[#allocation3 + $0x48] sm:$0xf] %vm4264, %v4205
      %4284 = vst.msk [vmem:[#allocation3 + $0x4c] sm:$0xf] %vm4264, %v4207
      %4285 = vst.msk [vmem:[#allocation3 + $0x50] sm:$0xf] %vm4264, %v4209
      %4286 = vst.msk [vmem:[#allocation3 + $0x54] sm:$0xf] %vm4264, %v4211
      %4287 = vst.msk [vmem:[#allocation3 + $0x58] sm:$0xf] %vm4264, %v4213
      %4288 = vst.msk [vmem:[#allocation3 + $0x5c] sm:$0xf] %vm4264, %v4215
      %4289 = vst.msk [vmem:[#allocation3 + $0x60] sm:$0xf] %vm4264, %v4217
      %4290 = vst.msk [vmem:[#allocation3 + $0x64] sm:$0xf] %vm4264, %v4219
      %4291 = vst.msk [vmem:[#allocation3 + $0x68] sm:$0xf] %vm4264, %v4221
      %4292 = vst.msk [vmem:[#allocation3 + $0x6c] sm:$0xf] %vm4264, %v4223
      %4293 = vst.msk [vmem:[#allocation3 + $0x70] sm:$0xf] %vm4264, %v4225
      %4294 = vst.msk [vmem:[#allocation3 + $0x74] sm:$0xf] %vm4264, %v4227
      %4295 = vst.msk [vmem:[#allocation3 + $0x78] sm:$0xf] %vm4264, %v4229
      %4296 = vst.msk [vmem:[#allocation3 + $0x7c] sm:$0xf] %vm4264, %v4231
      %v4297 = vld [vmem:[#allocation2 + $0xc] sm:$0xf]
      %v4298 = vld [vmem:[#allocation2 + $0x10] sm:$0xf]
      %v4299 = vld [vmem:[#allocation2 + $0x14] sm:$0xf]
      %v4300 = vld [vmem:[#allocation2 + $0x18] sm:$0xf]
      %v4301 = vld [vmem:[#allocation2 + $0x1c] sm:$0xf]
      %v4302 = vld [vmem:[#allocation2 + $0x20] sm:$0xf]
      %v4303 = vld [vmem:[#allocation2 + $0x24] sm:$0xf]
      %v4304 = vld [vmem:[#allocation2 + $0x28] sm:$0xf]
      %v4305 = vld [vmem:[#allocation2 + $0x2c] sm:$0xf]
      %v4306 = vld [vmem:[#allocation2 + $0x30] sm:$0xf]
      %v4307 = vld [vmem:[#allocation2 + $0x34] sm:$0xf]
      %v4308 = vld [vmem:[#allocation2 + $0x38] sm:$0xf]
      %v4309 = vld [vmem:[#allocation2 + $0x3c] sm:$0xf]
      %v4310 = vld [vmem:[#allocation2 + $0x40] sm:$0xf]
      %v4311 = vld [vmem:[#allocation2 + $0x44] sm:$0xf]
      %v4312 = vld [vmem:[#allocation2 + $0x48] sm:$0xf]
      %v4313 = vld [vmem:[#allocation2 + $0x4c] sm:$0xf]
      %v4314 = vld [vmem:[#allocation2 + $0x50] sm:$0xf]
      %v4315 = vld [vmem:[#allocation2 + $0x54] sm:$0xf]
      %v4316 = vld [vmem:[#allocation2 + $0x58] sm:$0xf]
      %v4317 = vld [vmem:[#allocation2 + $0x5c] sm:$0xf]
      %v4318 = vld [vmem:[#allocation2 + $0x60] sm:$0xf]
      %v4319 = vld [vmem:[#allocation2 + $0x64] sm:$0xf]
      %v4320 = vld [vmem:[#allocation2 + $0x68] sm:$0xf]
      %v4321 = vld [vmem:[#allocation2 + $0x6c] sm:$0xf]
      %v4322 = vld [vmem:[#allocation2 + $0x70] sm:$0xf]
      %v4323 = vld [vmem:[#allocation2 + $0x74] sm:$0xf]
      %v4324 = vld [vmem:[#allocation2 + $0x78] sm:$0xf]
      %v4325 = vld [vmem:[#allocation2 + $0x7c] sm:$0xf]
      %v4326 = vld [vmem:[#allocation2 + $0x80] sm:$0xf]
      %v4327 = vld [vmem:[#allocation2 + $0x84] sm:$0xf]
      %v4328 = vld [vmem:[#allocation2 + $0x88] sm:$0xf]
      %v4329 = vld [vmem:[#allocation2 + $0x8c] sm:$0x1]
      %v4330 = vsel %vm3162, %v4297, 0
      %v4331 = vsel %vm3163, %v4298, 0
      %v4332 = vsel %vm3164, %v4299, 0
      %v4333 = vsel %vm3165, %v4300, 0
      %v4334 = vsel %vm3166, %v4301, 0
      %v4335 = vsel %vm3167, %v4302, 0
      %v4336 = vsel %vm3168, %v4303, 0
      %v4337 = vsel %vm3169, %v4304, 0
      %v4338 = vsel %vm3170, %v4305, 0
      %v4339 = vsel %vm3171, %v4306, 0
      %v4340 = vsel %vm3172, %v4307, 0
      %v4341 = vsel %vm3173, %v4308, 0
      %v4342 = vsel %vm3174, %v4309, 0
      %v4343 = vsel %vm3175, %v4310, 0
      %v4344 = vsel %vm3176, %v4311, 0
      %v4345 = vsel %vm3177, %v4312, 0
      %v4346 = vsel %vm3178, %v4313, 0
      %v4347 = vsel %vm3179, %v4314, 0
      %v4348 = vsel %vm3180, %v4315, 0
      %v4349 = vsel %vm3181, %v4316, 0
      %v4350 = vsel %vm3182, %v4317, 0
      %v4351 = vsel %vm3183, %v4318, 0
      %v4352 = vsel %vm3184, %v4319, 0
      %v4353 = vsel %vm3185, %v4320, 0
      %v4354 = vsel %vm3186, %v4321, 0
      %v4355 = vsel %vm3187, %v4322, 0
      %v4356 = vsel %vm3188, %v4323, 0
      %v4357 = vsel %vm3189, %v4324, 0
      %v4358 = vsel %vm3190, %v4325, 0
      %v4359 = vsel %vm3191, %v4326, 0
      %v4360 = vsel %vm3192, %v4327, 0
      %v4361 = vsel %vm3193, %v4328, 0
      %v4362 = vsel %vm3194, %v4329, 0
      %v4364 = vshrl.u32 %v4330, 16
      %v4366 = vrot.slane %v4364, 4
      %v4367 = vshll.u32 %v4330, 16
      %v4369 = vrot.slane %v4367, 5
      %v4370 = vor.u32 %v4366, %v4369
      %v4371 = vrot.slane %v4370, 4
      %v4373 = vshll.u32 %v4331, 16
      %v4375 = vrot.slane %v4373, 5
      %v4376 = vsel %vm1712, %v4371, %v4375
      %v4377 = vshrl.u32 %v4331, 16
      %v4379 = vrot.slane %v4377, 4
      %v4380 = vor.u32 %v4379, %v4375
      %v4381 = vrot.slane %v4380, 4
      %v4383 = vshll.u32 %v4332, 16
      %v4385 = vrot.slane %v4383, 5
      %v4386 = vsel %vm1712, %v4381, %v4385
      %v4387 = vshrl.u32 %v4332, 16
      %v4389 = vrot.slane %v4387, 4
      %v4390 = vor.u32 %v4389, %v4385
      %v4391 = vrot.slane %v4390, 4
      %v4393 = vshll.u32 %v4333, 16
      %v4395 = vrot.slane %v4393, 5
      %v4396 = vsel %vm1712, %v4391, %v4395
      %v4397 = vshrl.u32 %v4333, 16
      %v4399 = vrot.slane %v4397, 4
      %v4400 = vor.u32 %v4399, %v4395
      %v4401 = vrot.slane %v4400, 4
      %v4403 = vshll.u32 %v4334, 16
      %v4405 = vrot.slane %v4403, 5
      %v4406 = vsel %vm1712, %v4401, %v4405
      %v4407 = vshrl.u32 %v4334, 16
      %v4409 = vrot.slane %v4407, 4
      %v4410 = vor.u32 %v4409, %v4405
      %v4411 = vrot.slane %v4410, 4
      %v4413 = vshll.u32 %v4335, 16
      %v4415 = vrot.slane %v4413, 5
      %v4416 = vsel %vm1712, %v4411, %v4415
      %v4417 = vshrl.u32 %v4335, 16
      %v4419 = vrot.slane %v4417, 4
      %v4420 = vor.u32 %v4419, %v4415
      %v4421 = vrot.slane %v4420, 4
      %v4423 = vshll.u32 %v4336, 16
      %v4425 = vrot.slane %v4423, 5
      %v4426 = vsel %vm1712, %v4421, %v4425
      %v4427 = vshrl.u32 %v4336, 16
      %v4429 = vrot.slane %v4427, 4
      %v4430 = vor.u32 %v4429, %v4425
      %v4431 = vrot.slane %v4430, 4
      %v4433 = vshll.u32 %v4337, 16
      %v4435 = vrot.slane %v4433, 5
      %v4436 = vsel %vm1712, %v4431, %v4435
      %v4437 = vshrl.u32 %v4337, 16
      %v4439 = vrot.slane %v4437, 4
      %v4440 = vor.u32 %v4439, %v4435
      %v4441 = vrot.slane %v4440, 4
      %v4443 = vshll.u32 %v4338, 16
      %v4445 = vrot.slane %v4443, 5
      %v4446 = vsel %vm1712, %v4441, %v4445
      %v4447 = vshrl.u32 %v4338, 16
      %v4449 = vrot.slane %v4447, 4
      %v4450 = vor.u32 %v4449, %v4445
      %v4451 = vrot.slane %v4450, 4
      %v4453 = vshll.u32 %v4339, 16
      %v4455 = vrot.slane %v4453, 5
      %v4456 = vsel %vm1712, %v4451, %v4455
      %v4457 = vshrl.u32 %v4339, 16
      %v4459 = vrot.slane %v4457, 4
      %v4460 = vor.u32 %v4459, %v4455
      %v4461 = vrot.slane %v4460, 4
      %v4463 = vshll.u32 %v4340, 16
      %v4465 = vrot.slane %v4463, 5
      %v4466 = vsel %vm1712, %v4461, %v4465
      %v4467 = vshrl.u32 %v4340, 16
      %v4469 = vrot.slane %v4467, 4
      %v4470 = vor.u32 %v4469, %v4465
      %v4471 = vrot.slane %v4470, 4
      %v4473 = vshll.u32 %v4341, 16
      %v4475 = vrot.slane %v4473, 5
      %v4476 = vsel %vm1712, %v4471, %v4475
      %v4477 = vshrl.u32 %v4341, 16
      %v4479 = vrot.slane %v4477, 4
      %v4480 = vor.u32 %v4479, %v4475
      %v4481 = vrot.slane %v4480, 4
      %v4483 = vshll.u32 %v4342, 16
      %v4485 = vrot.slane %v4483, 5
      %v4486 = vsel %vm1712, %v4481, %v4485
      %v4487 = vshrl.u32 %v4342, 16
      %v4489 = vrot.slane %v4487, 4
      %v4490 = vor.u32 %v4489, %v4485
      %v4491 = vrot.slane %v4490, 4
      %v4493 = vshll.u32 %v4343, 16
      %v4495 = vrot.slane %v4493, 5
      %v4496 = vsel %vm1712, %v4491, %v4495
      %v4497 = vshrl.u32 %v4343, 16
      %v4499 = vrot.slane %v4497, 4
      %v4500 = vor.u32 %v4499, %v4495
      %v4501 = vrot.slane %v4500, 4
      %v4503 = vshll.u32 %v4344, 16
      %v4505 = vrot.slane %v4503, 5
      %v4506 = vsel %vm1712, %v4501, %v4505
      %v4507 = vshrl.u32 %v4344, 16
      %v4509 = vrot.slane %v4507, 4
      %v4510 = vor.u32 %v4509, %v4505
      %v4511 = vrot.slane %v4510, 4
      %v4513 = vshll.u32 %v4345, 16
      %v4515 = vrot.slane %v4513, 5
      %v4516 = vsel %vm1712, %v4511, %v4515
      %v4517 = vshrl.u32 %v4345, 16
      %v4519 = vrot.slane %v4517, 4
      %v4520 = vor.u32 %v4519, %v4515
      %v4521 = vrot.slane %v4520, 4
      %v4523 = vshll.u32 %v4346, 16
      %v4525 = vrot.slane %v4523, 5
      %v4526 = vsel %vm1712, %v4521, %v4525
      %v4527 = vshrl.u32 %v4346, 16
      %v4529 = vrot.slane %v4527, 4
      %v4530 = vor.u32 %v4529, %v4525
      %v4531 = vrot.slane %v4530, 4
      %v4533 = vshll.u32 %v4347, 16
      %v4535 = vrot.slane %v4533, 5
      %v4536 = vsel %vm1712, %v4531, %v4535
      %v4537 = vshrl.u32 %v4347, 16
      %v4539 = vrot.slane %v4537, 4
      %v4540 = vor.u32 %v4539, %v4535
      %v4541 = vrot.slane %v4540, 4
      %v4543 = vshll.u32 %v4348, 16
      %v4545 = vrot.slane %v4543, 5
      %v4546 = vsel %vm1712, %v4541, %v4545
      %v4547 = vshrl.u32 %v4348, 16
      %v4549 = vrot.slane %v4547, 4
      %v4550 = vor.u32 %v4549, %v4545
      %v4551 = vrot.slane %v4550, 4
      %v4553 = vshll.u32 %v4349, 16
      %v4555 = vrot.slane %v4553, 5
      %v4556 = vsel %vm1712, %v4551, %v4555
      %v4557 = vshrl.u32 %v4349, 16
      %v4559 = vrot.slane %v4557, 4
      %v4560 = vor.u32 %v4559, %v4555
      %v4561 = vrot.slane %v4560, 4
      %v4563 = vshll.u32 %v4350, 16
      %v4565 = vrot.slane %v4563, 5
      %v4566 = vsel %vm1712, %v4561, %v4565
      %v4567 = vshrl.u32 %v4350, 16
      %v4569 = vrot.slane %v4567, 4
      %v4570 = vor.u32 %v4569, %v4565
      %v4571 = vrot.slane %v4570, 4
      %v4573 = vshll.u32 %v4351, 16
      %v4575 = vrot.slane %v4573, 5
      %v4576 = vsel %vm1712, %v4571, %v4575
      %v4577 = vshrl.u32 %v4351, 16
      %v4579 = vrot.slane %v4577, 4
      %v4580 = vor.u32 %v4579, %v4575
      %v4581 = vrot.slane %v4580, 4
      %v4583 = vshll.u32 %v4352, 16
      %v4585 = vrot.slane %v4583, 5
      %v4586 = vsel %vm1712, %v4581, %v4585
      %v4587 = vshrl.u32 %v4352, 16
      %v4589 = vrot.slane %v4587, 4
      %v4590 = vor.u32 %v4589, %v4585
      %v4591 = vrot.slane %v4590, 4
      %v4593 = vshll.u32 %v4353, 16
      %v4595 = vrot.slane %v4593, 5
      %v4596 = vsel %vm1712, %v4591, %v4595
      %v4597 = vshrl.u32 %v4353, 16
      %v4599 = vrot.slane %v4597, 4
      %v4600 = vor.u32 %v4599, %v4595
      %v4601 = vrot.slane %v4600, 4
      %v4603 = vshll.u32 %v4354, 16
      %v4605 = vrot.slane %v4603, 5
      %v4606 = vsel %vm1712, %v4601, %v4605
      %v4607 = vshrl.u32 %v4354, 16
      %v4609 = vrot.slane %v4607, 4
      %v4610 = vor.u32 %v4609, %v4605
      %v4611 = vrot.slane %v4610, 4
      %v4613 = vshll.u32 %v4355, 16
      %v4615 = vrot.slane %v4613, 5
      %v4616 = vsel %vm1712, %v4611, %v4615
      %v4617 = vshrl.u32 %v4355, 16
      %v4619 = vrot.slane %v4617, 4
      %v4620 = vor.u32 %v4619, %v4615
      %v4621 = vrot.slane %v4620, 4
      %v4623 = vshll.u32 %v4356, 16
      %v4625 = vrot.slane %v4623, 5
      %v4626 = vsel %vm1712, %v4621, %v4625
      %v4627 = vshrl.u32 %v4356, 16
      %v4629 = vrot.slane %v4627, 4
      %v4630 = vor.u32 %v4629, %v4625
      %v4631 = vrot.slane %v4630, 4
      %v4633 = vshll.u32 %v4357, 16
      %v4635 = vrot.slane %v4633, 5
      %v4636 = vsel %vm1712, %v4631, %v4635
      %v4637 = vshrl.u32 %v4357, 16
      %v4639 = vrot.slane %v4637, 4
      %v4640 = vor.u32 %v4639, %v4635
      %v4641 = vrot.slane %v4640, 4
      %v4643 = vshll.u32 %v4358, 16
      %v4645 = vrot.slane %v4643, 5
      %v4646 = vsel %vm1712, %v4641, %v4645
      %v4647 = vshrl.u32 %v4358, 16
      %v4649 = vrot.slane %v4647, 4
      %v4650 = vor.u32 %v4649, %v4645
      %v4651 = vrot.slane %v4650, 4
      %v4653 = vshll.u32 %v4359, 16
      %v4655 = vrot.slane %v4653, 5
      %v4656 = vsel %vm1712, %v4651, %v4655
      %v4657 = vshrl.u32 %v4359, 16
      %v4659 = vrot.slane %v4657, 4
      %v4660 = vor.u32 %v4659, %v4655
      %v4661 = vrot.slane %v4660, 4
      %v4663 = vshll.u32 %v4360, 16
      %v4665 = vrot.slane %v4663, 5
      %v4666 = vsel %vm1712, %v4661, %v4665
      %v4667 = vshrl.u32 %v4360, 16
      %v4669 = vrot.slane %v4667, 4
      %v4670 = vor.u32 %v4669, %v4665
      %v4671 = vrot.slane %v4670, 4
      %v4673 = vshll.u32 %v4361, 16
      %v4675 = vrot.slane %v4673, 5
      %v4676 = vsel %vm1712, %v4671, %v4675
      %v4677 = vshrl.u32 %v4361, 16
      %v4679 = vrot.slane %v4677, 4
      %v4680 = vor.u32 %v4679, %v4675
      %v4681 = vrot.slane %v4680, 4
      %v4683 = vshll.u32 %v4362, 16
      %v4685 = vrot.slane %v4683, 5
      %v4686 = vsel %vm1712, %v4681, %v4685
      %4687 = vrot.lane.b32.xlu0 %v4376, 24
      %v4688 = vpop.permute.xlu0 %4687
      %4689 = vrot.lane.b32.xlu0 %v4386, 24
      %v4690 = vpop.permute.xlu0 %4689
      %4691 = vrot.lane.b32.xlu0 %v4396, 24
      %v4692 = vpop.permute.xlu0 %4691
      %4693 = vrot.lane.b32.xlu0 %v4406, 24
      %v4694 = vpop.permute.xlu0 %4693
      %4695 = vrot.lane.b32.xlu0 %v4416, 24
      %v4696 = vpop.permute.xlu0 %4695
      %4697 = vrot.lane.b32.xlu0 %v4426, 24
      %v4698 = vpop.permute.xlu0 %4697
      %4699 = vrot.lane.b32.xlu0 %v4436, 24
      %v4700 = vpop.permute.xlu0 %4699
      %4701 = vrot.lane.b32.xlu0 %v4446, 24
      %v4702 = vpop.permute.xlu0 %4701
      %4703 = vrot.lane.b32.xlu0 %v4456, 24
      %v4704 = vpop.permute.xlu0 %4703
      %4705 = vrot.lane.b32.xlu0 %v4466, 24
      %v4706 = vpop.permute.xlu0 %4705
      %4707 = vrot.lane.b32.xlu0 %v4476, 24
      %v4708 = vpop.permute.xlu0 %4707
      %4709 = vrot.lane.b32.xlu0 %v4486, 24
      %v4710 = vpop.permute.xlu0 %4709
      %4711 = vrot.lane.b32.xlu0 %v4496, 24
      %v4712 = vpop.permute.xlu0 %4711
      %4713 = vrot.lane.b32.xlu0 %v4506, 24
      %v4714 = vpop.permute.xlu0 %4713
      %4715 = vrot.lane.b32.xlu0 %v4516, 24
      %v4716 = vpop.permute.xlu0 %4715
      %4717 = vrot.lane.b32.xlu0 %v4526, 24
      %v4718 = vpop.permute.xlu0 %4717
      %4719 = vrot.lane.b32.xlu0 %v4536, 24
      %v4720 = vpop.permute.xlu0 %4719
      %4721 = vrot.lane.b32.xlu0 %v4546, 24
      %v4722 = vpop.permute.xlu0 %4721
      %4723 = vrot.lane.b32.xlu0 %v4556, 24
      %v4724 = vpop.permute.xlu0 %4723
      %4725 = vrot.lane.b32.xlu0 %v4566, 24
      %v4726 = vpop.permute.xlu0 %4725
      %4727 = vrot.lane.b32.xlu0 %v4576, 24
      %v4728 = vpop.permute.xlu0 %4727
      %4729 = vrot.lane.b32.xlu0 %v4586, 24
      %v4730 = vpop.permute.xlu0 %4729
      %4731 = vrot.lane.b32.xlu0 %v4596, 24
      %v4732 = vpop.permute.xlu0 %4731
      %4733 = vrot.lane.b32.xlu0 %v4606, 24
      %v4734 = vpop.permute.xlu0 %4733
      %4735 = vrot.lane.b32.xlu0 %v4616, 24
      %v4736 = vpop.permute.xlu0 %4735
      %4737 = vrot.lane.b32.xlu0 %v4626, 24
      %v4738 = vpop.permute.xlu0 %4737
      %4739 = vrot.lane.b32.xlu0 %v4636, 24
      %v4740 = vpop.permute.xlu0 %4739
      %4741 = vrot.lane.b32.xlu0 %v4646, 24
      %v4742 = vpop.permute.xlu0 %4741
      %4743 = vrot.lane.b32.xlu0 %v4656, 24
      %v4744 = vpop.permute.xlu0 %4743
      %4745 = vrot.lane.b32.xlu0 %v4666, 24
      %v4746 = vpop.permute.xlu0 %4745
      %4747 = vrot.lane.b32.xlu0 %v4676, 24
      %v4748 = vpop.permute.xlu0 %4747
      %4749 = vrot.lane.b32.xlu0 %v4686, 24
      %v4750 = vpop.permute.xlu0 %4749
      %vm4783 = vcmask 224448
      %4784 = vst.msk [vmem:[#allocation3] sm:$0xf] %vm4783, %v4688
      %4785 = vst.msk [vmem:[#allocation3 + $0x4] sm:$0xf] %vm4783, %v4690
      %4786 = vst.msk [vmem:[#allocation3 + $0x8] sm:$0xf] %vm4783, %v4692
      %4787 = vst.msk [vmem:[#allocation3 + $0xc] sm:$0xf] %vm4783, %v4694
      %4788 = vst.msk [vmem:[#allocation3 + $0x10] sm:$0xf] %vm4783, %v4696
      %4789 = vst.msk [vmem:[#allocation3 + $0x14] sm:$0xf] %vm4783, %v4698
      %4790 = vst.msk [vmem:[#allocation3 + $0x18] sm:$0xf] %vm4783, %v4700
      %4791 = vst.msk [vmem:[#allocation3 + $0x1c] sm:$0xf] %vm4783, %v4702
      %4792 = vst.msk [vmem:[#allocation3 + $0x20] sm:$0xf] %vm4783, %v4704
      %4793 = vst.msk [vmem:[#allocation3 + $0x24] sm:$0xf] %vm4783, %v4706
      %4794 = vst.msk [vmem:[#allocation3 + $0x28] sm:$0xf] %vm4783, %v4708
      %4795 = vst.msk [vmem:[#allocation3 + $0x2c] sm:$0xf] %vm4783, %v4710
      %4796 = vst.msk [vmem:[#allocation3 + $0x30] sm:$0xf] %vm4783, %v4712
      %4797 = vst.msk [vmem:[#allocation3 + $0x34] sm:$0xf] %vm4783, %v4714
      %4798 = vst.msk [vmem:[#allocation3 + $0x38] sm:$0xf] %vm4783, %v4716
      %4799 = vst.msk [vmem:[#allocation3 + $0x3c] sm:$0xf] %vm4783, %v4718
      %4800 = vst.msk [vmem:[#allocation3 + $0x40] sm:$0xf] %vm4783, %v4720
      %4801 = vst.msk [vmem:[#allocation3 + $0x44] sm:$0xf] %vm4783, %v4722
      %4802 = vst.msk [vmem:[#allocation3 + $0x48] sm:$0xf] %vm4783, %v4724
      %4803 = vst.msk [vmem:[#allocation3 + $0x4c] sm:$0xf] %vm4783, %v4726
      %4804 = vst.msk [vmem:[#allocation3 + $0x50] sm:$0xf] %vm4783, %v4728
      %4805 = vst.msk [vmem:[#allocation3 + $0x54] sm:$0xf] %vm4783, %v4730
      %4806 = vst.msk [vmem:[#allocation3 + $0x58] sm:$0xf] %vm4783, %v4732
      %4807 = vst.msk [vmem:[#allocation3 + $0x5c] sm:$0xf] %vm4783, %v4734
      %4808 = vst.msk [vmem:[#allocation3 + $0x60] sm:$0xf] %vm4783, %v4736
      %4809 = vst.msk [vmem:[#allocation3 + $0x64] sm:$0xf] %vm4783, %v4738
      %4810 = vst.msk [vmem:[#allocation3 + $0x68] sm:$0xf] %vm4783, %v4740
      %4811 = vst.msk [vmem:[#allocation3 + $0x6c] sm:$0xf] %vm4783, %v4742
      %4812 = vst.msk [vmem:[#allocation3 + $0x70] sm:$0xf] %vm4783, %v4744
      %4813 = vst.msk [vmem:[#allocation3 + $0x74] sm:$0xf] %vm4783, %v4746
      %4814 = vst.msk [vmem:[#allocation3 + $0x78] sm:$0xf] %vm4783, %v4748
      %4815 = vst.msk [vmem:[#allocation3 + $0x7c] sm:$0xf] %vm4783, %v4750
      %v4816 = vld [vmem:[#allocation2 + $0x10] sm:$0x8]
      %v4817 = vld [vmem:[#allocation2 + $0x14] sm:$0xf]
      %v4818 = vld [vmem:[#allocation2 + $0x18] sm:$0xf]
      %v4819 = vld [vmem:[#allocation2 + $0x1c] sm:$0xf]
      %v4820 = vld [vmem:[#allocation2 + $0x20] sm:$0xf]
      %v4821 = vld [vmem:[#allocation2 + $0x24] sm:$0xf]
      %v4822 = vld [vmem:[#allocation2 + $0x28] sm:$0xf]
      %v4823 = vld [vmem:[#allocation2 + $0x2c] sm:$0xf]
      %v4824 = vld [vmem:[#allocation2 + $0x30] sm:$0xf]
      %v4825 = vld [vmem:[#allocation2 + $0x34] sm:$0xf]
      %v4826 = vld [vmem:[#allocation2 + $0x38] sm:$0xf]
      %v4827 = vld [vmem:[#allocation2 + $0x3c] sm:$0xf]
      %v4828 = vld [vmem:[#allocation2 + $0x40] sm:$0xf]
      %v4829 = vld [vmem:[#allocation2 + $0x44] sm:$0xf]
      %v4830 = vld [vmem:[#allocation2 + $0x48] sm:$0xf]
      %v4831 = vld [vmem:[#allocation2 + $0x4c] sm:$0xf]
      %v4832 = vld [vmem:[#allocation2 + $0x50] sm:$0xf]
      %v4833 = vld [vmem:[#allocation2 + $0x54] sm:$0xf]
      %v4834 = vld [vmem:[#allocation2 + $0x58] sm:$0xf]
      %v4835 = vld [vmem:[#allocation2 + $0x5c] sm:$0xf]
      %v4836 = vld [vmem:[#allocation2 + $0x60] sm:$0xf]
      %v4837 = vld [vmem:[#allocation2 + $0x64] sm:$0xf]
      %v4838 = vld [vmem:[#allocation2 + $0x68] sm:$0xf]
      %v4839 = vld [vmem:[#allocation2 + $0x6c] sm:$0xf]
      %v4840 = vld [vmem:[#allocation2 + $0x70] sm:$0xf]
      %v4841 = vld [vmem:[#allocation2 + $0x74] sm:$0xf]
      %v4842 = vld [vmem:[#allocation2 + $0x78] sm:$0xf]
      %v4843 = vld [vmem:[#allocation2 + $0x7c] sm:$0xf]
      %v4844 = vld [vmem:[#allocation2 + $0x80] sm:$0xf]
      %v4845 = vld [vmem:[#allocation2 + $0x84] sm:$0xf]
      %v4846 = vld [vmem:[#allocation2 + $0x88] sm:$0xf]
      %v4847 = vld [vmem:[#allocation2 + $0x8c] sm:$0xf]
      %v4848 = vld [vmem:[#allocation2 + $0x90] sm:$0xf]
      %v4849 = vsel %vm2032, %v4816, 0
      %v4850 = vsel %vm2033, %v4817, 0
      %v4851 = vsel %vm2034, %v4818, 0
      %v4852 = vsel %vm2035, %v4819, 0
      %v4853 = vsel %vm2036, %v4820, 0
      %v4854 = vsel %vm2037, %v4821, 0
      %v4855 = vsel %vm2038, %v4822, 0
      %v4856 = vsel %vm2039, %v4823, 0
      %v4857 = vsel %vm2040, %v4824, 0
      %v4858 = vsel %vm2041, %v4825, 0
      %v4859 = vsel %vm2042, %v4826, 0
      %v4860 = vsel %vm2043, %v4827, 0
      %v4861 = vsel %vm2044, %v4828, 0
      %v4862 = vsel %vm2045, %v4829, 0
      %v4863 = vsel %vm2046, %v4830, 0
      %v4864 = vsel %vm2047, %v4831, 0
      %v4865 = vsel %vm2048, %v4832, 0
      %v4866 = vsel %vm2049, %v4833, 0
      %v4867 = vsel %vm2050, %v4834, 0
      %v4868 = vsel %vm2051, %v4835, 0
      %v4869 = vsel %vm2052, %v4836, 0
      %v4870 = vsel %vm2053, %v4837, 0
      %v4871 = vsel %vm2054, %v4838, 0
      %v4872 = vsel %vm2055, %v4839, 0
      %v4873 = vsel %vm2056, %v4840, 0
      %v4874 = vsel %vm2057, %v4841, 0
      %v4875 = vsel %vm2058, %v4842, 0
      %v4876 = vsel %vm2059, %v4843, 0
      %v4877 = vsel %vm2060, %v4844, 0
      %v4878 = vsel %vm2061, %v4845, 0
      %v4879 = vsel %vm2062, %v4846, 0
      %v4880 = vsel %vm2063, %v4847, 0
      %v4881 = vsel %vm2064, %v4848, 0
      %v4883 = vshrl.u32 %v4849, 16
      %v4885 = vrot.slane %v4883, 7
      %v4886 = vrot.slane %v4885, 4
      %v4888 = vshrl.u32 %v4850, 16
      %v4890 = vrot.slane %v4888, 7
      %v4891 = vshll.u32 %v4850, 16
      %v4893 = vor.u32 %v4890, %v4891
      %v4894 = vsel %vm2099, %v4886, %v4893
      %v4895 = vrot.slane %v4890, 4
      %v4897 = vshrl.u32 %v4851, 16
      %v4899 = vrot.slane %v4897, 7
      %v4900 = vshll.u32 %v4851, 16
      %v4902 = vor.u32 %v4899, %v4900
      %v4903 = vsel %vm2099, %v4895, %v4902
      %v4904 = vrot.slane %v4899, 4
      %v4906 = vshrl.u32 %v4852, 16
      %v4908 = vrot.slane %v4906, 7
      %v4909 = vshll.u32 %v4852, 16
      %v4911 = vor.u32 %v4908, %v4909
      %v4912 = vsel %vm2099, %v4904, %v4911
      %v4913 = vrot.slane %v4908, 4
      %v4915 = vshrl.u32 %v4853, 16
      %v4917 = vrot.slane %v4915, 7
      %v4918 = vshll.u32 %v4853, 16
      %v4920 = vor.u32 %v4917, %v4918
      %v4921 = vsel %vm2099, %v4913, %v4920
      %v4922 = vrot.slane %v4917, 4
      %v4924 = vshrl.u32 %v4854, 16
      %v4926 = vrot.slane %v4924, 7
      %v4927 = vshll.u32 %v4854, 16
      %v4929 = vor.u32 %v4926, %v4927
      %v4930 = vsel %vm2099, %v4922, %v4929
      %v4931 = vrot.slane %v4926, 4
      %v4933 = vshrl.u32 %v4855, 16
      %v4935 = vrot.slane %v4933, 7
      %v4936 = vshll.u32 %v4855, 16
      %v4938 = vor.u32 %v4935, %v4936
      %v4939 = vsel %vm2099, %v4931, %v4938
      %v4940 = vrot.slane %v4935, 4
      %v4942 = vshrl.u32 %v4856, 16
      %v4944 = vrot.slane %v4942, 7
      %v4945 = vshll.u32 %v4856, 16
      %v4947 = vor.u32 %v4944, %v4945
      %v4948 = vsel %vm2099, %v4940, %v4947
      %v4949 = vrot.slane %v4944, 4
      %v4951 = vshrl.u32 %v4857, 16
      %v4953 = vrot.slane %v4951, 7
      %v4954 = vshll.u32 %v4857, 16
      %v4956 = vor.u32 %v4953, %v4954
      %v4957 = vsel %vm2099, %v4949, %v4956
      %v4958 = vrot.slane %v4953, 4
      %v4960 = vshrl.u32 %v4858, 16
      %v4962 = vrot.slane %v4960, 7
      %v4963 = vshll.u32 %v4858, 16
      %v4965 = vor.u32 %v4962, %v4963
      %v4966 = vsel %vm2099, %v4958, %v4965
      %v4967 = vrot.slane %v4962, 4
      %v4969 = vshrl.u32 %v4859, 16
      %v4971 = vrot.slane %v4969, 7
      %v4972 = vshll.u32 %v4859, 16
      %v4974 = vor.u32 %v4971, %v4972
      %v4975 = vsel %vm2099, %v4967, %v4974
      %v4976 = vrot.slane %v4971, 4
      %v4978 = vshrl.u32 %v4860, 16
      %v4980 = vrot.slane %v4978, 7
      %v4981 = vshll.u32 %v4860, 16
      %v4983 = vor.u32 %v4980, %v4981
      %v4984 = vsel %vm2099, %v4976, %v4983
      %v4985 = vrot.slane %v4980, 4
      %v4987 = vshrl.u32 %v4861, 16
      %v4989 = vrot.slane %v4987, 7
      %v4990 = vshll.u32 %v4861, 16
      %v4992 = vor.u32 %v4989, %v4990
      %v4993 = vsel %vm2099, %v4985, %v4992
      %v4994 = vrot.slane %v4989, 4
      %v4996 = vshrl.u32 %v4862, 16
      %v4998 = vrot.slane %v4996, 7
      %v4999 = vshll.u32 %v4862, 16
      %v5001 = vor.u32 %v4998, %v4999
      %v5002 = vsel %vm2099, %v4994, %v5001
      %v5003 = vrot.slane %v4998, 4
      %v5005 = vshrl.u32 %v4863, 16
      %v5007 = vrot.slane %v5005, 7
      %v5008 = vshll.u32 %v4863, 16
      %v5010 = vor.u32 %v5007, %v5008
      %v5011 = vsel %vm2099, %v5003, %v5010
      %v5012 = vrot.slane %v5007, 4
      %v5014 = vshrl.u32 %v4864, 16
      %v5016 = vrot.slane %v5014, 7
      %v5017 = vshll.u32 %v4864, 16
      %v5019 = vor.u32 %v5016, %v5017
      %v5020 = vsel %vm2099, %v5012, %v5019
      %v5021 = vrot.slane %v5016, 4
      %v5023 = vshrl.u32 %v4865, 16
      %v5025 = vrot.slane %v5023, 7
      %v5026 = vshll.u32 %v4865, 16
      %v5028 = vor.u32 %v5025, %v5026
      %v5029 = vsel %vm2099, %v5021, %v5028
      %v5030 = vrot.slane %v5025, 4
      %v5032 = vshrl.u32 %v4866, 16
      %v5034 = vrot.slane %v5032, 7
      %v5035 = vshll.u32 %v4866, 16
      %v5037 = vor.u32 %v5034, %v5035
      %v5038 = vsel %vm2099, %v5030, %v5037
      %v5039 = vrot.slane %v5034, 4
      %v5041 = vshrl.u32 %v4867, 16
      %v5043 = vrot.slane %v5041, 7
      %v5044 = vshll.u32 %v4867, 16
      %v5046 = vor.u32 %v5043, %v5044
      %v5047 = vsel %vm2099, %v5039, %v5046
      %v5048 = vrot.slane %v5043, 4
      %v5050 = vshrl.u32 %v4868, 16
      %v5052 = vrot.slane %v5050, 7
      %v5053 = vshll.u32 %v4868, 16
      %v5055 = vor.u32 %v5052, %v5053
      %v5056 = vsel %vm2099, %v5048, %v5055
      %v5057 = vrot.slane %v5052, 4
      %v5059 = vshrl.u32 %v4869, 16
      %v5061 = vrot.slane %v5059, 7
      %v5062 = vshll.u32 %v4869, 16
      %v5064 = vor.u32 %v5061, %v5062
      %v5065 = vsel %vm2099, %v5057, %v5064
      %v5066 = vrot.slane %v5061, 4
      %v5068 = vshrl.u32 %v4870, 16
      %v5070 = vrot.slane %v5068, 7
      %v5071 = vshll.u32 %v4870, 16
      %v5073 = vor.u32 %v5070, %v5071
      %v5074 = vsel %vm2099, %v5066, %v5073
      %v5075 = vrot.slane %v5070, 4
      %v5077 = vshrl.u32 %v4871, 16
      %v5079 = vrot.slane %v5077, 7
      %v5080 = vshll.u32 %v4871, 16
      %v5082 = vor.u32 %v5079, %v5080
      %v5083 = vsel %vm2099, %v5075, %v5082
      %v5084 = vrot.slane %v5079, 4
      %v5086 = vshrl.u32 %v4872, 16
      %v5088 = vrot.slane %v5086, 7
      %v5089 = vshll.u32 %v4872, 16
      %v5091 = vor.u32 %v5088, %v5089
      %v5092 = vsel %vm2099, %v5084, %v5091
      %v5093 = vrot.slane %v5088, 4
      %v5095 = vshrl.u32 %v4873, 16
      %v5097 = vrot.slane %v5095, 7
      %v5098 = vshll.u32 %v4873, 16
      %v5100 = vor.u32 %v5097, %v5098
      %v5101 = vsel %vm2099, %v5093, %v5100
      %v5102 = vrot.slane %v5097, 4
      %v5104 = vshrl.u32 %v4874, 16
      %v5106 = vrot.slane %v5104, 7
      %v5107 = vshll.u32 %v4874, 16
      %v5109 = vor.u32 %v5106, %v5107
      %v5110 = vsel %vm2099, %v5102, %v5109
      %v5111 = vrot.slane %v5106, 4
      %v5113 = vshrl.u32 %v4875, 16
      %v5115 = vrot.slane %v5113, 7
      %v5116 = vshll.u32 %v4875, 16
      %v5118 = vor.u32 %v5115, %v5116
      %v5119 = vsel %vm2099, %v5111, %v5118
      %v5120 = vrot.slane %v5115, 4
      %v5122 = vshrl.u32 %v4876, 16
      %v5124 = vrot.slane %v5122, 7
      %v5125 = vshll.u32 %v4876, 16
      %v5127 = vor.u32 %v5124, %v5125
      %v5128 = vsel %vm2099, %v5120, %v5127
      %v5129 = vrot.slane %v5124, 4
      %v5131 = vshrl.u32 %v4877, 16
      %v5133 = vrot.slane %v5131, 7
      %v5134 = vshll.u32 %v4877, 16
      %v5136 = vor.u32 %v5133, %v5134
      %v5137 = vsel %vm2099, %v5129, %v5136
      %v5138 = vrot.slane %v5133, 4
      %v5140 = vshrl.u32 %v4878, 16
      %v5142 = vrot.slane %v5140, 7
      %v5143 = vshll.u32 %v4878, 16
      %v5145 = vor.u32 %v5142, %v5143
      %v5146 = vsel %vm2099, %v5138, %v5145
      %v5147 = vrot.slane %v5142, 4
      %v5149 = vshrl.u32 %v4879, 16
      %v5151 = vrot.slane %v5149, 7
      %v5152 = vshll.u32 %v4879, 16
      %v5154 = vor.u32 %v5151, %v5152
      %v5155 = vsel %vm2099, %v5147, %v5154
      %v5156 = vrot.slane %v5151, 4
      %v5158 = vshrl.u32 %v4880, 16
      %v5160 = vrot.slane %v5158, 7
      %v5161 = vshll.u32 %v4880, 16
      %v5163 = vor.u32 %v5160, %v5161
      %v5164 = vsel %vm2099, %v5156, %v5163
      %v5165 = vrot.slane %v5160, 4
      %v5167 = vshrl.u32 %v4881, 16
      %v5169 = vrot.slane %v5167, 7
      %v5170 = vshll.u32 %v4881, 16
      %v5172 = vor.u32 %v5169, %v5170
      %v5173 = vsel %vm2099, %v5165, %v5172
      %5174 = vrot.lane.b32.xlu0 %v4894, 28
      %v5175 = vpop.permute.xlu0 %5174
      %5176 = vrot.lane.b32.xlu0 %v4903, 28
      %v5177 = vpop.permute.xlu0 %5176
      %5178 = vrot.lane.b32.xlu0 %v4912, 28
      %v5179 = vpop.permute.xlu0 %5178
      %5180 = vrot.lane.b32.xlu0 %v4921, 28
      %v5181 = vpop.permute.xlu0 %5180
      %5182 = vrot.lane.b32.xlu0 %v4930, 28
      %v5183 = vpop.permute.xlu0 %5182
      %5184 = vrot.lane.b32.xlu0 %v4939, 28
      %v5185 = vpop.permute.xlu0 %5184
      %5186 = vrot.lane.b32.xlu0 %v4948, 28
      %v5187 = vpop.permute.xlu0 %5186
      %5188 = vrot.lane.b32.xlu0 %v4957, 28
      %v5189 = vpop.permute.xlu0 %5188
      %5190 = vrot.lane.b32.xlu0 %v4966, 28
      %v5191 = vpop.permute.xlu0 %5190
      %5192 = vrot.lane.b32.xlu0 %v4975, 28
      %v5193 = vpop.permute.xlu0 %5192
      %5194 = vrot.lane.b32.xlu0 %v4984, 28
      %v5195 = vpop.permute.xlu0 %5194
      %5196 = vrot.lane.b32.xlu0 %v4993, 28
      %v5197 = vpop.permute.xlu0 %5196
      %5198 = vrot.lane.b32.xlu0 %v5002, 28
      %v5199 = vpop.permute.xlu0 %5198
      %5200 = vrot.lane.b32.xlu0 %v5011, 28
      %v5201 = vpop.permute.xlu0 %5200
      %5202 = vrot.lane.b32.xlu0 %v5020, 28
      %v5203 = vpop.permute.xlu0 %5202
      %5204 = vrot.lane.b32.xlu0 %v5029, 28
      %v5205 = vpop.permute.xlu0 %5204
      %5206 = vrot.lane.b32.xlu0 %v5038, 28
      %v5207 = vpop.permute.xlu0 %5206
      %5208 = vrot.lane.b32.xlu0 %v5047, 28
      %v5209 = vpop.permute.xlu0 %5208
      %5210 = vrot.lane.b32.xlu0 %v5056, 28
      %v5211 = vpop.permute.xlu0 %5210
      %5212 = vrot.lane.b32.xlu0 %v5065, 28
      %v5213 = vpop.permute.xlu0 %5212
      %5214 = vrot.lane.b32.xlu0 %v5074, 28
      %v5215 = vpop.permute.xlu0 %5214
      %5216 = vrot.lane.b32.xlu0 %v5083, 28
      %v5217 = vpop.permute.xlu0 %5216
      %5218 = vrot.lane.b32.xlu0 %v5092, 28
      %v5219 = vpop.permute.xlu0 %5218
      %5220 = vrot.lane.b32.xlu0 %v5101, 28
      %v5221 = vpop.permute.xlu0 %5220
      %5222 = vrot.lane.b32.xlu0 %v5110, 28
      %v5223 = vpop.permute.xlu0 %5222
      %5224 = vrot.lane.b32.xlu0 %v5119, 28
      %v5225 = vpop.permute.xlu0 %5224
      %5226 = vrot.lane.b32.xlu0 %v5128, 28
      %v5227 = vpop.permute.xlu0 %5226
      %5228 = vrot.lane.b32.xlu0 %v5137, 28
      %v5229 = vpop.permute.xlu0 %5228
      %5230 = vrot.lane.b32.xlu0 %v5146, 28
      %v5231 = vpop.permute.xlu0 %5230
      %5232 = vrot.lane.b32.xlu0 %v5155, 28
      %v5233 = vpop.permute.xlu0 %5232
      %5234 = vrot.lane.b32.xlu0 %v5164, 28
      %v5235 = vpop.permute.xlu0 %5234
      %5236 = vrot.lane.b32.xlu0 %v5173, 28
      %v5237 = vpop.permute.xlu0 %5236
      %vm5270 = vcmask 257248
      %5271 = vst.msk [vmem:[#allocation3] sm:$0xf] %vm5270, %v5175
      %5272 = vst.msk [vmem:[#allocation3 + $0x4] sm:$0xf] %vm5270, %v5177
      %5273 = vst.msk [vmem:[#allocation3 + $0x8] sm:$0xf] %vm5270, %v5179
      %5274 = vst.msk [vmem:[#allocation3 + $0xc] sm:$0xf] %vm5270, %v5181
      %5275 = vst.msk [vmem:[#allocation3 + $0x10] sm:$0xf] %vm5270, %v5183
      %5276 = vst.msk [vmem:[#allocation3 + $0x14] sm:$0xf] %vm5270, %v5185
      %5277 = vst.msk [vmem:[#allocation3 + $0x18] sm:$0xf] %vm5270, %v5187
      %5278 = vst.msk [vmem:[#allocation3 + $0x1c] sm:$0xf] %vm5270, %v5189
      %5279 = vst.msk [vmem:[#allocation3 + $0x20] sm:$0xf] %vm5270, %v5191
      %5280 = vst.msk [vmem:[#allocation3 + $0x24] sm:$0xf] %vm5270, %v5193
      %5281 = vst.msk [vmem:[#allocation3 + $0x28] sm:$0xf] %vm5270, %v5195
      %5282 = vst.msk [vmem:[#allocation3 + $0x2c] sm:$0xf] %vm5270, %v5197
      %5283 = vst.msk [vmem:[#allocation3 + $0x30] sm:$0xf] %vm5270, %v5199
      %5284 = vst.msk [vmem:[#allocation3 + $0x34] sm:$0xf] %vm5270, %v5201
      %5285 = vst.msk [vmem:[#allocation3 + $0x38] sm:$0xf] %vm5270, %v5203
      %5286 = vst.msk [vmem:[#allocation3 + $0x3c] sm:$0xf] %vm5270, %v5205
      %5287 = vst.msk [vmem:[#allocation3 + $0x40] sm:$0xf] %vm5270, %v5207
      %5288 = vst.msk [vmem:[#allocation3 + $0x44] sm:$0xf] %vm5270, %v5209
      %5289 = vst.msk [vmem:[#allocation3 + $0x48] sm:$0xf] %vm5270, %v5211
      %5290 = vst.msk [vmem:[#allocation3 + $0x4c] sm:$0xf] %vm5270, %v5213
      %5291 = vst.msk [vmem:[#allocation3 + $0x50] sm:$0xf] %vm5270, %v5215
      %5292 = vst.msk [vmem:[#allocation3 + $0x54] sm:$0xf] %vm5270, %v5217
      %5293 = vst.msk [vmem:[#allocation3 + $0x58] sm:$0xf] %vm5270, %v5219
      %5294 = vst.msk [vmem:[#allocation3 + $0x5c] sm:$0xf] %vm5270, %v5221
      %5295 = vst.msk [vmem:[#allocation3 + $0x60] sm:$0xf] %vm5270, %v5223
      %5296 = vst.msk [vmem:[#allocation3 + $0x64] sm:$0xf] %vm5270, %v5225
      %5297 = vst.msk [vmem:[#allocation3 + $0x68] sm:$0xf] %vm5270, %v5227
      %5298 = vst.msk [vmem:[#allocation3 + $0x6c] sm:$0xf] %vm5270, %v5229
      %5299 = vst.msk [vmem:[#allocation3 + $0x70] sm:$0xf] %vm5270, %v5231
      %5300 = vst.msk [vmem:[#allocation3 + $0x74] sm:$0xf] %vm5270, %v5233
      %5301 = vst.msk [vmem:[#allocation3 + $0x78] sm:$0xf] %vm5270, %v5235
      %5302 = vst.msk [vmem:[#allocation3 + $0x7c] sm:$0xf] %vm5270, %v5237
      %v5303 = vld [vmem:[#allocation2 + $0x14] sm:$0xf]
      %v5304 = vld [vmem:[#allocation2 + $0x18] sm:$0xf]
      %v5305 = vld [vmem:[#allocation2 + $0x1c] sm:$0xf]
      %v5306 = vld [vmem:[#allocation2 + $0x20] sm:$0xf]
      %v5307 = vld [vmem:[#allocation2 + $0x24] sm:$0xf]
      %v5308 = vld [vmem:[#allocation2 + $0x28] sm:$0xf]
      %v5309 = vld [vmem:[#allocation2 + $0x2c] sm:$0xf]
      %v5310 = vld [vmem:[#allocation2 + $0x30] sm:$0xf]
      %v5311 = vld [vmem:[#allocation2 + $0x34] sm:$0xf]
      %v5312 = vld [vmem:[#allocation2 + $0x38] sm:$0xf]
      %v5313 = vld [vmem:[#allocation2 + $0x3c] sm:$0xf]
      %v5314 = vld [vmem:[#allocation2 + $0x40] sm:$0xf]
      %v5315 = vld [vmem:[#allocation2 + $0x44] sm:$0xf]
      %v5316 = vld [vmem:[#allocation2 + $0x48] sm:$0xf]
      %v5317 = vld [vmem:[#allocation2 + $0x4c] sm:$0xf]
      %v5318 = vld [vmem:[#allocation2 + $0x50] sm:$0xf]
      %v5319 = vld [vmem:[#allocation2 + $0x54] sm:$0xf]
      %v5320 = vld [vmem:[#allocation2 + $0x58] sm:$0xf]
      %v5321 = vld [vmem:[#allocation2 + $0x5c] sm:$0xf]
      %v5322 = vld [vmem:[#allocation2 + $0x60] sm:$0xf]
      %v5323 = vld [vmem:[#allocation2 + $0x64] sm:$0xf]
      %v5324 = vld [vmem:[#allocation2 + $0x68] sm:$0xf]
      %v5325 = vld [vmem:[#allocation2 + $0x6c] sm:$0xf]
      %v5326 = vld [vmem:[#allocation2 + $0x70] sm:$0xf]
      %v5327 = vld [vmem:[#allocation2 + $0x74] sm:$0xf]
      %v5328 = vld [vmem:[#allocation2 + $0x78] sm:$0xf]
      %v5329 = vld [vmem:[#allocation2 + $0x7c] sm:$0xf]
      %v5330 = vld [vmem:[#allocation2 + $0x80] sm:$0xf]
      %v5331 = vld [vmem:[#allocation2 + $0x84] sm:$0xf]
      %v5332 = vld [vmem:[#allocation2 + $0x88] sm:$0xf]
      %v5333 = vld [vmem:[#allocation2 + $0x8c] sm:$0xf]
      %v5334 = vld [vmem:[#allocation2 + $0x90] sm:$0xf]
      %5367 = vrot.lane.b32.xlu0 %v5303, 32
      %v5368 = vpop.permute.xlu0 %5367
      %5369 = vrot.lane.b32.xlu0 %v5304, 32
      %v5370 = vpop.permute.xlu0 %5369
      %5371 = vrot.lane.b32.xlu0 %v5305, 32
      %v5372 = vpop.permute.xlu0 %5371
      %5373 = vrot.lane.b32.xlu0 %v5306, 32
      %v5374 = vpop.permute.xlu0 %5373
      %5375 = vrot.lane.b32.xlu0 %v5307, 32
      %v5376 = vpop.permute.xlu0 %5375
      %5377 = vrot.lane.b32.xlu0 %v5308, 32
      %v5378 = vpop.permute.xlu0 %5377
      %5379 = vrot.lane.b32.xlu0 %v5309, 32
      %v5380 = vpop.permute.xlu0 %5379
      %5381 = vrot.lane.b32.xlu0 %v5310, 32
      %v5382 = vpop.permute.xlu0 %5381
      %5383 = vrot.lane.b32.xlu0 %v5311, 32
      %v5384 = vpop.permute.xlu0 %5383
      %5385 = vrot.lane.b32.xlu0 %v5312, 32
      %v5386 = vpop.permute.xlu0 %5385
      %5387 = vrot.lane.b32.xlu0 %v5313, 32
      %v5388 = vpop.permute.xlu0 %5387
      %5389 = vrot.lane.b32.xlu0 %v5314, 32
      %v5390 = vpop.permute.xlu0 %5389
      %5391 = vrot.lane.b32.xlu0 %v5315, 32
      %v5392 = vpop.permute.xlu0 %5391
      %5393 = vrot.lane.b32.xlu0 %v5316, 32
      %v5394 = vpop.permute.xlu0 %5393
      %5395 = vrot.lane.b32.xlu0 %v5317, 32
      %v5396 = vpop.permute.xlu0 %5395
      %5397 = vrot.lane.b32.xlu0 %v5318, 32
      %v5398 = vpop.permute.xlu0 %5397
      %5399 = vrot.lane.b32.xlu0 %v5319, 32
      %v5400 = vpop.permute.xlu0 %5399
      %5401 = vrot.lane.b32.xlu0 %v5320, 32
      %v5402 = vpop.permute.xlu0 %5401
      %5403 = vrot.lane.b32.xlu0 %v5321, 32
      %v5404 = vpop.permute.xlu0 %5403
      %5405 = vrot.lane.b32.xlu0 %v5322, 32
      %v5406 = vpop.permute.xlu0 %5405
      %5407 = vrot.lane.b32.xlu0 %v5323, 32
      %v5408 = vpop.permute.xlu0 %5407
      %5409 = vrot.lane.b32.xlu0 %v5324, 32
      %v5410 = vpop.permute.xlu0 %5409
      %5411 = vrot.lane.b32.xlu0 %v5325, 32
      %v5412 = vpop.permute.xlu0 %5411
      %5413 = vrot.lane.b32.xlu0 %v5326, 32
      %v5414 = vpop.permute.xlu0 %5413
      %5415 = vrot.lane.b32.xlu0 %v5327, 32
      %v5416 = vpop.permute.xlu0 %5415
      %5417 = vrot.lane.b32.xlu0 %v5328, 32
      %v5418 = vpop.permute.xlu0 %5417
      %5419 = vrot.lane.b32.xlu0 %v5329, 32
      %v5420 = vpop.permute.xlu0 %5419
      %5421 = vrot.lane.b32.xlu0 %v5330, 32
      %v5422 = vpop.permute.xlu0 %5421
      %5423 = vrot.lane.b32.xlu0 %v5331, 32
      %v5424 = vpop.permute.xlu0 %5423
      %5425 = vrot.lane.b32.xlu0 %v5332, 32
      %v5426 = vpop.permute.xlu0 %5425
      %5427 = vrot.lane.b32.xlu0 %v5333, 32
      %v5428 = vpop.permute.xlu0 %5427
      %5429 = vrot.lane.b32.xlu0 %v5334, 32
      %v5430 = vpop.permute.xlu0 %5429
      %vm5463 = vcmask 290048
      %5464 = vst.msk [vmem:[#allocation3] sm:$0xf] %vm5463, %v5368
      %5465 = vst.msk [vmem:[#allocation3 + $0x4] sm:$0xf] %vm5463, %v5370
      %5466 = vst.msk [vmem:[#allocation3 + $0x8] sm:$0xf] %vm5463, %v5372
      %5467 = vst.msk [vmem:[#allocation3 + $0xc] sm:$0xf] %vm5463, %v5374
      %5468 = vst.msk [vmem:[#allocation3 + $0x10] sm:$0xf] %vm5463, %v5376
      %5469 = vst.msk [vmem:[#allocation3 + $0x14] sm:$0xf] %vm5463, %v5378
      %5470 = vst.msk [vmem:[#allocation3 + $0x18] sm:$0xf] %vm5463, %v5380
      %5471 = vst.msk [vmem:[#allocation3 + $0x1c] sm:$0xf] %vm5463, %v5382
      %5472 = vst.msk [vmem:[#allocation3 + $0x20] sm:$0xf] %vm5463, %v5384
      %5473 = vst.msk [vmem:[#allocation3 + $0x24] sm:$0xf] %vm5463, %v5386
      %5474 = vst.msk [vmem:[#allocation3 + $0x28] sm:$0xf] %vm5463, %v5388
      %5475 = vst.msk [vmem:[#allocation3 + $0x2c] sm:$0xf] %vm5463, %v5390
      %5476 = vst.msk [vmem:[#allocation3 + $0x30] sm:$0xf] %vm5463, %v5392
      %5477 = vst.msk [vmem:[#allocation3 + $0x34] sm:$0xf] %vm5463, %v5394
      %5478 = vst.msk [vmem:[#allocation3 + $0x38] sm:$0xf] %vm5463, %v5396
      %5479 = vst.msk [vmem:[#allocation3 + $0x3c] sm:$0xf] %vm5463, %v5398
      %5480 = vst.msk [vmem:[#allocation3 + $0x40] sm:$0xf] %vm5463, %v5400
      %5481 = vst.msk [vmem:[#allocation3 + $0x44] sm:$0xf] %vm5463, %v5402
      %5482 = vst.msk [vmem:[#allocation3 + $0x48] sm:$0xf] %vm5463, %v5404
      %5483 = vst.msk [vmem:[#allocation3 + $0x4c] sm:$0xf] %vm5463, %v5406
      %5484 = vst.msk [vmem:[#allocation3 + $0x50] sm:$0xf] %vm5463, %v5408
      %5485 = vst.msk [vmem:[#allocation3 + $0x54] sm:$0xf] %vm5463, %v5410
      %5486 = vst.msk [vmem:[#allocation3 + $0x58] sm:$0xf] %vm5463, %v5412
      %5487 = vst.msk [vmem:[#allocation3 + $0x5c] sm:$0xf] %vm5463, %v5414
      %5488 = vst.msk [vmem:[#allocation3 + $0x60] sm:$0xf] %vm5463, %v5416
      %5489 = vst.msk [vmem:[#allocation3 + $0x64] sm:$0xf] %vm5463, %v5418
      %5490 = vst.msk [vmem:[#allocation3 + $0x68] sm:$0xf] %vm5463, %v5420
      %5491 = vst.msk [vmem:[#allocation3 + $0x6c] sm:$0xf] %vm5463, %v5422
      %5492 = vst.msk [vmem:[#allocation3 + $0x70] sm:$0xf] %vm5463, %v5424
      %5493 = vst.msk [vmem:[#allocation3 + $0x74] sm:$0xf] %vm5463, %v5426
      %5494 = vst.msk [vmem:[#allocation3 + $0x78] sm:$0xf] %vm5463, %v5428
      %5495 = vst.msk [vmem:[#allocation3 + $0x7c] sm:$0xf] %vm5463, %v5430
      %v5496 = vld [vmem:[#allocation2 + $0x14] sm:$0xf]
      %v5497 = vld [vmem:[#allocation2 + $0x18] sm:$0xf]
      %v5498 = vld [vmem:[#allocation2 + $0x1c] sm:$0xf]
      %v5499 = vld [vmem:[#allocation2 + $0x20] sm:$0xf]
      %v5500 = vld [vmem:[#allocation2 + $0x24] sm:$0xf]
      %v5501 = vld [vmem:[#allocation2 + $0x28] sm:$0xf]
      %v5502 = vld [vmem:[#allocation2 + $0x2c] sm:$0xf]
      %v5503 = vld [vmem:[#allocation2 + $0x30] sm:$0xf]
      %v5504 = vld [vmem:[#allocation2 + $0x34] sm:$0xf]
      %v5505 = vld [vmem:[#allocation2 + $0x38] sm:$0xf]
      %v5506 = vld [vmem:[#allocation2 + $0x3c] sm:$0xf]
      %v5507 = vld [vmem:[#allocation2 + $0x40] sm:$0xf]
      %v5508 = vld [vmem:[#allocation2 + $0x44] sm:$0xf]
      %v5509 = vld [vmem:[#allocation2 + $0x48] sm:$0xf]
      %v5510 = vld [vmem:[#allocation2 + $0x4c] sm:$0xf]
      %v5511 = vld [vmem:[#allocation2 + $0x50] sm:$0xf]
      %v5512 = vld [vmem:[#allocation2 + $0x54] sm:$0xf]
      %v5513 = vld [vmem:[#allocation2 + $0x58] sm:$0xf]
      %v5514 = vld [vmem:[#allocation2 + $0x5c] sm:$0xf]
      %v5515 = vld [vmem:[#allocation2 + $0x60] sm:$0xf]
      %v5516 = vld [vmem:[#allocation2 + $0x64] sm:$0xf]
      %v5517 = vld [vmem:[#allocation2 + $0x68] sm:$0xf]
      %v5518 = vld [vmem:[#allocation2 + $0x6c] sm:$0xf]
      %v5519 = vld [vmem:[#allocation2 + $0x70] sm:$0xf]
      %v5520 = vld [vmem:[#allocation2 + $0x74] sm:$0xf]
      %v5521 = vld [vmem:[#allocation2 + $0x78] sm:$0xf]
      %v5522 = vld [vmem:[#allocation2 + $0x7c] sm:$0xf]
      %v5523 = vld [vmem:[#allocation2 + $0x80] sm:$0xf]
      %v5524 = vld [vmem:[#allocation2 + $0x84] sm:$0xf]
      %v5525 = vld [vmem:[#allocation2 + $0x88] sm:$0xf]
      %v5526 = vld [vmem:[#allocation2 + $0x8c] sm:$0xf]
      %v5527 = vld [vmem:[#allocation2 + $0x90] sm:$0xf]
      %v5528 = vld [vmem:[#allocation2 + $0x94] sm:$0x1]
      %v5529 = vsel %vm3162, %v5496, 0
      %v5530 = vsel %vm3163, %v5497, 0
      %v5531 = vsel %vm3164, %v5498, 0
      %v5532 = vsel %vm3165, %v5499, 0
      %v5533 = vsel %vm3166, %v5500, 0
      %v5534 = vsel %vm3167, %v5501, 0
      %v5535 = vsel %vm3168, %v5502, 0
      %v5536 = vsel %vm3169, %v5503, 0
      %v5537 = vsel %vm3170, %v5504, 0
      %v5538 = vsel %vm3171, %v5505, 0
      %v5539 = vsel %vm3172, %v5506, 0
      %v5540 = vsel %vm3173, %v5507, 0
      %v5541 = vsel %vm3174, %v5508, 0
      %v5542 = vsel %vm3175, %v5509, 0
      %v5543 = vsel %vm3176, %v5510, 0
      %v5544 = vsel %vm3177, %v5511, 0
      %v5545 = vsel %vm3178, %v5512, 0
      %v5546 = vsel %vm3179, %v5513, 0
      %v5547 = vsel %vm3180, %v5514, 0
      %v5548 = vsel %vm3181, %v5515, 0
      %v5549 = vsel %vm3182, %v5516, 0
      %v5550 = vsel %vm3183, %v5517, 0
      %v5551 = vsel %vm3184, %v5518, 0
      %v5552 = vsel %vm3185, %v5519, 0
      %v5553 = vsel %vm3186, %v5520, 0
      %v5554 = vsel %vm3187, %v5521, 0
      %v5555 = vsel %vm3188, %v5522, 0
      %v5556 = vsel %vm3189, %v5523, 0
      %v5557 = vsel %vm3190, %v5524, 0
      %v5558 = vsel %vm3191, %v5525, 0
      %v5559 = vsel %vm3192, %v5526, 0
      %v5560 = vsel %vm3193, %v5527, 0
      %v5561 = vsel %vm3194, %v5528, 0
      %v5563 = vshrl.u32 %v5529, 16
      %v5565 = vrot.slane %v5563, 4
      %v5566 = vshll.u32 %v5529, 16
      %v5568 = vrot.slane %v5566, 5
      %v5569 = vor.u32 %v5565, %v5568
      %v5570 = vrot.slane %v5569, 4
      %v5572 = vshll.u32 %v5530, 16
      %v5574 = vrot.slane %v5572, 5
      %v5575 = vsel %vm1712, %v5570, %v5574
      %v5576 = vshrl.u32 %v5530, 16
      %v5578 = vrot.slane %v5576, 4
      %v5579 = vor.u32 %v5578, %v5574
      %v5580 = vrot.slane %v5579, 4
      %v5582 = vshll.u32 %v5531, 16
      %v5584 = vrot.slane %v5582, 5
      %v5585 = vsel %vm1712, %v5580, %v5584
      %v5586 = vshrl.u32 %v5531, 16
      %v5588 = vrot.slane %v5586, 4
      %v5589 = vor.u32 %v5588, %v5584
      %v5590 = vrot.slane %v5589, 4
      %v5592 = vshll.u32 %v5532, 16
      %v5594 = vrot.slane %v5592, 5
      %v5595 = vsel %vm1712, %v5590, %v5594
      %v5596 = vshrl.u32 %v5532, 16
      %v5598 = vrot.slane %v5596, 4
      %v5599 = vor.u32 %v5598, %v5594
      %v5600 = vrot.slane %v5599, 4
      %v5602 = vshll.u32 %v5533, 16
      %v5604 = vrot.slane %v5602, 5
      %v5605 = vsel %vm1712, %v5600, %v5604
      %v5606 = vshrl.u32 %v5533, 16
      %v5608 = vrot.slane %v5606, 4
      %v5609 = vor.u32 %v5608, %v5604
      %v5610 = vrot.slane %v5609, 4
      %v5612 = vshll.u32 %v5534, 16
      %v5614 = vrot.slane %v5612, 5
      %v5615 = vsel %vm1712, %v5610, %v5614
      %v5616 = vshrl.u32 %v5534, 16
      %v5618 = vrot.slane %v5616, 4
      %v5619 = vor.u32 %v5618, %v5614
      %v5620 = vrot.slane %v5619, 4
      %v5622 = vshll.u32 %v5535, 16
      %v5624 = vrot.slane %v5622, 5
      %v5625 = vsel %vm1712, %v5620, %v5624
      %v5626 = vshrl.u32 %v5535, 16
      %v5628 = vrot.slane %v5626, 4
      %v5629 = vor.u32 %v5628, %v5624
      %v5630 = vrot.slane %v5629, 4
      %v5632 = vshll.u32 %v5536, 16
      %v5634 = vrot.slane %v5632, 5
      %v5635 = vsel %vm1712, %v5630, %v5634
      %v5636 = vshrl.u32 %v5536, 16
      %v5638 = vrot.slane %v5636, 4
      %v5639 = vor.u32 %v5638, %v5634
      %v5640 = vrot.slane %v5639, 4
      %v5642 = vshll.u32 %v5537, 16
      %v5644 = vrot.slane %v5642, 5
      %v5645 = vsel %vm1712, %v5640, %v5644
      %v5646 = vshrl.u32 %v5537, 16
      %v5648 = vrot.slane %v5646, 4
      %v5649 = vor.u32 %v5648, %v5644
      %v5650 = vrot.slane %v5649, 4
      %v5652 = vshll.u32 %v5538, 16
      %v5654 = vrot.slane %v5652, 5
      %v5655 = vsel %vm1712, %v5650, %v5654
      %v5656 = vshrl.u32 %v5538, 16
      %v5658 = vrot.slane %v5656, 4
      %v5659 = vor.u32 %v5658, %v5654
      %v5660 = vrot.slane %v5659, 4
      %v5662 = vshll.u32 %v5539, 16
      %v5664 = vrot.slane %v5662, 5
      %v5665 = vsel %vm1712, %v5660, %v5664
      %v5666 = vshrl.u32 %v5539, 16
      %v5668 = vrot.slane %v5666, 4
      %v5669 = vor.u32 %v5668, %v5664
      %v5670 = vrot.slane %v5669, 4
      %v5672 = vshll.u32 %v5540, 16
      %v5674 = vrot.slane %v5672, 5
      %v5675 = vsel %vm1712, %v5670, %v5674
      %v5676 = vshrl.u32 %v5540, 16
      %v5678 = vrot.slane %v5676, 4
      %v5679 = vor.u32 %v5678, %v5674
      %v5680 = vrot.slane %v5679, 4
      %v5682 = vshll.u32 %v5541, 16
      %v5684 = vrot.slane %v5682, 5
      %v5685 = vsel %vm1712, %v5680, %v5684
      %v5686 = vshrl.u32 %v5541, 16
      %v5688 = vrot.slane %v5686, 4
      %v5689 = vor.u32 %v5688, %v5684
      %v5690 = vrot.slane %v5689, 4
      %v5692 = vshll.u32 %v5542, 16
      %v5694 = vrot.slane %v5692, 5
      %v5695 = vsel %vm1712, %v5690, %v5694
      %v5696 = vshrl.u32 %v5542, 16
      %v5698 = vrot.slane %v5696, 4
      %v5699 = vor.u32 %v5698, %v5694
      %v5700 = vrot.slane %v5699, 4
      %v5702 = vshll.u32 %v5543, 16
      %v5704 = vrot.slane %v5702, 5
      %v5705 = vsel %vm1712, %v5700, %v5704
      %v5706 = vshrl.u32 %v5543, 16
      %v5708 = vrot.slane %v5706, 4
      %v5709 = vor.u32 %v5708, %v5704
      %v5710 = vrot.slane %v5709, 4
      %v5712 = vshll.u32 %v5544, 16
      %v5714 = vrot.slane %v5712, 5
      %v5715 = vsel %vm1712, %v5710, %v5714
      %v5716 = vshrl.u32 %v5544, 16
      %v5718 = vrot.slane %v5716, 4
      %v5719 = vor.u32 %v5718, %v5714
      %v5720 = vrot.slane %v5719, 4
      %v5722 = vshll.u32 %v5545, 16
      %v5724 = vrot.slane %v5722, 5
      %v5725 = vsel %vm1712, %v5720, %v5724
      %v5726 = vshrl.u32 %v5545, 16
      %v5728 = vrot.slane %v5726, 4
      %v5729 = vor.u32 %v5728, %v5724
      %v5730 = vrot.slane %v5729, 4
      %v5732 = vshll.u32 %v5546, 16
      %v5734 = vrot.slane %v5732, 5
      %v5735 = vsel %vm1712, %v5730, %v5734
      %v5736 = vshrl.u32 %v5546, 16
      %v5738 = vrot.slane %v5736, 4
      %v5739 = vor.u32 %v5738, %v5734
      %v5740 = vrot.slane %v5739, 4
      %v5742 = vshll.u32 %v5547, 16
      %v5744 = vrot.slane %v5742, 5
      %v5745 = vsel %vm1712, %v5740, %v5744
      %v5746 = vshrl.u32 %v5547, 16
      %v5748 = vrot.slane %v5746, 4
      %v5749 = vor.u32 %v5748, %v5744
      %v5750 = vrot.slane %v5749, 4
      %v5752 = vshll.u32 %v5548, 16
      %v5754 = vrot.slane %v5752, 5
      %v5755 = vsel %vm1712, %v5750, %v5754
      %v5756 = vshrl.u32 %v5548, 16
      %v5758 = vrot.slane %v5756, 4
      %v5759 = vor.u32 %v5758, %v5754
      %v5760 = vrot.slane %v5759, 4
      %v5762 = vshll.u32 %v5549, 16
      %v5764 = vrot.slane %v5762, 5
      %v5765 = vsel %vm1712, %v5760, %v5764
      %v5766 = vshrl.u32 %v5549, 16
      %v5768 = vrot.slane %v5766, 4
      %v5769 = vor.u32 %v5768, %v5764
      %v5770 = vrot.slane %v5769, 4
      %v5772 = vshll.u32 %v5550, 16
      %v5774 = vrot.slane %v5772, 5
      %v5775 = vsel %vm1712, %v5770, %v5774
      %v5776 = vshrl.u32 %v5550, 16
      %v5778 = vrot.slane %v5776, 4
      %v5779 = vor.u32 %v5778, %v5774
      %v5780 = vrot.slane %v5779, 4
      %v5782 = vshll.u32 %v5551, 16
      %v5784 = vrot.slane %v5782, 5
      %v5785 = vsel %vm1712, %v5780, %v5784
      %v5786 = vshrl.u32 %v5551, 16
      %v5788 = vrot.slane %v5786, 4
      %v5789 = vor.u32 %v5788, %v5784
      %v5790 = vrot.slane %v5789, 4
      %v5792 = vshll.u32 %v5552, 16
      %v5794 = vrot.slane %v5792, 5
      %v5795 = vsel %vm1712, %v5790, %v5794
      %v5796 = vshrl.u32 %v5552, 16
      %v5798 = vrot.slane %v5796, 4
      %v5799 = vor.u32 %v5798, %v5794
      %v5800 = vrot.slane %v5799, 4
      %v5802 = vshll.u32 %v5553, 16
      %v5804 = vrot.slane %v5802, 5
      %v5805 = vsel %vm1712, %v5800, %v5804
      %v5806 = vshrl.u32 %v5553, 16
      %v5808 = vrot.slane %v5806, 4
      %v5809 = vor.u32 %v5808, %v5804
      %v5810 = vrot.slane %v5809, 4
      %v5812 = vshll.u32 %v5554, 16
      %v5814 = vrot.slane %v5812, 5
      %v5815 = vsel %vm1712, %v5810, %v5814
      %v5816 = vshrl.u32 %v5554, 16
      %v5818 = vrot.slane %v5816, 4
      %v5819 = vor.u32 %v5818, %v5814
      %v5820 = vrot.slane %v5819, 4
      %v5822 = vshll.u32 %v5555, 16
      %v5824 = vrot.slane %v5822, 5
      %v5825 = vsel %vm1712, %v5820, %v5824
      %v5826 = vshrl.u32 %v5555, 16
      %v5828 = vrot.slane %v5826, 4
      %v5829 = vor.u32 %v5828, %v5824
      %v5830 = vrot.slane %v5829, 4
      %v5832 = vshll.u32 %v5556, 16
      %v5834 = vrot.slane %v5832, 5
      %v5835 = vsel %vm1712, %v5830, %v5834
      %v5836 = vshrl.u32 %v5556, 16
      %v5838 = vrot.slane %v5836, 4
      %v5839 = vor.u32 %v5838, %v5834
      %v5840 = vrot.slane %v5839, 4
      %v5842 = vshll.u32 %v5557, 16
      %v5844 = vrot.slane %v5842, 5
      %v5845 = vsel %vm1712, %v5840, %v5844
      %v5846 = vshrl.u32 %v5557, 16
      %v5848 = vrot.slane %v5846, 4
      %v5849 = vor.u32 %v5848, %v5844
      %v5850 = vrot.slane %v5849, 4
      %v5852 = vshll.u32 %v5558, 16
      %v5854 = vrot.slane %v5852, 5
      %v5855 = vsel %vm1712, %v5850, %v5854
      %v5856 = vshrl.u32 %v5558, 16
      %v5858 = vrot.slane %v5856, 4
      %v5859 = vor.u32 %v5858, %v5854
      %v5860 = vrot.slane %v5859, 4
      %v5862 = vshll.u32 %v5559, 16
      %v5864 = vrot.slane %v5862, 5
      %v5865 = vsel %vm1712, %v5860, %v5864
      %v5866 = vshrl.u32 %v5559, 16
      %v5868 = vrot.slane %v5866, 4
      %v5869 = vor.u32 %v5868, %v5864
      %v5870 = vrot.slane %v5869, 4
      %v5872 = vshll.u32 %v5560, 16
      %v5874 = vrot.slane %v5872, 5
      %v5875 = vsel %vm1712, %v5870, %v5874
      %v5876 = vshrl.u32 %v5560, 16
      %v5878 = vrot.slane %v5876, 4
      %v5879 = vor.u32 %v5878, %v5874
      %v5880 = vrot.slane %v5879, 4
      %v5882 = vshll.u32 %v5561, 16
      %v5884 = vrot.slane %v5882, 5
      %v5885 = vsel %vm1712, %v5880, %v5884
      %5886 = vrot.lane.b32.xlu0 %v5575, 36
      %v5887 = vpop.permute.xlu0 %5886
      %5888 = vrot.lane.b32.xlu0 %v5585, 36
      %v5889 = vpop.permute.xlu0 %5888
      %5890 = vrot.lane.b32.xlu0 %v5595, 36
      %v5891 = vpop.permute.xlu0 %5890
      %5892 = vrot.lane.b32.xlu0 %v5605, 36
      %v5893 = vpop.permute.xlu0 %5892
      %5894 = vrot.lane.b32.xlu0 %v5615, 36
      %v5895 = vpop.permute.xlu0 %5894
      %5896 = vrot.lane.b32.xlu0 %v5625, 36
      %v5897 = vpop.permute.xlu0 %5896
      %5898 = vrot.lane.b32.xlu0 %v5635, 36
      %v5899 = vpop.permute.xlu0 %5898
      %5900 = vrot.lane.b32.xlu0 %v5645, 36
      %v5901 = vpop.permute.xlu0 %5900
      %5902 = vrot.lane.b32.xlu0 %v5655, 36
      %v5903 = vpop.permute.xlu0 %5902
      %5904 = vrot.lane.b32.xlu0 %v5665, 36
      %v5905 = vpop.permute.xlu0 %5904
      %5906 = vrot.lane.b32.xlu0 %v5675, 36
      %v5907 = vpop.permute.xlu0 %5906
      %5908 = vrot.lane.b32.xlu0 %v5685, 36
      %v5909 = vpop.permute.xlu0 %5908
      %5910 = vrot.lane.b32.xlu0 %v5695, 36
      %v5911 = vpop.permute.xlu0 %5910
      %5912 = vrot.lane.b32.xlu0 %v5705, 36
      %v5913 = vpop.permute.xlu0 %5912
      %5914 = vrot.lane.b32.xlu0 %v5715, 36
      %v5915 = vpop.permute.xlu0 %5914
      %5916 = vrot.lane.b32.xlu0 %v5725, 36
      %v5917 = vpop.permute.xlu0 %5916
      %5918 = vrot.lane.b32.xlu0 %v5735, 36
      %v5919 = vpop.permute.xlu0 %5918
      %5920 = vrot.lane.b32.xlu0 %v5745, 36
      %v5921 = vpop.permute.xlu0 %5920
      %5922 = vrot.lane.b32.xlu0 %v5755, 36
      %v5923 = vpop.permute.xlu0 %5922
      %5924 = vrot.lane.b32.xlu0 %v5765, 36
      %v5925 = vpop.permute.xlu0 %5924
      %5926 = vrot.lane.b32.xlu0 %v5775, 36
      %v5927 = vpop.permute.xlu0 %5926
      %5928 = vrot.lane.b32.xlu0 %v5785, 36
      %v5929 = vpop.permute.xlu0 %5928
      %5930 = vrot.lane.b32.xlu0 %v5795, 36
      %v5931 = vpop.permute.xlu0 %5930
      %5932 = vrot.lane.b32.xlu0 %v5805, 36
      %v5933 = vpop.permute.xlu0 %5932
      %5934 = vrot.lane.b32.xlu0 %v5815, 36
      %v5935 = vpop.permute.xlu0 %5934
      %5936 = vrot.lane.b32.xlu0 %v5825, 36
      %v5937 = vpop.permute.xlu0 %5936
      %5938 = vrot.lane.b32.xlu0 %v5835, 36
      %v5939 = vpop.permute.xlu0 %5938
      %5940 = vrot.lane.b32.xlu0 %v5845, 36
      %v5941 = vpop.permute.xlu0 %5940
      %5942 = vrot.lane.b32.xlu0 %v5855, 36
      %v5943 = vpop.permute.xlu0 %5942
      %5944 = vrot.lane.b32.xlu0 %v5865, 36
      %v5945 = vpop.permute.xlu0 %5944
      %5946 = vrot.lane.b32.xlu0 %v5875, 36
      %v5947 = vpop.permute.xlu0 %5946
      %5948 = vrot.lane.b32.xlu0 %v5885, 36
      %v5949 = vpop.permute.xlu0 %5948
      %vm5982 = vcmask 322848
      %5983 = vst.msk [vmem:[#allocation3] sm:$0xf] %vm5982, %v5887
      %5984 = vst.msk [vmem:[#allocation3 + $0x4] sm:$0xf] %vm5982, %v5889
      %5985 = vst.msk [vmem:[#allocation3 + $0x8] sm:$0xf] %vm5982, %v5891
      %5986 = vst.msk [vmem:[#allocation3 + $0xc] sm:$0xf] %vm5982, %v5893
      %5987 = vst.msk [vmem:[#allocation3 + $0x10] sm:$0xf] %vm5982, %v5895
      %5988 = vst.msk [vmem:[#allocation3 + $0x14] sm:$0xf] %vm5982, %v5897
      %5989 = vst.msk [vmem:[#allocation3 + $0x18] sm:$0xf] %vm5982, %v5899
      %5990 = vst.msk [vmem:[#allocation3 + $0x1c] sm:$0xf] %vm5982, %v5901
      %5991 = vst.msk [vmem:[#allocation3 + $0x20] sm:$0xf] %vm5982, %v5903
      %5992 = vst.msk [vmem:[#allocation3 + $0x24] sm:$0xf] %vm5982, %v5905
      %5993 = vst.msk [vmem:[#allocation3 + $0x28] sm:$0xf] %vm5982, %v5907
      %5994 = vst.msk [vmem:[#allocation3 + $0x2c] sm:$0xf] %vm5982, %v5909
      %5995 = vst.msk [vmem:[#allocation3 + $0x30] sm:$0xf] %vm5982, %v5911
      %5996 = vst.msk [vmem:[#allocation3 + $0x34] sm:$0xf] %vm5982, %v5913
      %5997 = vst.msk [vmem:[#allocation3 + $0x38] sm:$0xf] %vm5982, %v5915
      %5998 = vst.msk [vmem:[#allocation3 + $0x3c] sm:$0xf] %vm5982, %v5917
      %5999 = vst.msk [vmem:[#allocation3 + $0x40] sm:$0xf] %vm5982, %v5919
      %6000 = vst.msk [vmem:[#allocation3 + $0x44] sm:$0xf] %vm5982, %v5921
      %6001 = vst.msk [vmem:[#allocation3 + $0x48] sm:$0xf] %vm5982, %v5923
      %6002 = vst.msk [vmem:[#allocation3 + $0x4c] sm:$0xf] %vm5982, %v5925
      %6003 = vst.msk [vmem:[#allocation3 + $0x50] sm:$0xf] %vm5982, %v5927
      %6004 = vst.msk [vmem:[#allocation3 + $0x54] sm:$0xf] %vm5982, %v5929
      %6005 = vst.msk [vmem:[#allocation3 + $0x58] sm:$0xf] %vm5982, %v5931
      %6006 = vst.msk [vmem:[#allocation3 + $0x5c] sm:$0xf] %vm5982, %v5933
      %6007 = vst.msk [vmem:[#allocation3 + $0x60] sm:$0xf] %vm5982, %v5935
      %6008 = vst.msk [vmem:[#allocation3 + $0x64] sm:$0xf] %vm5982, %v5937
      %6009 = vst.msk [vmem:[#allocation3 + $0x68] sm:$0xf] %vm5982, %v5939
      %6010 = vst.msk [vmem:[#allocation3 + $0x6c] sm:$0xf] %vm5982, %v5941
      %6011 = vst.msk [vmem:[#allocation3 + $0x70] sm:$0xf] %vm5982, %v5943
      %6012 = vst.msk [vmem:[#allocation3 + $0x74] sm:$0xf] %vm5982, %v5945
      %6013 = vst.msk [vmem:[#allocation3 + $0x78] sm:$0xf] %vm5982, %v5947
      %6014 = vst.msk [vmem:[#allocation3 + $0x7c] sm:$0xf] %vm5982, %v5949
      %v6015 = vld [vmem:[#allocation3] sm:$0xf]
      %v6016 = vld [vmem:[#allocation3 + $0x4] sm:$0xf]
      %v6017 = vld [vmem:[#allocation3 + $0x8] sm:$0xf]
      %v6018 = vld [vmem:[#allocation3 + $0xc] sm:$0xf]
      %v6019 = vld [vmem:[#allocation3 + $0x10] sm:$0xf]
      %v6020 = vld [vmem:[#allocation3 + $0x14] sm:$0xf]
      %v6021 = vld [vmem:[#allocation3 + $0x18] sm:$0xf]
      %v6022 = vld [vmem:[#allocation3 + $0x1c] sm:$0xf]
      %v6023 = vld [vmem:[#allocation3 + $0x20] sm:$0xf]
      %v6024 = vld [vmem:[#allocation3 + $0x24] sm:$0xf]
      %v6025 = vld [vmem:[#allocation3 + $0x28] sm:$0xf]
      %v6026 = vld [vmem:[#allocation3 + $0x2c] sm:$0xf]
      %v6027 = vld [vmem:[#allocation3 + $0x30] sm:$0xf]
      %v6028 = vld [vmem:[#allocation3 + $0x34] sm:$0xf]
      %v6029 = vld [vmem:[#allocation3 + $0x38] sm:$0xf]
      %v6030 = vld [vmem:[#allocation3 + $0x3c] sm:$0xf]
      %v6031 = vld [vmem:[#allocation3 + $0x40] sm:$0xf]
      %v6032 = vld [vmem:[#allocation3 + $0x44] sm:$0xf]
      %v6033 = vld [vmem:[#allocation3 + $0x48] sm:$0xf]
      %v6034 = vld [vmem:[#allocation3 + $0x4c] sm:$0xf]
      %v6035 = vld [vmem:[#allocation3 + $0x50] sm:$0xf]
      %v6036 = vld [vmem:[#allocation3 + $0x54] sm:$0xf]
      %v6037 = vld [vmem:[#allocation3 + $0x58] sm:$0xf]
      %v6038 = vld [vmem:[#allocation3 + $0x5c] sm:$0xf]
      %v6039 = vld [vmem:[#allocation3 + $0x60] sm:$0xf]
      %v6040 = vld [vmem:[#allocation3 + $0x64] sm:$0xf]
      %v6041 = vld [vmem:[#allocation3 + $0x68] sm:$0xf]
      %v6042 = vld [vmem:[#allocation3 + $0x6c] sm:$0xf]
      %v6043 = vld [vmem:[#allocation3 + $0x70] sm:$0xf]
      %v6044 = vld [vmem:[#allocation3 + $0x74] sm:$0xf]
      %v6045 = vld [vmem:[#allocation3 + $0x78] sm:$0xf]
      %v6046 = vld [vmem:[#allocation3 + $0x7c] sm:$0xf]
      %v6047 = vld [vmem:[%s4] sm:$0xf]
      %v6048 = vld [vmem:[%s4 + $0x4] sm:$0xf]
      %v6049 = vld [vmem:[%s4 + $0x8] sm:$0xf]
      %v6050 = vld [vmem:[%s4 + $0xc] sm:$0xf]
      %v6051 = vld [vmem:[%s4 + $0x10] sm:$0xf]
      %v6084 = vunpack.c.l.b16 %v6015
      %v6085 = vunpack.c.l.b16 %v6016
      %v6086 = vunpack.c.l.b16 %v6017
      %v6087 = vunpack.c.l.b16 %v6018
      %v6088 = vunpack.c.l.b16 %v6019
      %v6089 = vunpack.c.l.b16 %v6020
      %v6090 = vunpack.c.l.b16 %v6021
      %v6091 = vunpack.c.l.b16 %v6022
      %v6092 = vunpack.c.l.b16 %v6023
      %v6093 = vunpack.c.l.b16 %v6024
      %v6094 = vunpack.c.l.b16 %v6025
      %v6095 = vunpack.c.l.b16 %v6026
      %v6096 = vunpack.c.l.b16 %v6027
      %v6097 = vunpack.c.l.b16 %v6028
      %v6098 = vunpack.c.l.b16 %v6029
      %v6099 = vunpack.c.l.b16 %v6030
      %v6100 = vunpack.c.l.b16 %v6031
      %v6101 = vunpack.c.l.b16 %v6032
      %v6102 = vunpack.c.l.b16 %v6033
      %v6103 = vunpack.c.l.b16 %v6034
      %v6104 = vunpack.c.l.b16 %v6035
      %v6105 = vunpack.c.l.b16 %v6036
      %v6106 = vunpack.c.l.b16 %v6037
      %v6107 = vunpack.c.l.b16 %v6038
      %v6108 = vunpack.c.l.b16 %v6039
      %v6109 = vunpack.c.l.b16 %v6040
      %v6110 = vunpack.c.l.b16 %v6041
      %v6111 = vunpack.c.l.b16 %v6042
      %v6112 = vunpack.c.l.b16 %v6043
      %v6113 = vunpack.c.l.b16 %v6044
      %v6114 = vunpack.c.l.b16 %v6045
      %v6115 = vunpack.c.l.b16 %v6046
      %v6116 = vpack.c.b16 %v6085, %v6084
      %v6117 = vpack.c.b16 %v6087, %v6086
      %v6118 = vpack.c.b16 %v6089, %v6088
      %v6119 = vpack.c.b16 %v6091, %v6090
      %v6120 = vpack.c.b16 %v6093, %v6092
      %v6121 = vpack.c.b16 %v6095, %v6094
      %v6122 = vpack.c.b16 %v6097, %v6096
      %v6123 = vpack.c.b16 %v6099, %v6098
      %v6124 = vpack.c.b16 %v6101, %v6100
      %v6125 = vpack.c.b16 %v6103, %v6102
      %v6126 = vpack.c.b16 %v6105, %v6104
      %v6127 = vpack.c.b16 %v6107, %v6106
      %v6128 = vpack.c.b16 %v6109, %v6108
      %v6129 = vpack.c.b16 %v6111, %v6110
      %v6130 = vpack.c.b16 %v6113, %v6112
      %v6131 = vpack.c.b16 %v6115, %v6114
      %v6137 = vunpack.c.l.b16 %v6047
      %v6138 = vunpack.c.l.b16 %v6048
      %v6139 = vunpack.c.l.b16 %v6049
      %v6140 = vunpack.c.l.b16 %v6050
      %v6141 = vunpack.c.l.b16 %v6051
      %v6142 = vpack.c.b16 %v6138, %v6137
      %v6143 = vpack.c.b16 %v6140, %v6139
      %v6144 = vpack.c.b16 %v6141, %v6141
      %vm6147 = vcmask 326656
      %v6149 = vsel %vm6147, %v6116, 0
      %v6152 = vsel %vm6147, %v6117, 0
      %v6155 = vsel %vm6147, %v6118, 0
      %v6158 = vsel %vm6147, %v6119, 0
      %v6161 = vsel %vm6147, %v6120, 0
      %v6164 = vsel %vm6147, %v6121, 0
      %v6167 = vsel %vm6147, %v6122, 0
      %v6170 = vsel %vm6147, %v6123, 0
      %v6173 = vsel %vm6147, %v6124, 0
      %v6176 = vsel %vm6147, %v6125, 0
      %v6179 = vsel %vm6147, %v6126, 0
      %v6182 = vsel %vm6147, %v6127, 0
      %v6185 = vsel %vm6147, %v6128, 0
      %v6188 = vsel %vm6147, %v6129, 0
      %v6191 = vsel %vm6147, %v6130, 0
      %v6194 = vsel %vm6147, %v6131, 0
      %v6197 = vsel %vm584, %v6144, 0
      %6199 = vmatprep.subr.bf16.mxu0 0
      %6200 = vmatpush1.bf16.msra.mxu0 0
      %6201 = vmatprep.subr.bf16.mxu0 0
      %6202 = vmatpush1.bf16.msra.mxu0 0
      %6203 = vmatprep.subr.bf16.mxu0 0
      %6204 = vmatpush1.bf16.msra.mxu0 0
      %6205 = vmatprep.subr.bf16.mxu0 0
      %6206 = vmatpush1.bf16.msra.mxu0 0
      %6207 = vmatprep.subr.bf16.mxu0 0
      %6208 = vmatpush1.bf16.msra.mxu0 0
      %6209 = vmatprep.subr.bf16.mxu0 0
      %6210 = vmatpush1.bf16.msra.mxu0 %v6197
      %6211 = vmatprep.subr.bf16.mxu0 0
      %6212 = vmatpush1.bf16.msra.mxu0 %v6143
      %6213 = vmatprep.subr.bf16.mxu0 0
      %6214 = vmatpush1.bf16.msra.mxu0 %v6142
      %6215 = vmatprep.subr.bf16.mxu0 0
      %6216 = vmatpush2.bf16.msra.mxu0 0
      %6217 = vmatprep.subr.bf16.mxu0 0
      %6218 = vmatpush2.bf16.msra.mxu0 0
      %6219 = vmatprep.subr.bf16.mxu0 0
      %6220 = vmatpush2.bf16.msra.mxu0 0
      %6221 = vmatprep.subr.bf16.mxu0 0
      %6222 = vmatpush2.bf16.msra.mxu0 0
      %6223 = vmatprep.subr.bf16.mxu0 0
      %6224 = vmatpush2.bf16.msra.mxu0 0
      %6225 = vmatprep.subr.bf16.mxu0 0
      %6226 = vmatpush2.bf16.msra.mxu0 0
      %6227 = vmatprep.subr.bf16.mxu0 0
      %6228 = vmatpush2.bf16.msra.mxu0 0
      %6229 = vmatprep.subr.bf16.mxu0 0
      %6230 = vmatpush2.bf16.msra.mxu0 0
      %6231 = vmatprep.mubr.bf16.mxu0 0
      %6232 = vmatmul.mubr.bf16.gmra.mxu0 %v6149
      %v6233 = vpop.f32.mrf.mxu0
      %v6234 = vadd.f32 0.0, %v6233
      %v6235 = vpop.f32.mrf.mxu0
      %v6236 = vpop.f32.mrf.mxu0
      %v6237 = vadd.f32 0.0, %v6236
      %v6238 = vpop.f32.mrf.mxu0
      %6239 = vmatprep.mubr.bf16.mxu0 0
      %6240 = vmatmul.mubr.bf16.gmra.mxu0 %v6152
      %v6241 = vpop.f32.mrf.mxu0
      %v6242 = vadd.f32 0.0, %v6241
      %v6243 = vpop.f32.mrf.mxu0
      %v6244 = vpop.f32.mrf.mxu0
      %v6245 = vadd.f32 0.0, %v6244
      %v6246 = vpop.f32.mrf.mxu0
      %6247 = vmatprep.mubr.bf16.mxu0 0
      %6248 = vmatmul.mubr.bf16.gmra.mxu0 %v6155
      %v6249 = vpop.f32.mrf.mxu0
      %v6250 = vadd.f32 0.0, %v6249
      %v6251 = vpop.f32.mrf.mxu0
      %v6252 = vpop.f32.mrf.mxu0
      %v6253 = vadd.f32 0.0, %v6252
      %v6254 = vpop.f32.mrf.mxu0
      %6255 = vmatprep.mubr.bf16.mxu0 0
      %6256 = vmatmul.mubr.bf16.gmra.mxu0 %v6158
      %v6257 = vpop.f32.mrf.mxu0
      %v6258 = vadd.f32 0.0, %v6257
      %v6259 = vpop.f32.mrf.mxu0
      %v6260 = vpop.f32.mrf.mxu0
      %v6261 = vadd.f32 0.0, %v6260
      %v6262 = vpop.f32.mrf.mxu0
      %6263 = vmatprep.mubr.bf16.mxu0 0
      %6264 = vmatmul.mubr.bf16.gmra.mxu0 %v6161
      %v6265 = vpop.f32.mrf.mxu0
      %v6266 = vadd.f32 0.0, %v6265
      %v6267 = vpop.f32.mrf.mxu0
      %v6268 = vpop.f32.mrf.mxu0
      %v6269 = vadd.f32 0.0, %v6268
      %v6270 = vpop.f32.mrf.mxu0
      %6271 = vmatprep.mubr.bf16.mxu0 0
      %6272 = vmatmul.mubr.bf16.gmra.mxu0 %v6164
      %v6273 = vpop.f32.mrf.mxu0
      %v6274 = vadd.f32 0.0, %v6273
      %v6275 = vpop.f32.mrf.mxu0
      %v6276 = vpop.f32.mrf.mxu0
      %v6277 = vadd.f32 0.0, %v6276
      %v6278 = vpop.f32.mrf.mxu0
      %6279 = vmatprep.mubr.bf16.mxu0 0
      %6280 = vmatmul.mubr.bf16.gmra.mxu0 %v6167
      %v6281 = vpop.f32.mrf.mxu0
      %v6282 = vadd.f32 0.0, %v6281
      %v6283 = vpop.f32.mrf.mxu0
      %v6284 = vpop.f32.mrf.mxu0
      %v6285 = vadd.f32 0.0, %v6284
      %v6286 = vpop.f32.mrf.mxu0
      %6287 = vmatprep.mubr.bf16.mxu0 0
      %6288 = vmatmul.mubr.bf16.gmra.mxu0 %v6170
      %v6289 = vpop.f32.mrf.mxu0
      %v6290 = vadd.f32 0.0, %v6289
      %v6291 = vpop.f32.mrf.mxu0
      %v6292 = vpop.f32.mrf.mxu0
      %v6293 = vadd.f32 0.0, %v6292
      %v6294 = vpop.f32.mrf.mxu0
      %6295 = vmatprep.mubr.bf16.mxu0 0
      %6296 = vmatmul.mubr.bf16.gmra.mxu0 %v6173
      %v6297 = vpop.f32.mrf.mxu0
      %v6298 = vadd.f32 0.0, %v6297
      %v6299 = vpop.f32.mrf.mxu0
      %v6300 = vpop.f32.mrf.mxu0
      %v6301 = vadd.f32 0.0, %v6300
      %v6302 = vpop.f32.mrf.mxu0
      %6303 = vmatprep.mubr.bf16.mxu0 0
      %6304 = vmatmul.mubr.bf16.gmra.mxu0 %v6176
      %v6305 = vpop.f32.mrf.mxu0
      %v6306 = vadd.f32 0.0, %v6305
      %v6307 = vpop.f32.mrf.mxu0
      %v6308 = vpop.f32.mrf.mxu0
      %v6309 = vadd.f32 0.0, %v6308
      %v6310 = vpop.f32.mrf.mxu0
      %6311 = vmatprep.mubr.bf16.mxu0 0
      %6312 = vmatmul.mubr.bf16.gmra.mxu0 %v6179
      %v6313 = vpop.f32.mrf.mxu0
      %v6314 = vadd.f32 0.0, %v6313
      %v6315 = vpop.f32.mrf.mxu0
      %v6316 = vpop.f32.mrf.mxu0
      %v6317 = vadd.f32 0.0, %v6316
      %v6318 = vpop.f32.mrf.mxu0
      %6319 = vmatprep.mubr.bf16.mxu0 0
      %6320 = vmatmul.mubr.bf16.gmra.mxu0 %v6182
      %v6321 = vpop.f32.mrf.mxu0
      %v6322 = vadd.f32 0.0, %v6321
      %v6323 = vpop.f32.mrf.mxu0
      %v6324 = vpop.f32.mrf.mxu0
      %v6325 = vadd.f32 0.0, %v6324
      %v6326 = vpop.f32.mrf.mxu0
      %6327 = vmatprep.mubr.bf16.mxu0 0
      %6328 = vmatmul.mubr.bf16.gmra.mxu0 %v6185
      %v6329 = vpop.f32.mrf.mxu0
      %v6330 = vadd.f32 0.0, %v6329
      %v6331 = vpop.f32.mrf.mxu0
      %v6332 = vpop.f32.mrf.mxu0
      %v6333 = vadd.f32 0.0, %v6332
      %v6334 = vpop.f32.mrf.mxu0
      %6335 = vmatprep.mubr.bf16.mxu0 0
      %6336 = vmatmul.mubr.bf16.gmra.mxu0 %v6188
      %v6337 = vpop.f32.mrf.mxu0
      %v6338 = vadd.f32 0.0, %v6337
      %v6339 = vpop.f32.mrf.mxu0
      %v6340 = vpop.f32.mrf.mxu0
      %v6341 = vadd.f32 0.0, %v6340
      %v6342 = vpop.f32.mrf.mxu0
      %6343 = vmatprep.mubr.bf16.mxu0 0
      %6344 = vmatmul.mubr.bf16.gmra.mxu0 %v6191
      %v6345 = vpop.f32.mrf.mxu0
      %v6346 = vadd.f32 0.0, %v6345
      %v6347 = vpop.f32.mrf.mxu0
      %v6348 = vpop.f32.mrf.mxu0
      %v6349 = vadd.f32 0.0, %v6348
      %v6350 = vpop.f32.mrf.mxu0
      %6351 = vmatprep.mubr.bf16.mxu0 0
      %6352 = vmatmul.mubr.bf16.gmra.mxu0 %v6194
      %v6353 = vpop.f32.mrf.mxu0
      %v6354 = vadd.f32 0.0, %v6353
      %v6355 = vpop.f32.mrf.mxu0
      %v6356 = vpop.f32.mrf.mxu0
      %v6357 = vadd.f32 0.0, %v6356
      %v6358 = vpop.f32.mrf.mxu0
      %6359 = vdwg.mxu0
      %v6360 = vld [vmem:[%s5] sm:$0x1]
      %v6362 = vlaneseq
      %v6363 = vshrl.u32 %v6362, 7
      %v6364 = vsub.s32 0, %v6363
      %v6365 = vrot.slane %v6360, %v6364
      %v6367 = vmul.f32 %v6234, %v6365
      %v6368 = vmul.f32 %v6237, %v6365
      %v6369 = vmul.f32 %v6242, %v6365
      %v6370 = vmul.f32 %v6245, %v6365
      %v6371 = vmul.f32 %v6250, %v6365
      %v6372 = vmul.f32 %v6253, %v6365
      %v6373 = vmul.f32 %v6258, %v6365
      %v6374 = vmul.f32 %v6261, %v6365
      %v6375 = vmul.f32 %v6266, %v6365
      %v6376 = vmul.f32 %v6269, %v6365
      %v6377 = vmul.f32 %v6274, %v6365
      %v6378 = vmul.f32 %v6277, %v6365
      %v6379 = vmul.f32 %v6282, %v6365
      %v6380 = vmul.f32 %v6285, %v6365
      %v6381 = vmul.f32 %v6290, %v6365
      %v6382 = vmul.f32 %v6293, %v6365
      %v6383 = vmul.f32 %v6298, %v6365
      %v6384 = vmul.f32 %v6301, %v6365
      %v6385 = vmul.f32 %v6306, %v6365
      %v6386 = vmul.f32 %v6309, %v6365
      %v6387 = vmul.f32 %v6314, %v6365
      %v6388 = vmul.f32 %v6317, %v6365
      %v6389 = vmul.f32 %v6322, %v6365
      %v6390 = vmul.f32 %v6325, %v6365
      %v6391 = vmul.f32 %v6330, %v6365
      %v6392 = vmul.f32 %v6333, %v6365
      %v6393 = vmul.f32 %v6338, %v6365
      %v6394 = vmul.f32 %v6341, %v6365
      %v6395 = vmul.f32 %v6346, %v6365
      %v6396 = vmul.f32 %v6349, %v6365
      %v6397 = vmul.f32 %v6354, %v6365
      %v6398 = vmul.f32 %v6357, %v6365
      %v6399 = vld [vmem:[%s6] sm:$0x1]
      %v6401 = vlaneseq
      %v6402 = vshrl.u32 %v6401, 7
      %v6403 = vsub.s32 0, %v6402
      %v6404 = vrot.slane %v6399, %v6403
      %v6406 = vadd.f32 %v6367, %v6404
      %v6407 = vadd.f32 %v6368, %v6404
      %v6408 = vadd.f32 %v6369, %v6404
      %v6409 = vadd.f32 %v6370, %v6404
      %v6410 = vadd.f32 %v6371, %v6404
      %v6411 = vadd.f32 %v6372, %v6404
      %v6412 = vadd.f32 %v6373, %v6404
      %v6413 = vadd.f32 %v6374, %v6404
      %v6414 = vadd.f32 %v6375, %v6404
      %v6415 = vadd.f32 %v6376, %v6404
      %v6416 = vadd.f32 %v6377, %v6404
      %v6417 = vadd.f32 %v6378, %v6404
      %v6418 = vadd.f32 %v6379, %v6404
      %v6419 = vadd.f32 %v6380, %v6404
      %v6420 = vadd.f32 %v6381, %v6404
      %v6421 = vadd.f32 %v6382, %v6404
      %v6422 = vadd.f32 %v6383, %v6404
      %v6423 = vadd.f32 %v6384, %v6404
      %v6424 = vadd.f32 %v6385, %v6404
      %v6425 = vadd.f32 %v6386, %v6404
      %v6426 = vadd.f32 %v6387, %v6404
      %v6427 = vadd.f32 %v6388, %v6404
      %v6428 = vadd.f32 %v6389, %v6404
      %v6429 = vadd.f32 %v6390, %v6404
      %v6430 = vadd.f32 %v6391, %v6404
      %v6431 = vadd.f32 %v6392, %v6404
      %v6432 = vadd.f32 %v6393, %v6404
      %v6433 = vadd.f32 %v6394, %v6404
      %v6434 = vadd.f32 %v6395, %v6404
      %v6435 = vadd.f32 %v6396, %v6404
      %v6436 = vadd.f32 %v6397, %v6404
      %v6437 = vadd.f32 %v6398, %v6404
      %v6438 = vmax.f32 %v6406, 0.0
      %v6439 = vmax.f32 %v6407, 0.0
      %v6440 = vmax.f32 %v6408, 0.0
      %v6441 = vmax.f32 %v6409, 0.0
      %v6442 = vmax.f32 %v6410, 0.0
      %v6443 = vmax.f32 %v6411, 0.0
      %v6444 = vmax.f32 %v6412, 0.0
      %v6445 = vmax.f32 %v6413, 0.0
      %v6446 = vmax.f32 %v6414, 0.0
      %v6447 = vmax.f32 %v6415, 0.0
      %v6448 = vmax.f32 %v6416, 0.0
      %v6449 = vmax.f32 %v6417, 0.0
      %v6450 = vmax.f32 %v6418, 0.0
      %v6451 = vmax.f32 %v6419, 0.0
      %v6452 = vmax.f32 %v6420, 0.0
      %v6453 = vmax.f32 %v6421, 0.0
      %v6454 = vmax.f32 %v6422, 0.0
      %v6455 = vmax.f32 %v6423, 0.0
      %v6456 = vmax.f32 %v6424, 0.0
      %v6457 = vmax.f32 %v6425, 0.0
      %v6458 = vmax.f32 %v6426, 0.0
      %v6459 = vmax.f32 %v6427, 0.0
      %v6460 = vmax.f32 %v6428, 0.0
      %v6461 = vmax.f32 %v6429, 0.0
      %v6462 = vmax.f32 %v6430, 0.0
      %v6463 = vmax.f32 %v6431, 0.0
      %v6464 = vmax.f32 %v6432, 0.0
      %v6465 = vmax.f32 %v6433, 0.0
      %v6466 = vmax.f32 %v6434, 0.0
      %v6467 = vmax.f32 %v6435, 0.0
      %v6468 = vmax.f32 %v6436, 0.0
      %v6469 = vmax.f32 %v6437, 0.0
      %6502 = vrot.lane.b32.xlu0 %v422, 8
      %v6503 = vpop.permute.xlu0 %6502
      %6504 = vrot.lane.b32.xlu0 %v423, 8
      %v6505 = vpop.permute.xlu0 %6504
      %6506 = vrot.lane.b32.xlu0 %v424, 8
      %v6507 = vpop.permute.xlu0 %6506
      %6508 = vrot.lane.b32.xlu0 %v425, 8
      %v6509 = vpop.permute.xlu0 %6508
      %6510 = vrot.lane.b32.xlu0 %v426, 8
      %v6511 = vpop.permute.xlu0 %6510
      %6512 = vrot.lane.b32.xlu0 %v427, 8
      %v6513 = vpop.permute.xlu0 %6512
      %6514 = vrot.lane.b32.xlu0 %v428, 8
      %v6515 = vpop.permute.xlu0 %6514
      %6516 = vrot.lane.b32.xlu0 %v429, 8
      %v6517 = vpop.permute.xlu0 %6516
      %6518 = vrot.lane.b32.xlu0 %v430, 8
      %v6519 = vpop.permute.xlu0 %6518
      %6520 = vrot.lane.b32.xlu0 %v431, 8
      %v6521 = vpop.permute.xlu0 %6520
      %6522 = vrot.lane.b32.xlu0 %v432, 8
      %v6523 = vpop.permute.xlu0 %6522
      %6524 = vrot.lane.b32.xlu0 %v433, 8
      %v6525 = vpop.permute.xlu0 %6524
      %6526 = vrot.lane.b32.xlu0 %v434, 8
      %v6527 = vpop.permute.xlu0 %6526
      %6528 = vrot.lane.b32.xlu0 %v435, 8
      %v6529 = vpop.permute.xlu0 %6528
      %6530 = vrot.lane.b32.xlu0 %v436, 8
      %v6531 = vpop.permute.xlu0 %6530
      %6532 = vrot.lane.b32.xlu0 %v437, 8
      %v6533 = vpop.permute.xlu0 %6532
      %6534 = vrot.lane.b32.xlu0 %v438, 8
      %v6535 = vpop.permute.xlu0 %6534
      %6536 = vrot.lane.b32.xlu0 %v439, 8
      %v6537 = vpop.permute.xlu0 %6536
      %6538 = vrot.lane.b32.xlu0 %v440, 8
      %v6539 = vpop.permute.xlu0 %6538
      %6540 = vrot.lane.b32.xlu0 %v441, 8
      %v6541 = vpop.permute.xlu0 %6540
      %6542 = vrot.lane.b32.xlu0 %v442, 8
      %v6543 = vpop.permute.xlu0 %6542
      %6544 = vrot.lane.b32.xlu0 %v443, 8
      %v6545 = vpop.permute.xlu0 %6544
      %6546 = vrot.lane.b32.xlu0 %v444, 8
      %v6547 = vpop.permute.xlu0 %6546
      %6548 = vrot.lane.b32.xlu0 %v445, 8
      %v6549 = vpop.permute.xlu0 %6548
      %6550 = vrot.lane.b32.xlu0 %v446, 8
      %v6551 = vpop.permute.xlu0 %6550
      %6552 = vrot.lane.b32.xlu0 %v447, 8
      %v6553 = vpop.permute.xlu0 %6552
      %6554 = vrot.lane.b32.xlu0 %v448, 8
      %v6555 = vpop.permute.xlu0 %6554
      %6556 = vrot.lane.b32.xlu0 %v449, 8
      %v6557 = vpop.permute.xlu0 %6556
      %6558 = vrot.lane.b32.xlu0 %v450, 8
      %v6559 = vpop.permute.xlu0 %6558
      %6560 = vrot.lane.b32.xlu0 %v451, 8
      %v6561 = vpop.permute.xlu0 %6560
      %6562 = vrot.lane.b32.xlu0 %v452, 8
      %v6563 = vpop.permute.xlu0 %6562
      %6564 = vrot.lane.b32.xlu0 %v453, 8
      %v6565 = vpop.permute.xlu0 %6564
      %v6598 = vsel %vm535, %v422, %v6503
      %v6599 = vsel %vm535, %v423, %v6505
      %v6600 = vsel %vm535, %v424, %v6507
      %v6601 = vsel %vm535, %v425, %v6509
      %v6602 = vsel %vm535, %v426, %v6511
      %v6603 = vsel %vm535, %v427, %v6513
      %v6604 = vsel %vm535, %v428, %v6515
      %v6605 = vsel %vm535, %v429, %v6517
      %v6606 = vsel %vm535, %v430, %v6519
      %v6607 = vsel %vm535, %v431, %v6521
      %v6608 = vsel %vm535, %v432, %v6523
      %v6609 = vsel %vm535, %v433, %v6525
      %v6610 = vsel %vm535, %v434, %v6527
      %v6611 = vsel %vm535, %v435, %v6529
      %v6612 = vsel %vm535, %v436, %v6531
      %v6613 = vsel %vm535, %v437, %v6533
      %v6614 = vsel %vm535, %v438, %v6535
      %v6615 = vsel %vm535, %v439, %v6537
      %v6616 = vsel %vm535, %v440, %v6539
      %v6617 = vsel %vm535, %v441, %v6541
      %v6618 = vsel %vm535, %v442, %v6543
      %v6619 = vsel %vm535, %v443, %v6545
      %v6620 = vsel %vm535, %v444, %v6547
      %v6621 = vsel %vm535, %v445, %v6549
      %v6622 = vsel %vm535, %v446, %v6551
      %v6623 = vsel %vm535, %v447, %v6553
      %v6624 = vsel %vm535, %v448, %v6555
      %v6625 = vsel %vm535, %v449, %v6557
      %v6626 = vsel %vm535, %v450, %v6559
      %v6627 = vsel %vm535, %v451, %v6561
      %v6628 = vsel %vm535, %v452, %v6563
      %v6629 = vsel %vm535, %v453, %v6565
      %v6630 = vadd.f32 %v6438, %v6598
      %v6631 = vadd.f32 %v6439, %v6599
      %v6632 = vadd.f32 %v6440, %v6600
      %v6633 = vadd.f32 %v6441, %v6601
      %v6634 = vadd.f32 %v6442, %v6602
      %v6635 = vadd.f32 %v6443, %v6603
      %v6636 = vadd.f32 %v6444, %v6604
      %v6637 = vadd.f32 %v6445, %v6605
      %v6638 = vadd.f32 %v6446, %v6606
      %v6639 = vadd.f32 %v6447, %v6607
      %v6640 = vadd.f32 %v6448, %v6608
      %v6641 = vadd.f32 %v6449, %v6609
      %v6642 = vadd.f32 %v6450, %v6610
      %v6643 = vadd.f32 %v6451, %v6611
      %v6644 = vadd.f32 %v6452, %v6612
      %v6645 = vadd.f32 %v6453, %v6613
      %v6646 = vadd.f32 %v6454, %v6614
      %v6647 = vadd.f32 %v6455, %v6615
      %v6648 = vadd.f32 %v6456, %v6616
      %v6649 = vadd.f32 %v6457, %v6617
      %v6650 = vadd.f32 %v6458, %v6618
      %v6651 = vadd.f32 %v6459, %v6619
      %v6652 = vadd.f32 %v6460, %v6620
      %v6653 = vadd.f32 %v6461, %v6621
      %v6654 = vadd.f32 %v6462, %v6622
      %v6655 = vadd.f32 %v6463, %v6623
      %v6656 = vadd.f32 %v6464, %v6624
      %v6657 = vadd.f32 %v6465, %v6625
      %v6658 = vadd.f32 %v6466, %v6626
      %v6659 = vadd.f32 %v6467, %v6627
      %v6660 = vadd.f32 %v6468, %v6628
      %v6661 = vadd.f32 %v6469, %v6629
      %vm6662 = vcmask 130048
      %v6663 = vsel %vm6662, %v6630, 0.0
      %v6664 = vsel %vm6662, %v6631, 0.0
      %v6665 = vadd.f32 %v6663, %v6664
      %v6666 = vsel %vm6662, %v6632, 0.0
      %v6667 = vadd.f32 %v6665, %v6666
      %v6668 = vsel %vm6662, %v6633, 0.0
      %v6669 = vadd.f32 %v6667, %v6668
      %v6670 = vsel %vm6662, %v6634, 0.0
      %v6671 = vadd.f32 %v6669, %v6670
      %v6672 = vsel %vm6662, %v6635, 0.0
      %v6673 = vadd.f32 %v6671, %v6672
      %v6674 = vsel %vm6662, %v6636, 0.0
      %v6675 = vadd.f32 %v6673, %v6674
      %v6676 = vsel %vm6662, %v6637, 0.0
      %v6677 = vadd.f32 %v6675, %v6676
      %v6678 = vsel %vm6662, %v6638, 0.0
      %v6679 = vadd.f32 %v6677, %v6678
      %v6680 = vsel %vm6662, %v6639, 0.0
      %v6681 = vadd.f32 %v6679, %v6680
      %v6682 = vsel %vm6662, %v6640, 0.0
      %v6683 = vadd.f32 %v6681, %v6682
      %v6684 = vsel %vm6662, %v6641, 0.0
      %v6685 = vadd.f32 %v6683, %v6684
      %v6686 = vsel %vm6662, %v6642, 0.0
      %v6687 = vadd.f32 %v6685, %v6686
      %v6688 = vsel %vm6662, %v6643, 0.0
      %v6689 = vadd.f32 %v6687, %v6688
      %v6690 = vsel %vm6662, %v6644, 0.0
      %v6691 = vadd.f32 %v6689, %v6690
      %v6692 = vsel %vm6662, %v6645, 0.0
      %v6693 = vadd.f32 %v6691, %v6692
      %v6694 = vsel %vm6662, %v6646, 0.0
      %v6695 = vadd.f32 %v6693, %v6694
      %v6696 = vsel %vm6662, %v6647, 0.0
      %v6697 = vadd.f32 %v6695, %v6696
      %v6698 = vsel %vm6662, %v6648, 0.0
      %v6699 = vadd.f32 %v6697, %v6698
      %v6700 = vsel %vm6662, %v6649, 0.0
      %v6701 = vadd.f32 %v6699, %v6700
      %v6702 = vsel %vm6662, %v6650, 0.0
      %v6703 = vadd.f32 %v6701, %v6702
      %v6704 = vsel %vm6662, %v6651, 0.0
      %v6705 = vadd.f32 %v6703, %v6704
      %v6706 = vsel %vm6662, %v6652, 0.0
      %v6707 = vadd.f32 %v6705, %v6706
      %v6708 = vsel %vm6662, %v6653, 0.0
      %v6709 = vadd.f32 %v6707, %v6708
      %v6710 = vsel %vm6662, %v6654, 0.0
      %v6711 = vadd.f32 %v6709, %v6710
      %v6712 = vsel %vm6662, %v6655, 0.0
      %v6713 = vadd.f32 %v6711, %v6712
      %v6714 = vsel %vm6662, %v6656, 0.0
      %v6715 = vadd.f32 %v6713, %v6714
      %v6716 = vsel %vm6662, %v6657, 0.0
      %v6717 = vadd.f32 %v6715, %v6716
      %v6718 = vsel %vm6662, %v6658, 0.0
      %v6719 = vadd.f32 %v6717, %v6718
      %v6720 = vsel %vm6662, %v6659, 0.0
      %v6721 = vadd.f32 %v6719, %v6720
      %v6722 = vsel %vm6662, %v6660, 0.0
      %v6723 = vadd.f32 %v6721, %v6722
      %v6724 = vsel %vm6662, %v6661, 0.0
      %v6725 = vadd.f32 %v6723, %v6724
      %v6726 = vrot.slane %v6725, 4
      %v6727 = vadd.f32 %v6725, %v6726
      %v6728 = vrot.slane %v6727, 2
      %v6729 = vadd.f32 %v6727, %v6728
      %v6730 = vrot.slane %v6729, 1
      %v6731 = vadd.f32 %v6729, %v6730
      %v6732 = vmul.f32 %v6731, 0.00390625
      %v6733 = vld [vmem:[%s7] sm:$0xff]
      %v6734 = vld [vmem:[%s7 + $0x8] sm:$0xff]
      %v6735 = vld [vmem:[%s8] sm:$0x1]
      %v6737 = vsel %vm6662, %v6732, 0
      %6739 = vmatprep.subr.mxu0 0.0
      %6740 = vmatpush1.msra.mxu0 0.0
      %6741 = vmatprep.subr.mxu0 0.0
      %6742 = vmatpush1.msra.mxu0 0.0
      %6743 = vmatprep.subr.mxu0 0.0
      %6744 = vmatpush1.msra.mxu0 0.0
      %6745 = vmatprep.subr.mxu0 0.0
      %6746 = vmatpush1.msra.mxu0 0.0
      %6747 = vmatprep.subr.mxu0 0.0
      %6748 = vmatpush1.msra.mxu0 0.0
      %6749 = vmatprep.subr.mxu0 0.0
      %6750 = vmatpush1.msra.mxu0 0.0
      %6751 = vmatprep.subr.mxu0 0.0
      %6752 = vmatpush1.msra.mxu0 0.0
      %6753 = vmatprep.subr.mxu0 0.0
      %6754 = vmatpush1.msra.mxu0 0.0
      %6755 = vmatprep.subr.mxu0 0.0
      %6756 = vmatpush1.msra.mxu0 0.0
      %6757 = vmatprep.subr.mxu0 0.0
      %6758 = vmatpush1.msra.mxu0 0.0
      %6759 = vmatprep.subr.mxu0 0.0
      %6760 = vmatpush1.msra.mxu0 0.0
      %6761 = vmatprep.subr.mxu0 0.0
      %6762 = vmatpush1.msra.mxu0 0.0
      %6763 = vmatprep.subr.mxu0 0.0
      %6764 = vmatpush1.msra.mxu0 0.0
      %6765 = vmatprep.subr.mxu0 0.0
      %6766 = vmatpush1.msra.mxu0 0.0
      %6767 = vmatprep.subr.mxu0 0.0
      %6768 = vmatpush1.msra.mxu0 %v6734
      %6769 = vmatprep.subr.mxu0 0.0
      %6770 = vmatpush1.msra.mxu0 %v6733
      %6771 = vmatprep.subr.mxu0 0.0
      %6772 = vmatpush2.msra.mxu0 0.0
      %6773 = vmatprep.subr.mxu0 0.0
      %6774 = vmatpush2.msra.mxu0 0.0
      %6775 = vmatprep.subr.mxu0 0.0
      %6776 = vmatpush2.msra.mxu0 0.0
      %6777 = vmatprep.subr.mxu0 0.0
      %6778 = vmatpush2.msra.mxu0 0.0
      %6779 = vmatprep.subr.mxu0 0.0
      %6780 = vmatpush2.msra.mxu0 0.0
      %6781 = vmatprep.subr.mxu0 0.0
      %6782 = vmatpush2.msra.mxu0 0.0
      %6783 = vmatprep.subr.mxu0 0.0
      %6784 = vmatpush2.msra.mxu0 0.0
      %6785 = vmatprep.subr.mxu0 0.0
      %6786 = vmatpush2.msra.mxu0 0.0
      %6787 = vmatprep.subr.mxu0 0.0
      %6788 = vmatpush2.msra.mxu0 0.0
      %6789 = vmatprep.subr.mxu0 0.0
      %6790 = vmatpush2.msra.mxu0 0.0
      %6791 = vmatprep.subr.mxu0 0.0
      %6792 = vmatpush2.msra.mxu0 0.0
      %6793 = vmatprep.subr.mxu0 0.0
      %6794 = vmatpush2.msra.mxu0 0.0
      %6795 = vmatprep.subr.mxu0 0.0
      %6796 = vmatpush2.msra.mxu0 0.0
      %6797 = vmatprep.subr.mxu0 0.0
      %6798 = vmatpush2.msra.mxu0 0.0
      %6799 = vmatprep.subr.mxu0 0.0
      %6800 = vmatpush2.msra.mxu0 0.0
      %6801 = vmatprep.subr.mxu0 0.0
      %6802 = vmatpush2.msra.mxu0 0.0
      %6803 = vmatprep.mubr.f32.mxu0 0.0
      %6804 = vmatmul.mubr.f32.gmra.mxu0 %v6737
      %v6805 = vpop.f32.mrf.mxu0
      %v6806 = vadd.f32 %v6735, %v6805
      %v6807 = vpop.f32.mrf.mxu0
      %6808 = vdwg.mxu0
      %v6809 = vmax.f32 %v6806, 0.0
      %v6810 = vld [vmem:[%s9] sm:$0xff]
      %v6811 = vld [vmem:[%s10] sm:$0x1]
      %v6813 = vsel %vm535, %v6809, 0
      %6815 = vmatprep.subr.mxu0 0.0
      %6816 = vmatpush1.msra.mxu0 0.0
      %6817 = vmatprep.subr.mxu0 0.0
      %6818 = vmatpush1.msra.mxu0 0.0
      %6819 = vmatprep.subr.mxu0 0.0
      %6820 = vmatpush1.msra.mxu0 0.0
      %6821 = vmatprep.subr.mxu0 0.0
      %6822 = vmatpush1.msra.mxu0 0.0
      %6823 = vmatprep.subr.mxu0 0.0
      %6824 = vmatpush1.msra.mxu0 0.0
      %6825 = vmatprep.subr.mxu0 0.0
      %6826 = vmatpush1.msra.mxu0 0.0
      %6827 = vmatprep.subr.mxu0 0.0
      %6828 = vmatpush1.msra.mxu0 0.0
      %6829 = vmatprep.subr.mxu0 0.0
      %6830 = vmatpush1.msra.mxu0 0.0
      %6831 = vmatprep.subr.mxu0 0.0
      %6832 = vmatpush1.msra.mxu0 0.0
      %6833 = vmatprep.subr.mxu0 0.0
      %6834 = vmatpush1.msra.mxu0 0.0
      %6835 = vmatprep.subr.mxu0 0.0
      %6836 = vmatpush1.msra.mxu0 0.0
      %6837 = vmatprep.subr.mxu0 0.0
      %6838 = vmatpush1.msra.mxu0 0.0
      %6839 = vmatprep.subr.mxu0 0.0
      %6840 = vmatpush1.msra.mxu0 0.0
      %6841 = vmatprep.subr.mxu0 0.0
      %6842 = vmatpush1.msra.mxu0 0.0
      %6843 = vmatprep.subr.mxu0 0.0
      %6844 = vmatpush1.msra.mxu0 0.0
      %6845 = vmatprep.subr.mxu0 0.0
      %6846 = vmatpush1.msra.mxu0 %v6810
      %6847 = vmatprep.subr.mxu0 0.0
      %6848 = vmatpush2.msra.mxu0 0.0
      %6849 = vmatprep.subr.mxu0 0.0
      %6850 = vmatpush2.msra.mxu0 0.0
      %6851 = vmatprep.subr.mxu0 0.0
      %6852 = vmatpush2.msra.mxu0 0.0
      %6853 = vmatprep.subr.mxu0 0.0
      %6854 = vmatpush2.msra.mxu0 0.0
      %6855 = vmatprep.subr.mxu0 0.0
      %6856 = vmatpush2.msra.mxu0 0.0
      %6857 = vmatprep.subr.mxu0 0.0
      %6858 = vmatpush2.msra.mxu0 0.0
      %6859 = vmatprep.subr.mxu0 0.0
      %6860 = vmatpush2.msra.mxu0 0.0
      %6861 = vmatprep.subr.mxu0 0.0
      %6862 = vmatpush2.msra.mxu0 0.0
      %6863 = vmatprep.subr.mxu0 0.0
      %6864 = vmatpush2.msra.mxu0 0.0
      %6865 = vmatprep.subr.mxu0 0.0
      %6866 = vmatpush2.msra.mxu0 0.0
      %6867 = vmatprep.subr.mxu0 0.0
      %6868 = vmatpush2.msra.mxu0 0.0
      %6869 = vmatprep.subr.mxu0 0.0
      %6870 = vmatpush2.msra.mxu0 0.0
      %6871 = vmatprep.subr.mxu0 0.0
      %6872 = vmatpush2.msra.mxu0 0.0
      %6873 = vmatprep.subr.mxu0 0.0
      %6874 = vmatpush2.msra.mxu0 0.0
      %6875 = vmatprep.subr.mxu0 0.0
      %6876 = vmatpush2.msra.mxu0 0.0
      %6877 = vmatprep.subr.mxu0 0.0
      %6878 = vmatpush2.msra.mxu0 0.0
      %6879 = vmatprep.mubr.f32.mxu0 0.0
      %6880 = vmatmul.mubr.f32.gmra.mxu0 %v6813
      %v6881 = vpop.f32.mrf.mxu0
      %v6882 = vadd.f32 %v6811, %v6881
      %v6883 = vpop.f32.mrf.mxu0
      %6884 = vdwg.mxu0
      %v6885 = vxor.u32 %v6882, 2147483648
      %v6886 = vmul.f32 %v6885, 1.442695
      %v6887 = vpow.pop %v6886
      %v6888 = vadd.f32 %v6887, 1.0
      %v6889 = vrcp.pop %v6888
      %v6890 = vmul.f32 1.0, %v6889
      %v6891 = vlaneseq
      %v6892 = vshrl.u32 %v6891, 7
      %v6893 = vsub.s32 0, %v6892
      %v6894 = vrot.slane %v6890, %v6893
      %v6895 = vmul.f32 %v6630, %v6894
      %v6896 = vmul.f32 %v6631, %v6894
      %v6897 = vmul.f32 %v6632, %v6894
      %v6898 = vmul.f32 %v6633, %v6894
      %v6899 = vmul.f32 %v6634, %v6894
      %v6900 = vmul.f32 %v6635, %v6894
      %v6901 = vmul.f32 %v6636, %v6894
      %v6902 = vmul.f32 %v6637, %v6894
      %v6903 = vmul.f32 %v6638, %v6894
      %v6904 = vmul.f32 %v6639, %v6894
      %v6905 = vmul.f32 %v6640, %v6894
      %v6906 = vmul.f32 %v6641, %v6894
      %v6907 = vmul.f32 %v6642, %v6894
      %v6908 = vmul.f32 %v6643, %v6894
      %v6909 = vmul.f32 %v6644, %v6894
      %v6910 = vmul.f32 %v6645, %v6894
      %v6911 = vmul.f32 %v6646, %v6894
      %v6912 = vmul.f32 %v6647, %v6894
      %v6913 = vmul.f32 %v6648, %v6894
      %v6914 = vmul.f32 %v6649, %v6894
      %v6915 = vmul.f32 %v6650, %v6894
      %v6916 = vmul.f32 %v6651, %v6894
      %v6917 = vmul.f32 %v6652, %v6894
      %v6918 = vmul.f32 %v6653, %v6894
      %v6919 = vmul.f32 %v6654, %v6894
      %v6920 = vmul.f32 %v6655, %v6894
      %v6921 = vmul.f32 %v6656, %v6894
      %v6922 = vmul.f32 %v6657, %v6894
      %v6923 = vmul.f32 %v6658, %v6894
      %v6924 = vmul.f32 %v6659, %v6894
      %v6925 = vmul.f32 %v6660, %v6894
      %v6926 = vmul.f32 %v6661, %v6894
      %6927 = vst.msk [vmem:[%s386] sm:$0xff] %vm6662, %v6895
      %6928 = vst.msk [vmem:[%s386 + $0x8] sm:$0xff] %vm6662, %v6896
      %6929 = vst.msk [vmem:[%s386 + $0x10] sm:$0xff] %vm6662, %v6897
      %6930 = vst.msk [vmem:[%s386 + $0x18] sm:$0xff] %vm6662, %v6898
      %6931 = vst.msk [vmem:[%s386 + $0x20] sm:$0xff] %vm6662, %v6899
      %6932 = vst.msk [vmem:[%s386 + $0x28] sm:$0xff] %vm6662, %v6900
      %6933 = vst.msk [vmem:[%s386 + $0x30] sm:$0xff] %vm6662, %v6901
      %6934 = vst.msk [vmem:[%s386 + $0x38] sm:$0xff] %vm6662, %v6902
      %6935 = vst.msk [vmem:[%s386 + $0x40] sm:$0xff] %vm6662, %v6903
      %6936 = vst.msk [vmem:[%s386 + $0x48] sm:$0xff] %vm6662, %v6904
      %6937 = vst.msk [vmem:[%s386 + $0x50] sm:$0xff] %vm6662, %v6905
      %6938 = vst.msk [vmem:[%s386 + $0x58] sm:$0xff] %vm6662, %v6906
      %6939 = vst.msk [vmem:[%s386 + $0x60] sm:$0xff] %vm6662, %v6907
      %6940 = vst.msk [vmem:[%s386 + $0x68] sm:$0xff] %vm6662, %v6908
      %6941 = vst.msk [vmem:[%s386 + $0x70] sm:$0xff] %vm6662, %v6909
      %6942 = vst.msk [vmem:[%s386 + $0x78] sm:$0xff] %vm6662, %v6910
      %6943 = vst.msk [vmem:[%s386 + $0x80] sm:$0xff] %vm6662, %v6911
      %6944 = vst.msk [vmem:[%s386 + $0x88] sm:$0xff] %vm6662, %v6912
      %6945 = vst.msk [vmem:[%s386 + $0x90] sm:$0xff] %vm6662, %v6913
      %6946 = vst.msk [vmem:[%s386 + $0x98] sm:$0xff] %vm6662, %v6914
      %6947 = vst.msk [vmem:[%s386 + $0xa0] sm:$0xff] %vm6662, %v6915
      %6948 = vst.msk [vmem:[%s386 + $0xa8] sm:$0xff] %vm6662, %v6916
      %6949 = vst.msk [vmem:[%s386 + $0xb0] sm:$0xff] %vm6662, %v6917
      %6950 = vst.msk [vmem:[%s386 + $0xb8] sm:$0xff] %vm6662, %v6918
      %6951 = vst.msk [vmem:[%s386 + $0xc0] sm:$0xff] %vm6662, %v6919
      %6952 = vst.msk [vmem:[%s386 + $0xc8] sm:$0xff] %vm6662, %v6920
      %6953 = vst.msk [vmem:[%s386 + $0xd0] sm:$0xff] %vm6662, %v6921
      %6954 = vst.msk [vmem:[%s386 + $0xd8] sm:$0xff] %vm6662, %v6922
      %6955 = vst.msk [vmem:[%s386 + $0xe0] sm:$0xff] %vm6662, %v6923
      %6956 = vst.msk [vmem:[%s386 + $0xe8] sm:$0xff] %vm6662, %v6924
      %6957 = vst.msk [vmem:[%s386 + $0xf0] sm:$0xff] %vm6662, %v6925
      %6958 = vst.msk [vmem:[%s386 + $0xf8] sm:$0xff] %vm6662, %v6926
      %p6959 = scmp.lt.s32.totalorder %s22, 1
      %s6960 = scalar_select %p6959, %s22, 1
      %s6961 = smul.addr %s6960, 32
      %s6962 = smul.addr %s6961, 8
      %s6963 = scalar_lea.vmem %s11, %s6962
      // Predicated region
      $region65: #{tpu_custom_call.1} parent=63 // pred_check
        %p6964 = pneg %p276
      $region66: #{tpu_custom_call.1} parent=63 // pred_check_branch
        %6966 = sbr.rel (%p6964) target = $region68
      $region67: #{tpu_custom_call.1} parent=63 // pred_region
        _
      $region68: #{tpu_custom_call.1} parent=63 // pred_fallthru
        _
    $region64: #{tpu_custom_call.1} parent=5 // pred_fallthru
      _
    %p6967 = scmp.le.s32.totalorder 2, %s17
    // Predicated region
    $region69: #{tpu_custom_call.1} parent=5 // pred_check
      %p6968 = pneg %p6967
    $region70: #{tpu_custom_call.1} parent=5 // pred_check_branch
      %6970 = sbr.rel (%p6968) target = $region72
    $region71: #{tpu_custom_call.1} parent=5 // pred_region
      %s6971 = ssub.s32 %s17, 2
      // Predicated region
      $region73: #{tpu_custom_call.1} parent=71 // pred_check
        %p6972 = pneg %p282
      $region74: #{tpu_custom_call.1} parent=71 // pred_check_branch
        %6974 = sbr.rel (%p6972) target = $region76
      $region75: #{tpu_custom_call.1} parent=71 // pred_region
        %p6975 = scmp.lt.s32.totalorder %s23, 1
        %s6976 = scalar_select %p6975, %s23, 1
        %s6977 = smul.addr %s6976, 32
        %s6978 = smul.addr %s6977, 8
        %s6979 = scalar_lea.vmem %s11, %s6978
      $region76: #{tpu_custom_call.1} parent=71 // pred_fallthru
        _
    $region72: #{tpu_custom_call.1} parent=5 // pred_fallthru
      _
  $region6: #{tpu_custom_call.1} parent=0 // loop_footer
    %s21 = sadd.s32 1, %s17
  $region7: #{tpu_custom_call.1} parent=0 // loop_footer_branch
    %16 = sbr.rel target = $region3
  $region8: #{tpu_custom_call.1} parent=0 // loop_exit
    _

</llo_original>
